<compile_context>
chip_gen: v7x
topology: tpu7x:2x2x1
jax: 0.10.0
libtpu: 0.0.40
codegen_flags: <defaults>
</compile_context>

<pallas_src>
from functools import partial

import jax
import jax.numpy as jnp
from jax.experimental import pallas as pl
from jax.experimental.pallas import tpu as pltpu

EPS = 1e-8


def generator_blocks_kernel(x_ref, w1_ref, b1_ref, w2_ref, b2_ref, o_ref, *,
                            K, P, H, W, C_in, C_out, slope, precision):
    # x_ref : (1, C_in, H*W)        upsampled image, channel-major, spatial flattened
    # w1_ref: (K, K, C_out, C_in)   per-tap (C_out, C_in) matrices
    # b1_ref: (C_out, 1)
    # w2_ref: (K, K, C_out, C_out)
    # b2_ref: (C_out, 1)
    # o_ref : (1, C_out, H*W)
    HW = H * W

    # ---- flat-position helpers for the conv border masks (computed once) ----
    pos = jax.lax.broadcasted_iota(jnp.int32, (1, HW), 1)
    if (W & (W - 1)) == 0:
        col = jnp.bitwise_and(pos, W - 1)          # f mod W, cheap for pow2 W
    else:
        # TODO(synk): verify vector i32 rem lowering for non-power-of-two W.
        col = jax.lax.rem(pos, W)

    def _row_mask(kh):
        # valid iff (f // W) + kh - P in [0, H)  <=>  f in [lo, hi)
        lo = max(0, P - kh) * W
        hi = min(H, H + P - kh) * W
        m = None
        if lo > 0:
            m = pos >= lo
        if hi < HW:
            mm = pos < hi
            m = mm if m is None else jnp.logical_and(m, mm)
        return m

    def _col_mask(kw):
        # valid iff (f mod W) + kw - P in [0, W)
        lo = max(0, P - kw)
        hi = min(W, W + P - kw)
        m = None
        if lo > 0:
            m = col >= lo
        if hi < W:
            mm = col < hi
            m = mm if m is None else jnp.logical_and(m, mm)
        return m

    rmasks = [_row_mask(kh) for kh in range(K)]
    cmasks = [_col_mask(kw) for kw in range(K)]

    def _clp(xf, w_ref, b_ref, c_in):
        # Conv(stride 1, same pad) + bias + PixelNorm + LeakyReLU, all in (C, H*W).
        acc = jnp.zeros((C_out, HW), jnp.float32)
        for kh in range(K):
            for kw in range(K):
                s = (kh - P) * W + (kw - P)        # flat shift of this tap
                if s == 0:
                    patch = xf
                else:
                    patch = pltpu.roll(xf, shift=(-s) % HW, axis=1)
                m = rmasks[kh]
                cm = cmasks[kw]
                if cm is not None:
                    m = cm if m is None else jnp.logical_and(m, cm)
                if m is not None:
                    patch = jnp.where(m, patch, 0.0)
                w_tap = w_ref[kh, kw]              # (C_out, c_in)
                if c_in > 8:
                    # MXU path (production channel counts): DEFAULT precision.
                    acc = acc + jnp.dot(w_tap, patch,
                                        preferred_element_type=jnp.float32,
                                        precision=precision)
                else:
                    # VPU broadcast-FMA path: exact f32, no MXU push/pop latency.
                    for ci in range(c_in):
                        acc = acc + w_tap[:, ci:ci + 1] * patch[ci:ci + 1, :]
        y = acc + b_ref[...]                                    # (C_out, HW)
        ms = jnp.mean(y * y, axis=0, keepdims=True)             # PixelNorm over channels
        y = y * jax.lax.rsqrt(ms + EPS)
        return jnp.maximum(y, slope * y)                        # LeakyReLU (slope < 1)

    h1 = _clp(x_ref[0], w1_ref, b1_ref, C_in)                   # (C_out, HW)
    o_ref[0] = _clp(h1, w2_ref, b2_ref, C_out)


def generator_blocks(x_nchw, w1, b1, w2, b2, *, kernel_size=3, stride=1,
                     padding=1, relu=0.1, matmul_precision=None,
                     vmem_limit_bytes=None):
    """Forward pass of GeneratorBlocks.

    x_nchw: (N, C_in, H0, W0) f32; w1: (C_out, C_in, K, K); b1: (C_out,);
    w2: (C_out, C_out, K, K); b2: (C_out,).
    Returns (N, C_out, 2*H0, 2*W0) f32 in NCHW (matching PyTorch)."""
    assert stride == 1, "only stride=1 implemented (typical generator config)"
    N, C_in, H0, W0 = x_nchw.shape
    C_out = w1.shape[0]
    K, P = kernel_size, padding
    H, W = 2 * H0, 2 * W0
    assert (H + 2 * P - K) + 1 == H and (W + 2 * P - K) + 1 == W, \
        "config must preserve spatial size after the conv (e.g. k=3, p=1)"
    assert w1.shape == (C_out, C_in, K, K) and w2.shape == (C_out, C_out, K, K)

    # Nearest-neighbour x2 upsample, kept in NCHW (plain copy, no transposes);
    # the trailing reshape to (N, C, H*W) is a free bitcast.
    x_up = jnp.repeat(jnp.repeat(x_nchw.astype(jnp.float32), 2, axis=2), 2, axis=3)
    x_flat = x_up.reshape(N, C_in, H * W)

    # OIHW -> (K, K, C_out, C_in): tiny parameter permute so the kernel grabs a
    # (C_out, C_in) tap by leading-dim indexing.
    w1_t = jnp.transpose(w1, (2, 3, 0, 1)).astype(jnp.float32)
    w2_t = jnp.transpose(w2, (2, 3, 0, 1)).astype(jnp.float32)
    b1c = b1.reshape(C_out, 1).astype(jnp.float32)
    b2c = b2.reshape(C_out, 1).astype(jnp.float32)

    kernel = partial(generator_blocks_kernel, K=K, P=P, H=H, W=W,
                     C_in=C_in, C_out=C_out, slope=relu,
                     precision=matmul_precision)

    cost = pl.CostEstimate(
        flops=int(2 * N * H * W * K * K * (C_in + C_out) * C_out),
        transcendentals=int(2 * N * H * W),          # one rsqrt / pixel / CLP
        bytes_accessed=int(4 * (x_flat.size + w1_t.size + w2_t.size
                                + b1c.size + b2c.size + N * H * W * C_out)),
    )

    out_flat = pl.pallas_call(
        kernel,
        out_shape=jax.ShapeDtypeStruct((N, C_out, H * W), jnp.float32),
        grid_spec=pltpu.PrefetchScalarGridSpec(
            num_scalar_prefetch=0,
            grid=(N,),
            in_specs=[
                pl.BlockSpec((1, C_in, H * W), lambda n: (n, 0, 0)),
                pl.BlockSpec((K, K, C_out, C_in), lambda n: (0, 0, 0, 0)),
                pl.BlockSpec((C_out, 1), lambda n: (0, 0)),
                pl.BlockSpec((K, K, C_out, C_out), lambda n: (0, 0, 0, 0)),
                pl.BlockSpec((C_out, 1), lambda n: (0, 0)),
            ],
            out_specs=pl.BlockSpec((1, C_out, H * W), lambda n: (n, 0, 0)),
        ),
        compiler_params=pltpu.CompilerParams(
            dimension_semantics=("parallel",),
            vmem_limit_bytes=vmem_limit_bytes),
        cost_estimate=cost,
    )(x_flat, w1_t, b1c, w2_t, b2c)

    # Free trailing-dim split back to NCHW (no transpose, no data movement).
    return out_flat.reshape(N, C_out, H, W)


def _reference(x_nchw, w1, b1, w2, b2, *, padding=1, relu=0.1):
    """Pure-JAX reference mirroring the (reconstructed) PyTorch module."""
    def clp(x, w, b):
        y = jax.lax.conv_general_dilated(
            x, w, window_strides=(1, 1),
            padding=[(padding, padding), (padding, padding)],
            dimension_numbers=('NCHW', 'OIHW', 'NCHW'),
            precision=jax.lax.Precision.HIGHEST)
        y = y + b[None, :, None, None]
        ms = jnp.mean(y * y, axis=1, keepdims=True)             # pixel norm over channels
        y = y * jax.lax.rsqrt(ms + EPS)
        return jnp.where(y >= 0, y, relu * y)

    x = jnp.repeat(jnp.repeat(x_nchw, 2, axis=2), 2, axis=3)    # nearest upsample x2
    x = clp(x, w1, b1)
    x = clp(x, w2, b2)
    return x


if __name__ == "__main__":
    # Small deterministic config: batch=2, in_channels=4, out_channels=8,
    # spatial=8 (upsampled to 16), kernel=3, stride=1, padding=1, relu=0.1.
    N, C_IN, C_OUT, H0, W0, K = 2, 4, 8, 8, 8, 3

    key = jax.random.PRNGKey(0)
    kx, kw1, kb1, kw2, kb2 = jax.random.split(key, 5)
    x = jax.random.normal(kx, (N, C_IN, H0, W0), dtype=jnp.float32)
    w1 = 0.1 * jax.random.normal(kw1, (C_OUT, C_IN, K, K), dtype=jnp.float32)
    b1 = 0.1 * jax.random.normal(kb1, (C_OUT,), dtype=jnp.float32)
    w2 = 0.1 * jax.random.normal(kw2, (C_OUT, C_OUT, K, K), dtype=jnp.float32)
    b2 = 0.1 * jax.random.normal(kb2, (C_OUT,), dtype=jnp.float32)

    out = generator_blocks(x, w1, b1, w2, b2,
                           kernel_size=K, stride=1, padding=1, relu=0.1)
    out = jax.block_until_ready(out)

    ref = _reference(x, w1, b1, w2, b2, padding=1, relu=0.1)
    assert out.shape == (N, C_OUT, 2 * H0, 2 * W0), out.shape
    assert jnp.allclose(out, ref, atol=1e-3, rtol=1e-3), \
        float(jnp.max(jnp.abs(out - ref)))

    print("KERNEL_OK")
</pallas_src>

<mosaic_0001>
module attributes {stable_mosaic.version = 11 : i64} {
  func.func @generator_blocks_kernel(%arg0: i32, %arg1: memref<1x4x256xf32, #tpu.memory_space<vmem>>, %arg2: memref<3x3x8x4xf32, #tpu.memory_space<vmem>>, %arg3: memref<8x1xf32, #tpu.memory_space<vmem>>, %arg4: memref<3x3x8x8xf32, #tpu.memory_space<vmem>>, %arg5: memref<8x1xf32, #tpu.memory_space<vmem>>, %arg6: memref<1x8x256xf32, #tpu.memory_space<vmem>>) attributes {dimension_semantics = [#tpu.dimension_semantics<parallel>], iteration_bounds = array<i64: 2>, scalar_prefetch = 0 : i64, scratch_operands = 0 : i64, tpu.core_type = #tpu.core_type<tc>, window_params = [{transform_indices = @transform_0, window_bounds = array<i64: 1, 4, 256>}, {pipeline_mode = #tpu.pipeline_mode<synchronous>, transform_indices = @transform_1, window_bounds = array<i64: 3, 3, 8, 4>}, {pipeline_mode = #tpu.pipeline_mode<synchronous>, transform_indices = @transform_2, window_bounds = array<i64: 8, 1>}, {pipeline_mode = #tpu.pipeline_mode<synchronous>, transform_indices = @transform_3, window_bounds = array<i64: 3, 3, 8, 8>}, {pipeline_mode = #tpu.pipeline_mode<synchronous>, transform_indices = @transform_4, window_bounds = array<i64: 8, 1>}, {transform_indices = @transform_5, window_bounds = array<i64: 1, 8, 256>}]} {
    %0 = tpu.iota {dimensions = array<i32: 1>} : vector<1x256xi32>
    %c15_i32 = arith.constant 15 : i32
    %1 = vector.broadcast %c15_i32 : i32 to vector<1x256xi32>
    %2 = arith.andi %0, %1 : vector<1x256xi32>
    %c16_i32 = arith.constant 16 : i32
    %3 = vector.broadcast %c16_i32 : i32 to vector<1x256xi32>
    %4 = arith.cmpi sge, %0, %3 : vector<1x256xi32>
    %c240_i32 = arith.constant 240 : i32
    %5 = vector.broadcast %c240_i32 : i32 to vector<1x256xi32>
    %6 = arith.cmpi slt, %0, %5 : vector<1x256xi32>
    %c1_i32 = arith.constant 1 : i32
    %7 = vector.broadcast %c1_i32 : i32 to vector<1x256xi32>
    %8 = arith.cmpi sge, %2, %7 : vector<1x256xi32>
    %c15_i32_0 = arith.constant 15 : i32
    %9 = vector.broadcast %c15_i32_0 : i32 to vector<1x256xi32>
    %10 = arith.cmpi slt, %2, %9 : vector<1x256xi32>
    %c0 = arith.constant 0 : index
    %c0_1 = arith.constant 0 : index
    %c0_2 = arith.constant 0 : index
    %11 = vector.load %arg1[%c0, %c0_1, %c0_2] : memref<1x4x256xf32, #tpu.memory_space<vmem>>, vector<1x4x256xf32>
    %12 = vector.shape_cast %11 : vector<1x4x256xf32> to vector<4x256xf32>
    %cst = arith.constant 0.000000e+00 : f32
    %13 = vector.broadcast %cst : f32 to vector<8x256xf32>
    %c17_i32 = arith.constant 17 : i32
    %14 = tpu.dynamic_rotate %12 by %c17_i32 dim 1 : vector<4x256xf32>, i32 -> vector<4x256xf32>
    %15 = arith.andi %4, %8 : vector<1x256xi1>
    %cst_3 = arith.constant 0.000000e+00 : f32
    %16 = vector.shape_cast %15 : vector<1x256xi1> to vector<1x256xi1>
    %17 = vector.broadcast %16 : vector<1x256xi1> to vector<4x256xi1>
    %18 = vector.broadcast %cst_3 : f32 to vector<4x256xf32>
    %19 = arith.select %17, %14, %18 : vector<4x256xi1>, vector<4x256xf32>
    %c0_4 = arith.constant 0 : index
    %c0_5 = arith.constant 0 : index
    %c0_6 = arith.constant 0 : index
    %c0_7 = arith.constant 0 : index
    %20 = vector.load %arg2[%c0_4, %c0_5, %c0_6, %c0_7] : memref<3x3x8x4xf32, #tpu.memory_space<vmem>>, vector<1x1x8x4xf32>
    %21 = vector.shape_cast %20 : vector<1x1x8x4xf32> to vector<8x4xf32>
    %22 = vector.extract_strided_slice %21 {offsets = [0, 0], sizes = [8, 1], strides = [1, 1]} : vector<8x4xf32> to vector<8x1xf32>
    %23 = vector.extract_strided_slice %19 {offsets = [0, 0], sizes = [1, 256], strides = [1, 1]} : vector<4x256xf32> to vector<1x256xf32>
    %24 = vector.broadcast %22 : vector<8x1xf32> to vector<8x256xf32>
    %25 = vector.broadcast %23 : vector<1x256xf32> to vector<8x256xf32>
    %26 = arith.mulf %24, %25 : vector<8x256xf32>
    %27 = arith.addf %13, %26 : vector<8x256xf32>
    %28 = vector.extract_strided_slice %21 {offsets = [0, 1], sizes = [8, 1], strides = [1, 1]} : vector<8x4xf32> to vector<8x1xf32>
    %29 = vector.extract_strided_slice %19 {offsets = [1, 0], sizes = [1, 256], strides = [1, 1]} : vector<4x256xf32> to vector<1x256xf32>
    %30 = vector.broadcast %28 : vector<8x1xf32> to vector<8x256xf32>
    %31 = vector.broadcast %29 : vector<1x256xf32> to vector<8x256xf32>
    %32 = arith.mulf %30, %31 : vector<8x256xf32>
    %33 = arith.addf %27, %32 : vector<8x256xf32>
    %34 = vector.extract_strided_slice %21 {offsets = [0, 2], sizes = [8, 1], strides = [1, 1]} : vector<8x4xf32> to vector<8x1xf32>
    %35 = vector.extract_strided_slice %19 {offsets = [2, 0], sizes = [1, 256], strides = [1, 1]} : vector<4x256xf32> to vector<1x256xf32>
    %36 = vector.broadcast %34 : vector<8x1xf32> to vector<8x256xf32>
    %37 = vector.broadcast %35 : vector<1x256xf32> to vector<8x256xf32>
    %38 = arith.mulf %36, %37 : vector<8x256xf32>
    %39 = arith.addf %33, %38 : vector<8x256xf32>
    %40 = vector.extract_strided_slice %21 {offsets = [0, 3], sizes = [8, 1], strides = [1, 1]} : vector<8x4xf32> to vector<8x1xf32>
    %41 = vector.extract_strided_slice %19 {offsets = [3, 0], sizes = [1, 256], strides = [1, 1]} : vector<4x256xf32> to vector<1x256xf32>
    %42 = vector.broadcast %40 : vector<8x1xf32> to vector<8x256xf32>
    %43 = vector.broadcast %41 : vector<1x256xf32> to vector<8x256xf32>
    %44 = arith.mulf %42, %43 : vector<8x256xf32>
    %45 = arith.addf %39, %44 : vector<8x256xf32>
    %c16_i32_8 = arith.constant 16 : i32
    %46 = tpu.dynamic_rotate %12 by %c16_i32_8 dim 1 : vector<4x256xf32>, i32 -> vector<4x256xf32>
    %cst_9 = arith.constant 0.000000e+00 : f32
    %47 = vector.shape_cast %4 : vector<1x256xi1> to vector<1x256xi1>
    %48 = vector.broadcast %47 : vector<1x256xi1> to vector<4x256xi1>
    %49 = vector.broadcast %cst_9 : f32 to vector<4x256xf32>
    %50 = arith.select %48, %46, %49 : vector<4x256xi1>, vector<4x256xf32>
    %c0_10 = arith.constant 0 : index
    %c1 = arith.constant 1 : index
    %c0_11 = arith.constant 0 : index
    %c0_12 = arith.constant 0 : index
    %51 = vector.load %arg2[%c0_10, %c1, %c0_11, %c0_12] : memref<3x3x8x4xf32, #tpu.memory_space<vmem>>, vector<1x1x8x4xf32>
    %52 = vector.shape_cast %51 : vector<1x1x8x4xf32> to vector<8x4xf32>
    %53 = vector.extract_strided_slice %52 {offsets = [0, 0], sizes = [8, 1], strides = [1, 1]} : vector<8x4xf32> to vector<8x1xf32>
    %54 = vector.extract_strided_slice %50 {offsets = [0, 0], sizes = [1, 256], strides = [1, 1]} : vector<4x256xf32> to vector<1x256xf32>
    %55 = vector.broadcast %53 : vector<8x1xf32> to vector<8x256xf32>
    %56 = vector.broadcast %54 : vector<1x256xf32> to vector<8x256xf32>
    %57 = arith.mulf %55, %56 : vector<8x256xf32>
    %58 = arith.addf %45, %57 : vector<8x256xf32>
    %59 = vector.extract_strided_slice %52 {offsets = [0, 1], sizes = [8, 1], strides = [1, 1]} : vector<8x4xf32> to vector<8x1xf32>
    %60 = vector.extract_strided_slice %50 {offsets = [1, 0], sizes = [1, 256], strides = [1, 1]} : vector<4x256xf32> to vector<1x256xf32>
    %61 = vector.broadcast %59 : vector<8x1xf32> to vector<8x256xf32>
    %62 = vector.broadcast %60 : vector<1x256xf32> to vector<8x256xf32>
    %63 = arith.mulf %61, %62 : vector<8x256xf32>
    %64 = arith.addf %58, %63 : vector<8x256xf32>
    %65 = vector.extract_strided_slice %52 {offsets = [0, 2], sizes = [8, 1], strides = [1, 1]} : vector<8x4xf32> to vector<8x1xf32>
    %66 = vector.extract_strided_slice %50 {offsets = [2, 0], sizes = [1, 256], strides = [1, 1]} : vector<4x256xf32> to vector<1x256xf32>
    %67 = vector.broadcast %65 : vector<8x1xf32> to vector<8x256xf32>
    %68 = vector.broadcast %66 : vector<1x256xf32> to vector<8x256xf32>
    %69 = arith.mulf %67, %68 : vector<8x256xf32>
    %70 = arith.addf %64, %69 : vector<8x256xf32>
    %71 = vector.extract_strided_slice %52 {offsets = [0, 3], sizes = [8, 1], strides = [1, 1]} : vector<8x4xf32> to vector<8x1xf32>
    %72 = vector.extract_strided_slice %50 {offsets = [3, 0], sizes = [1, 256], strides = [1, 1]} : vector<4x256xf32> to vector<1x256xf32>
    %73 = vector.broadcast %71 : vector<8x1xf32> to vector<8x256xf32>
    %74 = vector.broadcast %72 : vector<1x256xf32> to vector<8x256xf32>
    %75 = arith.mulf %73, %74 : vector<8x256xf32>
    %76 = arith.addf %70, %75 : vector<8x256xf32>
    %c15_i32_13 = arith.constant 15 : i32
    %77 = tpu.dynamic_rotate %12 by %c15_i32_13 dim 1 : vector<4x256xf32>, i32 -> vector<4x256xf32>
    %78 = arith.andi %4, %10 : vector<1x256xi1>
    %cst_14 = arith.constant 0.000000e+00 : f32
    %79 = vector.shape_cast %78 : vector<1x256xi1> to vector<1x256xi1>
    %80 = vector.broadcast %79 : vector<1x256xi1> to vector<4x256xi1>
    %81 = vector.broadcast %cst_14 : f32 to vector<4x256xf32>
    %82 = arith.select %80, %77, %81 : vector<4x256xi1>, vector<4x256xf32>
    %c0_15 = arith.constant 0 : index
    %c2 = arith.constant 2 : index
    %c0_16 = arith.constant 0 : index
    %c0_17 = arith.constant 0 : index
    %83 = vector.load %arg2[%c0_15, %c2, %c0_16, %c0_17] : memref<3x3x8x4xf32, #tpu.memory_space<vmem>>, vector<1x1x8x4xf32>
    %84 = vector.shape_cast %83 : vector<1x1x8x4xf32> to vector<8x4xf32>
    %85 = vector.extract_strided_slice %84 {offsets = [0, 0], sizes = [8, 1], strides = [1, 1]} : vector<8x4xf32> to vector<8x1xf32>
    %86 = vector.extract_strided_slice %82 {offsets = [0, 0], sizes = [1, 256], strides = [1, 1]} : vector<4x256xf32> to vector<1x256xf32>
    %87 = vector.broadcast %85 : vector<8x1xf32> to vector<8x256xf32>
    %88 = vector.broadcast %86 : vector<1x256xf32> to vector<8x256xf32>
    %89 = arith.mulf %87, %88 : vector<8x256xf32>
    %90 = arith.addf %76, %89 : vector<8x256xf32>
    %91 = vector.extract_strided_slice %84 {offsets = [0, 1], sizes = [8, 1], strides = [1, 1]} : vector<8x4xf32> to vector<8x1xf32>
    %92 = vector.extract_strided_slice %82 {offsets = [1, 0], sizes = [1, 256], strides = [1, 1]} : vector<4x256xf32> to vector<1x256xf32>
    %93 = vector.broadcast %91 : vector<8x1xf32> to vector<8x256xf32>
    %94 = vector.broadcast %92 : vector<1x256xf32> to vector<8x256xf32>
    %95 = arith.mulf %93, %94 : vector<8x256xf32>
    %96 = arith.addf %90, %95 : vector<8x256xf32>
    %97 = vector.extract_strided_slice %84 {offsets = [0, 2], sizes = [8, 1], strides = [1, 1]} : vector<8x4xf32> to vector<8x1xf32>
    %98 = vector.extract_strided_slice %82 {offsets = [2, 0], sizes = [1, 256], strides = [1, 1]} : vector<4x256xf32> to vector<1x256xf32>
    %99 = vector.broadcast %97 : vector<8x1xf32> to vector<8x256xf32>
    %100 = vector.broadcast %98 : vector<1x256xf32> to vector<8x256xf32>
    %101 = arith.mulf %99, %100 : vector<8x256xf32>
    %102 = arith.addf %96, %101 : vector<8x256xf32>
    %103 = vector.extract_strided_slice %84 {offsets = [0, 3], sizes = [8, 1], strides = [1, 1]} : vector<8x4xf32> to vector<8x1xf32>
    %104 = vector.extract_strided_slice %82 {offsets = [3, 0], sizes = [1, 256], strides = [1, 1]} : vector<4x256xf32> to vector<1x256xf32>
    %105 = vector.broadcast %103 : vector<8x1xf32> to vector<8x256xf32>
    %106 = vector.broadcast %104 : vector<1x256xf32> to vector<8x256xf32>
    %107 = arith.mulf %105, %106 : vector<8x256xf32>
    %108 = arith.addf %102, %107 : vector<8x256xf32>
    %c1_i32_18 = arith.constant 1 : i32
    %109 = tpu.dynamic_rotate %12 by %c1_i32_18 dim 1 : vector<4x256xf32>, i32 -> vector<4x256xf32>
    %cst_19 = arith.constant 0.000000e+00 : f32
    %110 = vector.shape_cast %8 : vector<1x256xi1> to vector<1x256xi1>
    %111 = vector.broadcast %110 : vector<1x256xi1> to vector<4x256xi1>
    %112 = vector.broadcast %cst_19 : f32 to vector<4x256xf32>
    %113 = arith.select %111, %109, %112 : vector<4x256xi1>, vector<4x256xf32>
    %c1_20 = arith.constant 1 : index
    %c0_21 = arith.constant 0 : index
    %c0_22 = arith.constant 0 : index
    %c0_23 = arith.constant 0 : index
    %114 = vector.load %arg2[%c1_20, %c0_21, %c0_22, %c0_23] : memref<3x3x8x4xf32, #tpu.memory_space<vmem>>, vector<1x1x8x4xf32>
    %115 = vector.shape_cast %114 : vector<1x1x8x4xf32> to vector<8x4xf32>
    %116 = vector.extract_strided_slice %115 {offsets = [0, 0], sizes = [8, 1], strides = [1, 1]} : vector<8x4xf32> to vector<8x1xf32>
    %117 = vector.extract_strided_slice %113 {offsets = [0, 0], sizes = [1, 256], strides = [1, 1]} : vector<4x256xf32> to vector<1x256xf32>
    %118 = vector.broadcast %116 : vector<8x1xf32> to vector<8x256xf32>
    %119 = vector.broadcast %117 : vector<1x256xf32> to vector<8x256xf32>
    %120 = arith.mulf %118, %119 : vector<8x256xf32>
    %121 = arith.addf %108, %120 : vector<8x256xf32>
    %122 = vector.extract_strided_slice %115 {offsets = [0, 1], sizes = [8, 1], strides = [1, 1]} : vector<8x4xf32> to vector<8x1xf32>
    %123 = vector.extract_strided_slice %113 {offsets = [1, 0], sizes = [1, 256], strides = [1, 1]} : vector<4x256xf32> to vector<1x256xf32>
    %124 = vector.broadcast %122 : vector<8x1xf32> to vector<8x256xf32>
    %125 = vector.broadcast %123 : vector<1x256xf32> to vector<8x256xf32>
    %126 = arith.mulf %124, %125 : vector<8x256xf32>
    %127 = arith.addf %121, %126 : vector<8x256xf32>
    %128 = vector.extract_strided_slice %115 {offsets = [0, 2], sizes = [8, 1], strides = [1, 1]} : vector<8x4xf32> to vector<8x1xf32>
    %129 = vector.extract_strided_slice %113 {offsets = [2, 0], sizes = [1, 256], strides = [1, 1]} : vector<4x256xf32> to vector<1x256xf32>
    %130 = vector.broadcast %128 : vector<8x1xf32> to vector<8x256xf32>
    %131 = vector.broadcast %129 : vector<1x256xf32> to vector<8x256xf32>
    %132 = arith.mulf %130, %131 : vector<8x256xf32>
    %133 = arith.addf %127, %132 : vector<8x256xf32>
    %134 = vector.extract_strided_slice %115 {offsets = [0, 3], sizes = [8, 1], strides = [1, 1]} : vector<8x4xf32> to vector<8x1xf32>
    %135 = vector.extract_strided_slice %113 {offsets = [3, 0], sizes = [1, 256], strides = [1, 1]} : vector<4x256xf32> to vector<1x256xf32>
    %136 = vector.broadcast %134 : vector<8x1xf32> to vector<8x256xf32>
    %137 = vector.broadcast %135 : vector<1x256xf32> to vector<8x256xf32>
    %138 = arith.mulf %136, %137 : vector<8x256xf32>
    %139 = arith.addf %133, %138 : vector<8x256xf32>
    %c1_24 = arith.constant 1 : index
    %c1_25 = arith.constant 1 : index
    %c0_26 = arith.constant 0 : index
    %c0_27 = arith.constant 0 : index
    %140 = vector.load %arg2[%c1_24, %c1_25, %c0_26, %c0_27] : memref<3x3x8x4xf32, #tpu.memory_space<vmem>>, vector<1x1x8x4xf32>
    %141 = vector.shape_cast %140 : vector<1x1x8x4xf32> to vector<8x4xf32>
    %142 = vector.extract_strided_slice %141 {offsets = [0, 0], sizes = [8, 1], strides = [1, 1]} : vector<8x4xf32> to vector<8x1xf32>
    %143 = vector.extract_strided_slice %12 {offsets = [0, 0], sizes = [1, 256], strides = [1, 1]} : vector<4x256xf32> to vector<1x256xf32>
    %144 = vector.broadcast %142 : vector<8x1xf32> to vector<8x256xf32>
    %145 = vector.broadcast %143 : vector<1x256xf32> to vector<8x256xf32>
    %146 = arith.mulf %144, %145 : vector<8x256xf32>
    %147 = arith.addf %139, %146 : vector<8x256xf32>
    %148 = vector.extract_strided_slice %141 {offsets = [0, 1], sizes = [8, 1], strides = [1, 1]} : vector<8x4xf32> to vector<8x1xf32>
    %149 = vector.extract_strided_slice %12 {offsets = [1, 0], sizes = [1, 256], strides = [1, 1]} : vector<4x256xf32> to vector<1x256xf32>
    %150 = vector.broadcast %148 : vector<8x1xf32> to vector<8x256xf32>
    %151 = vector.broadcast %149 : vector<1x256xf32> to vector<8x256xf32>
    %152 = arith.mulf %150, %151 : vector<8x256xf32>
    %153 = arith.addf %147, %152 : vector<8x256xf32>
    %154 = vector.extract_strided_slice %141 {offsets = [0, 2], sizes = [8, 1], strides = [1, 1]} : vector<8x4xf32> to vector<8x1xf32>
    %155 = vector.extract_strided_slice %12 {offsets = [2, 0], sizes = [1, 256], strides = [1, 1]} : vector<4x256xf32> to vector<1x256xf32>
    %156 = vector.broadcast %154 : vector<8x1xf32> to vector<8x256xf32>
    %157 = vector.broadcast %155 : vector<1x256xf32> to vector<8x256xf32>
    %158 = arith.mulf %156, %157 : vector<8x256xf32>
    %159 = arith.addf %153, %158 : vector<8x256xf32>
    %160 = vector.extract_strided_slice %141 {offsets = [0, 3], sizes = [8, 1], strides = [1, 1]} : vector<8x4xf32> to vector<8x1xf32>
    %161 = vector.extract_strided_slice %12 {offsets = [3, 0], sizes = [1, 256], strides = [1, 1]} : vector<4x256xf32> to vector<1x256xf32>
    %162 = vector.broadcast %160 : vector<8x1xf32> to vector<8x256xf32>
    %163 = vector.broadcast %161 : vector<1x256xf32> to vector<8x256xf32>
    %164 = arith.mulf %162, %163 : vector<8x256xf32>
    %165 = arith.addf %159, %164 : vector<8x256xf32>
    %c255_i32 = arith.constant 255 : i32
    %166 = tpu.dynamic_rotate %12 by %c255_i32 dim 1 : vector<4x256xf32>, i32 -> vector<4x256xf32>
    %cst_28 = arith.constant 0.000000e+00 : f32
    %167 = vector.shape_cast %10 : vector<1x256xi1> to vector<1x256xi1>
    %168 = vector.broadcast %167 : vector<1x256xi1> to vector<4x256xi1>
    %169 = vector.broadcast %cst_28 : f32 to vector<4x256xf32>
    %170 = arith.select %168, %166, %169 : vector<4x256xi1>, vector<4x256xf32>
    %c1_29 = arith.constant 1 : index
    %c2_30 = arith.constant 2 : index
    %c0_31 = arith.constant 0 : index
    %c0_32 = arith.constant 0 : index
    %171 = vector.load %arg2[%c1_29, %c2_30, %c0_31, %c0_32] : memref<3x3x8x4xf32, #tpu.memory_space<vmem>>, vector<1x1x8x4xf32>
    %172 = vector.shape_cast %171 : vector<1x1x8x4xf32> to vector<8x4xf32>
    %173 = vector.extract_strided_slice %172 {offsets = [0, 0], sizes = [8, 1], strides = [1, 1]} : vector<8x4xf32> to vector<8x1xf32>
    %174 = vector.extract_strided_slice %170 {offsets = [0, 0], sizes = [1, 256], strides = [1, 1]} : vector<4x256xf32> to vector<1x256xf32>
    %175 = vector.broadcast %173 : vector<8x1xf32> to vector<8x256xf32>
    %176 = vector.broadcast %174 : vector<1x256xf32> to vector<8x256xf32>
    %177 = arith.mulf %175, %176 : vector<8x256xf32>
    %178 = arith.addf %165, %177 : vector<8x256xf32>
    %179 = vector.extract_strided_slice %172 {offsets = [0, 1], sizes = [8, 1], strides = [1, 1]} : vector<8x4xf32> to vector<8x1xf32>
    %180 = vector.extract_strided_slice %170 {offsets = [1, 0], sizes = [1, 256], strides = [1, 1]} : vector<4x256xf32> to vector<1x256xf32>
    %181 = vector.broadcast %179 : vector<8x1xf32> to vector<8x256xf32>
    %182 = vector.broadcast %180 : vector<1x256xf32> to vector<8x256xf32>
    %183 = arith.mulf %181, %182 : vector<8x256xf32>
    %184 = arith.addf %178, %183 : vector<8x256xf32>
    %185 = vector.extract_strided_slice %172 {offsets = [0, 2], sizes = [8, 1], strides = [1, 1]} : vector<8x4xf32> to vector<8x1xf32>
    %186 = vector.extract_strided_slice %170 {offsets = [2, 0], sizes = [1, 256], strides = [1, 1]} : vector<4x256xf32> to vector<1x256xf32>
    %187 = vector.broadcast %185 : vector<8x1xf32> to vector<8x256xf32>
    %188 = vector.broadcast %186 : vector<1x256xf32> to vector<8x256xf32>
    %189 = arith.mulf %187, %188 : vector<8x256xf32>
    %190 = arith.addf %184, %189 : vector<8x256xf32>
    %191 = vector.extract_strided_slice %172 {offsets = [0, 3], sizes = [8, 1], strides = [1, 1]} : vector<8x4xf32> to vector<8x1xf32>
    %192 = vector.extract_strided_slice %170 {offsets = [3, 0], sizes = [1, 256], strides = [1, 1]} : vector<4x256xf32> to vector<1x256xf32>
    %193 = vector.broadcast %191 : vector<8x1xf32> to vector<8x256xf32>
    %194 = vector.broadcast %192 : vector<1x256xf32> to vector<8x256xf32>
    %195 = arith.mulf %193, %194 : vector<8x256xf32>
    %196 = arith.addf %190, %195 : vector<8x256xf32>
    %c241_i32 = arith.constant 241 : i32
    %197 = tpu.dynamic_rotate %12 by %c241_i32 dim 1 : vector<4x256xf32>, i32 -> vector<4x256xf32>
    %198 = arith.andi %6, %8 : vector<1x256xi1>
    %cst_33 = arith.constant 0.000000e+00 : f32
    %199 = vector.shape_cast %198 : vector<1x256xi1> to vector<1x256xi1>
    %200 = vector.broadcast %199 : vector<1x256xi1> to vector<4x256xi1>
    %201 = vector.broadcast %cst_33 : f32 to vector<4x256xf32>
    %202 = arith.select %200, %197, %201 : vector<4x256xi1>, vector<4x256xf32>
    %c2_34 = arith.constant 2 : index
    %c0_35 = arith.constant 0 : index
    %c0_36 = arith.constant 0 : index
    %c0_37 = arith.constant 0 : index
    %203 = vector.load %arg2[%c2_34, %c0_35, %c0_36, %c0_37] : memref<3x3x8x4xf32, #tpu.memory_space<vmem>>, vector<1x1x8x4xf32>
    %204 = vector.shape_cast %203 : vector<1x1x8x4xf32> to vector<8x4xf32>
    %205 = vector.extract_strided_slice %204 {offsets = [0, 0], sizes = [8, 1], strides = [1, 1]} : vector<8x4xf32> to vector<8x1xf32>
    %206 = vector.extract_strided_slice %202 {offsets = [0, 0], sizes = [1, 256], strides = [1, 1]} : vector<4x256xf32> to vector<1x256xf32>
    %207 = vector.broadcast %205 : vector<8x1xf32> to vector<8x256xf32>
    %208 = vector.broadcast %206 : vector<1x256xf32> to vector<8x256xf32>
    %209 = arith.mulf %207, %208 : vector<8x256xf32>
    %210 = arith.addf %196, %209 : vector<8x256xf32>
    %211 = vector.extract_strided_slice %204 {offsets = [0, 1], sizes = [8, 1], strides = [1, 1]} : vector<8x4xf32> to vector<8x1xf32>
    %212 = vector.extract_strided_slice %202 {offsets = [1, 0], sizes = [1, 256], strides = [1, 1]} : vector<4x256xf32> to vector<1x256xf32>
    %213 = vector.broadcast %211 : vector<8x1xf32> to vector<8x256xf32>
    %214 = vector.broadcast %212 : vector<1x256xf32> to vector<8x256xf32>
    %215 = arith.mulf %213, %214 : vector<8x256xf32>
    %216 = arith.addf %210, %215 : vector<8x256xf32>
    %217 = vector.extract_strided_slice %204 {offsets = [0, 2], sizes = [8, 1], strides = [1, 1]} : vector<8x4xf32> to vector<8x1xf32>
    %218 = vector.extract_strided_slice %202 {offsets = [2, 0], sizes = [1, 256], strides = [1, 1]} : vector<4x256xf32> to vector<1x256xf32>
    %219 = vector.broadcast %217 : vector<8x1xf32> to vector<8x256xf32>
    %220 = vector.broadcast %218 : vector<1x256xf32> to vector<8x256xf32>
    %221 = arith.mulf %219, %220 : vector<8x256xf32>
    %222 = arith.addf %216, %221 : vector<8x256xf32>
    %223 = vector.extract_strided_slice %204 {offsets = [0, 3], sizes = [8, 1], strides = [1, 1]} : vector<8x4xf32> to vector<8x1xf32>
    %224 = vector.extract_strided_slice %202 {offsets = [3, 0], sizes = [1, 256], strides = [1, 1]} : vector<4x256xf32> to vector<1x256xf32>
    %225 = vector.broadcast %223 : vector<8x1xf32> to vector<8x256xf32>
    %226 = vector.broadcast %224 : vector<1x256xf32> to vector<8x256xf32>
    %227 = arith.mulf %225, %226 : vector<8x256xf32>
    %228 = arith.addf %222, %227 : vector<8x256xf32>
    %c240_i32_38 = arith.constant 240 : i32
    %229 = tpu.dynamic_rotate %12 by %c240_i32_38 dim 1 : vector<4x256xf32>, i32 -> vector<4x256xf32>
    %cst_39 = arith.constant 0.000000e+00 : f32
    %230 = vector.shape_cast %6 : vector<1x256xi1> to vector<1x256xi1>
    %231 = vector.broadcast %230 : vector<1x256xi1> to vector<4x256xi1>
    %232 = vector.broadcast %cst_39 : f32 to vector<4x256xf32>
    %233 = arith.select %231, %229, %232 : vector<4x256xi1>, vector<4x256xf32>
    %c2_40 = arith.constant 2 : index
    %c1_41 = arith.constant 1 : index
    %c0_42 = arith.constant 0 : index
    %c0_43 = arith.constant 0 : index
    %234 = vector.load %arg2[%c2_40, %c1_41, %c0_42, %c0_43] : memref<3x3x8x4xf32, #tpu.memory_space<vmem>>, vector<1x1x8x4xf32>
    %235 = vector.shape_cast %234 : vector<1x1x8x4xf32> to vector<8x4xf32>
    %236 = vector.extract_strided_slice %235 {offsets = [0, 0], sizes = [8, 1], strides = [1, 1]} : vector<8x4xf32> to vector<8x1xf32>
    %237 = vector.extract_strided_slice %233 {offsets = [0, 0], sizes = [1, 256], strides = [1, 1]} : vector<4x256xf32> to vector<1x256xf32>
    %238 = vector.broadcast %236 : vector<8x1xf32> to vector<8x256xf32>
    %239 = vector.broadcast %237 : vector<1x256xf32> to vector<8x256xf32>
    %240 = arith.mulf %238, %239 : vector<8x256xf32>
    %241 = arith.addf %228, %240 : vector<8x256xf32>
    %242 = vector.extract_strided_slice %235 {offsets = [0, 1], sizes = [8, 1], strides = [1, 1]} : vector<8x4xf32> to vector<8x1xf32>
    %243 = vector.extract_strided_slice %233 {offsets = [1, 0], sizes = [1, 256], strides = [1, 1]} : vector<4x256xf32> to vector<1x256xf32>
    %244 = vector.broadcast %242 : vector<8x1xf32> to vector<8x256xf32>
    %245 = vector.broadcast %243 : vector<1x256xf32> to vector<8x256xf32>
    %246 = arith.mulf %244, %245 : vector<8x256xf32>
    %247 = arith.addf %241, %246 : vector<8x256xf32>
    %248 = vector.extract_strided_slice %235 {offsets = [0, 2], sizes = [8, 1], strides = [1, 1]} : vector<8x4xf32> to vector<8x1xf32>
    %249 = vector.extract_strided_slice %233 {offsets = [2, 0], sizes = [1, 256], strides = [1, 1]} : vector<4x256xf32> to vector<1x256xf32>
    %250 = vector.broadcast %248 : vector<8x1xf32> to vector<8x256xf32>
    %251 = vector.broadcast %249 : vector<1x256xf32> to vector<8x256xf32>
    %252 = arith.mulf %250, %251 : vector<8x256xf32>
    %253 = arith.addf %247, %252 : vector<8x256xf32>
    %254 = vector.extract_strided_slice %235 {offsets = [0, 3], sizes = [8, 1], strides = [1, 1]} : vector<8x4xf32> to vector<8x1xf32>
    %255 = vector.extract_strided_slice %233 {offsets = [3, 0], sizes = [1, 256], strides = [1, 1]} : vector<4x256xf32> to vector<1x256xf32>
    %256 = vector.broadcast %254 : vector<8x1xf32> to vector<8x256xf32>
    %257 = vector.broadcast %255 : vector<1x256xf32> to vector<8x256xf32>
    %258 = arith.mulf %256, %257 : vector<8x256xf32>
    %259 = arith.addf %253, %258 : vector<8x256xf32>
    %c239_i32 = arith.constant 239 : i32
    %260 = tpu.dynamic_rotate %12 by %c239_i32 dim 1 : vector<4x256xf32>, i32 -> vector<4x256xf32>
    %261 = arith.andi %6, %10 : vector<1x256xi1>
    %cst_44 = arith.constant 0.000000e+00 : f32
    %262 = vector.shape_cast %261 : vector<1x256xi1> to vector<1x256xi1>
    %263 = vector.broadcast %262 : vector<1x256xi1> to vector<4x256xi1>
    %264 = vector.broadcast %cst_44 : f32 to vector<4x256xf32>
    %265 = arith.select %263, %260, %264 : vector<4x256xi1>, vector<4x256xf32>
    %c2_45 = arith.constant 2 : index
    %c2_46 = arith.constant 2 : index
    %c0_47 = arith.constant 0 : index
    %c0_48 = arith.constant 0 : index
    %266 = vector.load %arg2[%c2_45, %c2_46, %c0_47, %c0_48] : memref<3x3x8x4xf32, #tpu.memory_space<vmem>>, vector<1x1x8x4xf32>
    %267 = vector.shape_cast %266 : vector<1x1x8x4xf32> to vector<8x4xf32>
    %268 = vector.extract_strided_slice %267 {offsets = [0, 0], sizes = [8, 1], strides = [1, 1]} : vector<8x4xf32> to vector<8x1xf32>
    %269 = vector.extract_strided_slice %265 {offsets = [0, 0], sizes = [1, 256], strides = [1, 1]} : vector<4x256xf32> to vector<1x256xf32>
    %270 = vector.broadcast %268 : vector<8x1xf32> to vector<8x256xf32>
    %271 = vector.broadcast %269 : vector<1x256xf32> to vector<8x256xf32>
    %272 = arith.mulf %270, %271 : vector<8x256xf32>
    %273 = arith.addf %259, %272 : vector<8x256xf32>
    %274 = vector.extract_strided_slice %267 {offsets = [0, 1], sizes = [8, 1], strides = [1, 1]} : vector<8x4xf32> to vector<8x1xf32>
    %275 = vector.extract_strided_slice %265 {offsets = [1, 0], sizes = [1, 256], strides = [1, 1]} : vector<4x256xf32> to vector<1x256xf32>
    %276 = vector.broadcast %274 : vector<8x1xf32> to vector<8x256xf32>
    %277 = vector.broadcast %275 : vector<1x256xf32> to vector<8x256xf32>
    %278 = arith.mulf %276, %277 : vector<8x256xf32>
    %279 = arith.addf %273, %278 : vector<8x256xf32>
    %280 = vector.extract_strided_slice %267 {offsets = [0, 2], sizes = [8, 1], strides = [1, 1]} : vector<8x4xf32> to vector<8x1xf32>
    %281 = vector.extract_strided_slice %265 {offsets = [2, 0], sizes = [1, 256], strides = [1, 1]} : vector<4x256xf32> to vector<1x256xf32>
    %282 = vector.broadcast %280 : vector<8x1xf32> to vector<8x256xf32>
    %283 = vector.broadcast %281 : vector<1x256xf32> to vector<8x256xf32>
    %284 = arith.mulf %282, %283 : vector<8x256xf32>
    %285 = arith.addf %279, %284 : vector<8x256xf32>
    %286 = vector.extract_strided_slice %267 {offsets = [0, 3], sizes = [8, 1], strides = [1, 1]} : vector<8x4xf32> to vector<8x1xf32>
    %287 = vector.extract_strided_slice %265 {offsets = [3, 0], sizes = [1, 256], strides = [1, 1]} : vector<4x256xf32> to vector<1x256xf32>
    %288 = vector.broadcast %286 : vector<8x1xf32> to vector<8x256xf32>
    %289 = vector.broadcast %287 : vector<1x256xf32> to vector<8x256xf32>
    %290 = arith.mulf %288, %289 : vector<8x256xf32>
    %291 = arith.addf %285, %290 : vector<8x256xf32>
    %c0_49 = arith.constant 0 : index
    %c0_50 = arith.constant 0 : index
    %292 = vector.load %arg3[%c0_49, %c0_50] : memref<8x1xf32, #tpu.memory_space<vmem>>, vector<8x1xf32>
    %293 = vector.broadcast %292 : vector<8x1xf32> to vector<8x256xf32>
    %294 = arith.addf %291, %293 : vector<8x256xf32>
    %295 = arith.mulf %294, %294 : vector<8x256xf32>
    %cst_51 = arith.constant dense<0.000000e+00> : vector<256xf32>
    %296 = vector.multi_reduction <add>, %295, %cst_51 [0] : vector<8x256xf32> to vector<256xf32>
    %297 = vector.shape_cast %296 : vector<256xf32> to vector<1x256xf32>
    %cst_52 = arith.constant 8.000000e+00 : f32
    %298 = vector.broadcast %cst_52 : f32 to vector<1x256xf32>
    %299 = arith.divf %297, %298 : vector<1x256xf32>
    %cst_53 = arith.constant 9.99999993E-9 : f32
    %300 = vector.broadcast %cst_53 : f32 to vector<1x256xf32>
    %301 = arith.addf %299, %300 : vector<1x256xf32>
    %302 = math.rsqrt %301 : vector<1x256xf32>
    %303 = vector.broadcast %302 : vector<1x256xf32> to vector<8x256xf32>
    %304 = arith.mulf %294, %303 : vector<8x256xf32>
    %cst_54 = arith.constant 1.000000e-01 : f32
    %305 = vector.broadcast %cst_54 : f32 to vector<8x256xf32>
    %306 = arith.mulf %305, %304 : vector<8x256xf32>
    %307 = arith.maximumf %304, %306 : vector<8x256xf32>
    %cst_55 = arith.constant 0.000000e+00 : f32
    %308 = vector.broadcast %cst_55 : f32 to vector<8x256xf32>
    %c17_i32_56 = arith.constant 17 : i32
    %309 = tpu.dynamic_rotate %307 by %c17_i32_56 dim 1 : vector<8x256xf32>, i32 -> vector<8x256xf32>
    %310 = arith.andi %4, %8 : vector<1x256xi1>
    %cst_57 = arith.constant 0.000000e+00 : f32
    %311 = vector.shape_cast %310 : vector<1x256xi1> to vector<1x256xi1>
    %312 = vector.broadcast %311 : vector<1x256xi1> to vector<8x256xi1>
    %313 = vector.broadcast %cst_57 : f32 to vector<8x256xf32>
    %314 = arith.select %312, %309, %313 : vector<8x256xi1>, vector<8x256xf32>
    %c0_58 = arith.constant 0 : index
    %c0_59 = arith.constant 0 : index
    %c0_60 = arith.constant 0 : index
    %c0_61 = arith.constant 0 : index
    %315 = vector.load %arg4[%c0_58, %c0_59, %c0_60, %c0_61] : memref<3x3x8x8xf32, #tpu.memory_space<vmem>>, vector<1x1x8x8xf32>
    %316 = vector.shape_cast %315 : vector<1x1x8x8xf32> to vector<8x8xf32>
    %317 = vector.extract_strided_slice %316 {offsets = [0, 0], sizes = [8, 1], strides = [1, 1]} : vector<8x8xf32> to vector<8x1xf32>
    %318 = vector.extract_strided_slice %314 {offsets = [0, 0], sizes = [1, 256], strides = [1, 1]} : vector<8x256xf32> to vector<1x256xf32>
    %319 = vector.broadcast %317 : vector<8x1xf32> to vector<8x256xf32>
    %320 = vector.broadcast %318 : vector<1x256xf32> to vector<8x256xf32>
    %321 = arith.mulf %319, %320 : vector<8x256xf32>
    %322 = arith.addf %308, %321 : vector<8x256xf32>
    %323 = vector.extract_strided_slice %316 {offsets = [0, 1], sizes = [8, 1], strides = [1, 1]} : vector<8x8xf32> to vector<8x1xf32>
    %324 = vector.extract_strided_slice %314 {offsets = [1, 0], sizes = [1, 256], strides = [1, 1]} : vector<8x256xf32> to vector<1x256xf32>
    %325 = vector.broadcast %323 : vector<8x1xf32> to vector<8x256xf32>
    %326 = vector.broadcast %324 : vector<1x256xf32> to vector<8x256xf32>
    %327 = arith.mulf %325, %326 : vector<8x256xf32>
    %328 = arith.addf %322, %327 : vector<8x256xf32>
    %329 = vector.extract_strided_slice %316 {offsets = [0, 2], sizes = [8, 1], strides = [1, 1]} : vector<8x8xf32> to vector<8x1xf32>
    %330 = vector.extract_strided_slice %314 {offsets = [2, 0], sizes = [1, 256], strides = [1, 1]} : vector<8x256xf32> to vector<1x256xf32>
    %331 = vector.broadcast %329 : vector<8x1xf32> to vector<8x256xf32>
    %332 = vector.broadcast %330 : vector<1x256xf32> to vector<8x256xf32>
    %333 = arith.mulf %331, %332 : vector<8x256xf32>
    %334 = arith.addf %328, %333 : vector<8x256xf32>
    %335 = vector.extract_strided_slice %316 {offsets = [0, 3], sizes = [8, 1], strides = [1, 1]} : vector<8x8xf32> to vector<8x1xf32>
    %336 = vector.extract_strided_slice %314 {offsets = [3, 0], sizes = [1, 256], strides = [1, 1]} : vector<8x256xf32> to vector<1x256xf32>
    %337 = vector.broadcast %335 : vector<8x1xf32> to vector<8x256xf32>
    %338 = vector.broadcast %336 : vector<1x256xf32> to vector<8x256xf32>
    %339 = arith.mulf %337, %338 : vector<8x256xf32>
    %340 = arith.addf %334, %339 : vector<8x256xf32>
    %341 = vector.extract_strided_slice %316 {offsets = [0, 4], sizes = [8, 1], strides = [1, 1]} : vector<8x8xf32> to vector<8x1xf32>
    %342 = vector.extract_strided_slice %314 {offsets = [4, 0], sizes = [1, 256], strides = [1, 1]} : vector<8x256xf32> to vector<1x256xf32>
    %343 = vector.broadcast %341 : vector<8x1xf32> to vector<8x256xf32>
    %344 = vector.broadcast %342 : vector<1x256xf32> to vector<8x256xf32>
    %345 = arith.mulf %343, %344 : vector<8x256xf32>
    %346 = arith.addf %340, %345 : vector<8x256xf32>
    %347 = vector.extract_strided_slice %316 {offsets = [0, 5], sizes = [8, 1], strides = [1, 1]} : vector<8x8xf32> to vector<8x1xf32>
    %348 = vector.extract_strided_slice %314 {offsets = [5, 0], sizes = [1, 256], strides = [1, 1]} : vector<8x256xf32> to vector<1x256xf32>
    %349 = vector.broadcast %347 : vector<8x1xf32> to vector<8x256xf32>
    %350 = vector.broadcast %348 : vector<1x256xf32> to vector<8x256xf32>
    %351 = arith.mulf %349, %350 : vector<8x256xf32>
    %352 = arith.addf %346, %351 : vector<8x256xf32>
    %353 = vector.extract_strided_slice %316 {offsets = [0, 6], sizes = [8, 1], strides = [1, 1]} : vector<8x8xf32> to vector<8x1xf32>
    %354 = vector.extract_strided_slice %314 {offsets = [6, 0], sizes = [1, 256], strides = [1, 1]} : vector<8x256xf32> to vector<1x256xf32>
    %355 = vector.broadcast %353 : vector<8x1xf32> to vector<8x256xf32>
    %356 = vector.broadcast %354 : vector<1x256xf32> to vector<8x256xf32>
    %357 = arith.mulf %355, %356 : vector<8x256xf32>
    %358 = arith.addf %352, %357 : vector<8x256xf32>
    %359 = vector.extract_strided_slice %316 {offsets = [0, 7], sizes = [8, 1], strides = [1, 1]} : vector<8x8xf32> to vector<8x1xf32>
    %360 = vector.extract_strided_slice %314 {offsets = [7, 0], sizes = [1, 256], strides = [1, 1]} : vector<8x256xf32> to vector<1x256xf32>
    %361 = vector.broadcast %359 : vector<8x1xf32> to vector<8x256xf32>
    %362 = vector.broadcast %360 : vector<1x256xf32> to vector<8x256xf32>
    %363 = arith.mulf %361, %362 : vector<8x256xf32>
    %364 = arith.addf %358, %363 : vector<8x256xf32>
    %c16_i32_62 = arith.constant 16 : i32
    %365 = tpu.dynamic_rotate %307 by %c16_i32_62 dim 1 : vector<8x256xf32>, i32 -> vector<8x256xf32>
    %cst_63 = arith.constant 0.000000e+00 : f32
    %366 = vector.shape_cast %4 : vector<1x256xi1> to vector<1x256xi1>
    %367 = vector.broadcast %366 : vector<1x256xi1> to vector<8x256xi1>
    %368 = vector.broadcast %cst_63 : f32 to vector<8x256xf32>
    %369 = arith.select %367, %365, %368 : vector<8x256xi1>, vector<8x256xf32>
    %c0_64 = arith.constant 0 : index
    %c1_65 = arith.constant 1 : index
    %c0_66 = arith.constant 0 : index
    %c0_67 = arith.constant 0 : index
    %370 = vector.load %arg4[%c0_64, %c1_65, %c0_66, %c0_67] : memref<3x3x8x8xf32, #tpu.memory_space<vmem>>, vector<1x1x8x8xf32>
    %371 = vector.shape_cast %370 : vector<1x1x8x8xf32> to vector<8x8xf32>
    %372 = vector.extract_strided_slice %371 {offsets = [0, 0], sizes = [8, 1], strides = [1, 1]} : vector<8x8xf32> to vector<8x1xf32>
    %373 = vector.extract_strided_slice %369 {offsets = [0, 0], sizes = [1, 256], strides = [1, 1]} : vector<8x256xf32> to vector<1x256xf32>
    %374 = vector.broadcast %372 : vector<8x1xf32> to vector<8x256xf32>
    %375 = vector.broadcast %373 : vector<1x256xf32> to vector<8x256xf32>
    %376 = arith.mulf %374, %375 : vector<8x256xf32>
    %377 = arith.addf %364, %376 : vector<8x256xf32>
    %378 = vector.extract_strided_slice %371 {offsets = [0, 1], sizes = [8, 1], strides = [1, 1]} : vector<8x8xf32> to vector<8x1xf32>
    %379 = vector.extract_strided_slice %369 {offsets = [1, 0], sizes = [1, 256], strides = [1, 1]} : vector<8x256xf32> to vector<1x256xf32>
    %380 = vector.broadcast %378 : vector<8x1xf32> to vector<8x256xf32>
    %381 = vector.broadcast %379 : vector<1x256xf32> to vector<8x256xf32>
    %382 = arith.mulf %380, %381 : vector<8x256xf32>
    %383 = arith.addf %377, %382 : vector<8x256xf32>
    %384 = vector.extract_strided_slice %371 {offsets = [0, 2], sizes = [8, 1], strides = [1, 1]} : vector<8x8xf32> to vector<8x1xf32>
    %385 = vector.extract_strided_slice %369 {offsets = [2, 0], sizes = [1, 256], strides = [1, 1]} : vector<8x256xf32> to vector<1x256xf32>
    %386 = vector.broadcast %384 : vector<8x1xf32> to vector<8x256xf32>
    %387 = vector.broadcast %385 : vector<1x256xf32> to vector<8x256xf32>
    %388 = arith.mulf %386, %387 : vector<8x256xf32>
    %389 = arith.addf %383, %388 : vector<8x256xf32>
    %390 = vector.extract_strided_slice %371 {offsets = [0, 3], sizes = [8, 1], strides = [1, 1]} : vector<8x8xf32> to vector<8x1xf32>
    %391 = vector.extract_strided_slice %369 {offsets = [3, 0], sizes = [1, 256], strides = [1, 1]} : vector<8x256xf32> to vector<1x256xf32>
    %392 = vector.broadcast %390 : vector<8x1xf32> to vector<8x256xf32>
    %393 = vector.broadcast %391 : vector<1x256xf32> to vector<8x256xf32>
    %394 = arith.mulf %392, %393 : vector<8x256xf32>
    %395 = arith.addf %389, %394 : vector<8x256xf32>
    %396 = vector.extract_strided_slice %371 {offsets = [0, 4], sizes = [8, 1], strides = [1, 1]} : vector<8x8xf32> to vector<8x1xf32>
    %397 = vector.extract_strided_slice %369 {offsets = [4, 0], sizes = [1, 256], strides = [1, 1]} : vector<8x256xf32> to vector<1x256xf32>
    %398 = vector.broadcast %396 : vector<8x1xf32> to vector<8x256xf32>
    %399 = vector.broadcast %397 : vector<1x256xf32> to vector<8x256xf32>
    %400 = arith.mulf %398, %399 : vector<8x256xf32>
    %401 = arith.addf %395, %400 : vector<8x256xf32>
    %402 = vector.extract_strided_slice %371 {offsets = [0, 5], sizes = [8, 1], strides = [1, 1]} : vector<8x8xf32> to vector<8x1xf32>
    %403 = vector.extract_strided_slice %369 {offsets = [5, 0], sizes = [1, 256], strides = [1, 1]} : vector<8x256xf32> to vector<1x256xf32>
    %404 = vector.broadcast %402 : vector<8x1xf32> to vector<8x256xf32>
    %405 = vector.broadcast %403 : vector<1x256xf32> to vector<8x256xf32>
    %406 = arith.mulf %404, %405 : vector<8x256xf32>
    %407 = arith.addf %401, %406 : vector<8x256xf32>
    %408 = vector.extract_strided_slice %371 {offsets = [0, 6], sizes = [8, 1], strides = [1, 1]} : vector<8x8xf32> to vector<8x1xf32>
    %409 = vector.extract_strided_slice %369 {offsets = [6, 0], sizes = [1, 256], strides = [1, 1]} : vector<8x256xf32> to vector<1x256xf32>
    %410 = vector.broadcast %408 : vector<8x1xf32> to vector<8x256xf32>
    %411 = vector.broadcast %409 : vector<1x256xf32> to vector<8x256xf32>
    %412 = arith.mulf %410, %411 : vector<8x256xf32>
    %413 = arith.addf %407, %412 : vector<8x256xf32>
    %414 = vector.extract_strided_slice %371 {offsets = [0, 7], sizes = [8, 1], strides = [1, 1]} : vector<8x8xf32> to vector<8x1xf32>
    %415 = vector.extract_strided_slice %369 {offsets = [7, 0], sizes = [1, 256], strides = [1, 1]} : vector<8x256xf32> to vector<1x256xf32>
    %416 = vector.broadcast %414 : vector<8x1xf32> to vector<8x256xf32>
    %417 = vector.broadcast %415 : vector<1x256xf32> to vector<8x256xf32>
    %418 = arith.mulf %416, %417 : vector<8x256xf32>
    %419 = arith.addf %413, %418 : vector<8x256xf32>
    %c15_i32_68 = arith.constant 15 : i32
    %420 = tpu.dynamic_rotate %307 by %c15_i32_68 dim 1 : vector<8x256xf32>, i32 -> vector<8x256xf32>
    %421 = arith.andi %4, %10 : vector<1x256xi1>
    %cst_69 = arith.constant 0.000000e+00 : f32
    %422 = vector.shape_cast %421 : vector<1x256xi1> to vector<1x256xi1>
    %423 = vector.broadcast %422 : vector<1x256xi1> to vector<8x256xi1>
    %424 = vector.broadcast %cst_69 : f32 to vector<8x256xf32>
    %425 = arith.select %423, %420, %424 : vector<8x256xi1>, vector<8x256xf32>
    %c0_70 = arith.constant 0 : index
    %c2_71 = arith.constant 2 : index
    %c0_72 = arith.constant 0 : index
    %c0_73 = arith.constant 0 : index
    %426 = vector.load %arg4[%c0_70, %c2_71, %c0_72, %c0_73] : memref<3x3x8x8xf32, #tpu.memory_space<vmem>>, vector<1x1x8x8xf32>
    %427 = vector.shape_cast %426 : vector<1x1x8x8xf32> to vector<8x8xf32>
    %428 = vector.extract_strided_slice %427 {offsets = [0, 0], sizes = [8, 1], strides = [1, 1]} : vector<8x8xf32> to vector<8x1xf32>
    %429 = vector.extract_strided_slice %425 {offsets = [0, 0], sizes = [1, 256], strides = [1, 1]} : vector<8x256xf32> to vector<1x256xf32>
    %430 = vector.broadcast %428 : vector<8x1xf32> to vector<8x256xf32>
    %431 = vector.broadcast %429 : vector<1x256xf32> to vector<8x256xf32>
    %432 = arith.mulf %430, %431 : vector<8x256xf32>
    %433 = arith.addf %419, %432 : vector<8x256xf32>
    %434 = vector.extract_strided_slice %427 {offsets = [0, 1], sizes = [8, 1], strides = [1, 1]} : vector<8x8xf32> to vector<8x1xf32>
    %435 = vector.extract_strided_slice %425 {offsets = [1, 0], sizes = [1, 256], strides = [1, 1]} : vector<8x256xf32> to vector<1x256xf32>
    %436 = vector.broadcast %434 : vector<8x1xf32> to vector<8x256xf32>
    %437 = vector.broadcast %435 : vector<1x256xf32> to vector<8x256xf32>
    %438 = arith.mulf %436, %437 : vector<8x256xf32>
    %439 = arith.addf %433, %438 : vector<8x256xf32>
    %440 = vector.extract_strided_slice %427 {offsets = [0, 2], sizes = [8, 1], strides = [1, 1]} : vector<8x8xf32> to vector<8x1xf32>
    %441 = vector.extract_strided_slice %425 {offsets = [2, 0], sizes = [1, 256], strides = [1, 1]} : vector<8x256xf32> to vector<1x256xf32>
    %442 = vector.broadcast %440 : vector<8x1xf32> to vector<8x256xf32>
    %443 = vector.broadcast %441 : vector<1x256xf32> to vector<8x256xf32>
    %444 = arith.mulf %442, %443 : vector<8x256xf32>
    %445 = arith.addf %439, %444 : vector<8x256xf32>
    %446 = vector.extract_strided_slice %427 {offsets = [0, 3], sizes = [8, 1], strides = [1, 1]} : vector<8x8xf32> to vector<8x1xf32>
    %447 = vector.extract_strided_slice %425 {offsets = [3, 0], sizes = [1, 256], strides = [1, 1]} : vector<8x256xf32> to vector<1x256xf32>
    %448 = vector.broadcast %446 : vector<8x1xf32> to vector<8x256xf32>
    %449 = vector.broadcast %447 : vector<1x256xf32> to vector<8x256xf32>
    %450 = arith.mulf %448, %449 : vector<8x256xf32>
    %451 = arith.addf %445, %450 : vector<8x256xf32>
    %452 = vector.extract_strided_slice %427 {offsets = [0, 4], sizes = [8, 1], strides = [1, 1]} : vector<8x8xf32> to vector<8x1xf32>
    %453 = vector.extract_strided_slice %425 {offsets = [4, 0], sizes = [1, 256], strides = [1, 1]} : vector<8x256xf32> to vector<1x256xf32>
    %454 = vector.broadcast %452 : vector<8x1xf32> to vector<8x256xf32>
    %455 = vector.broadcast %453 : vector<1x256xf32> to vector<8x256xf32>
    %456 = arith.mulf %454, %455 : vector<8x256xf32>
    %457 = arith.addf %451, %456 : vector<8x256xf32>
    %458 = vector.extract_strided_slice %427 {offsets = [0, 5], sizes = [8, 1], strides = [1, 1]} : vector<8x8xf32> to vector<8x1xf32>
    %459 = vector.extract_strided_slice %425 {offsets = [5, 0], sizes = [1, 256], strides = [1, 1]} : vector<8x256xf32> to vector<1x256xf32>
    %460 = vector.broadcast %458 : vector<8x1xf32> to vector<8x256xf32>
    %461 = vector.broadcast %459 : vector<1x256xf32> to vector<8x256xf32>
    %462 = arith.mulf %460, %461 : vector<8x256xf32>
    %463 = arith.addf %457, %462 : vector<8x256xf32>
    %464 = vector.extract_strided_slice %427 {offsets = [0, 6], sizes = [8, 1], strides = [1, 1]} : vector<8x8xf32> to vector<8x1xf32>
    %465 = vector.extract_strided_slice %425 {offsets = [6, 0], sizes = [1, 256], strides = [1, 1]} : vector<8x256xf32> to vector<1x256xf32>
    %466 = vector.broadcast %464 : vector<8x1xf32> to vector<8x256xf32>
    %467 = vector.broadcast %465 : vector<1x256xf32> to vector<8x256xf32>
    %468 = arith.mulf %466, %467 : vector<8x256xf32>
    %469 = arith.addf %463, %468 : vector<8x256xf32>
    %470 = vector.extract_strided_slice %427 {offsets = [0, 7], sizes = [8, 1], strides = [1, 1]} : vector<8x8xf32> to vector<8x1xf32>
    %471 = vector.extract_strided_slice %425 {offsets = [7, 0], sizes = [1, 256], strides = [1, 1]} : vector<8x256xf32> to vector<1x256xf32>
    %472 = vector.broadcast %470 : vector<8x1xf32> to vector<8x256xf32>
    %473 = vector.broadcast %471 : vector<1x256xf32> to vector<8x256xf32>
    %474 = arith.mulf %472, %473 : vector<8x256xf32>
    %475 = arith.addf %469, %474 : vector<8x256xf32>
    %c1_i32_74 = arith.constant 1 : i32
    %476 = tpu.dynamic_rotate %307 by %c1_i32_74 dim 1 : vector<8x256xf32>, i32 -> vector<8x256xf32>
    %cst_75 = arith.constant 0.000000e+00 : f32
    %477 = vector.shape_cast %8 : vector<1x256xi1> to vector<1x256xi1>
    %478 = vector.broadcast %477 : vector<1x256xi1> to vector<8x256xi1>
    %479 = vector.broadcast %cst_75 : f32 to vector<8x256xf32>
    %480 = arith.select %478, %476, %479 : vector<8x256xi1>, vector<8x256xf32>
    %c1_76 = arith.constant 1 : index
    %c0_77 = arith.constant 0 : index
    %c0_78 = arith.constant 0 : index
    %c0_79 = arith.constant 0 : index
    %481 = vector.load %arg4[%c1_76, %c0_77, %c0_78, %c0_79] : memref<3x3x8x8xf32, #tpu.memory_space<vmem>>, vector<1x1x8x8xf32>
    %482 = vector.shape_cast %481 : vector<1x1x8x8xf32> to vector<8x8xf32>
    %483 = vector.extract_strided_slice %482 {offsets = [0, 0], sizes = [8, 1], strides = [1, 1]} : vector<8x8xf32> to vector<8x1xf32>
    %484 = vector.extract_strided_slice %480 {offsets = [0, 0], sizes = [1, 256], strides = [1, 1]} : vector<8x256xf32> to vector<1x256xf32>
    %485 = vector.broadcast %483 : vector<8x1xf32> to vector<8x256xf32>
    %486 = vector.broadcast %484 : vector<1x256xf32> to vector<8x256xf32>
    %487 = arith.mulf %485, %486 : vector<8x256xf32>
    %488 = arith.addf %475, %487 : vector<8x256xf32>
    %489 = vector.extract_strided_slice %482 {offsets = [0, 1], sizes = [8, 1], strides = [1, 1]} : vector<8x8xf32> to vector<8x1xf32>
    %490 = vector.extract_strided_slice %480 {offsets = [1, 0], sizes = [1, 256], strides = [1, 1]} : vector<8x256xf32> to vector<1x256xf32>
    %491 = vector.broadcast %489 : vector<8x1xf32> to vector<8x256xf32>
    %492 = vector.broadcast %490 : vector<1x256xf32> to vector<8x256xf32>
    %493 = arith.mulf %491, %492 : vector<8x256xf32>
    %494 = arith.addf %488, %493 : vector<8x256xf32>
    %495 = vector.extract_strided_slice %482 {offsets = [0, 2], sizes = [8, 1], strides = [1, 1]} : vector<8x8xf32> to vector<8x1xf32>
    %496 = vector.extract_strided_slice %480 {offsets = [2, 0], sizes = [1, 256], strides = [1, 1]} : vector<8x256xf32> to vector<1x256xf32>
    %497 = vector.broadcast %495 : vector<8x1xf32> to vector<8x256xf32>
    %498 = vector.broadcast %496 : vector<1x256xf32> to vector<8x256xf32>
    %499 = arith.mulf %497, %498 : vector<8x256xf32>
    %500 = arith.addf %494, %499 : vector<8x256xf32>
    %501 = vector.extract_strided_slice %482 {offsets = [0, 3], sizes = [8, 1], strides = [1, 1]} : vector<8x8xf32> to vector<8x1xf32>
    %502 = vector.extract_strided_slice %480 {offsets = [3, 0], sizes = [1, 256], strides = [1, 1]} : vector<8x256xf32> to vector<1x256xf32>
    %503 = vector.broadcast %501 : vector<8x1xf32> to vector<8x256xf32>
    %504 = vector.broadcast %502 : vector<1x256xf32> to vector<8x256xf32>
    %505 = arith.mulf %503, %504 : vector<8x256xf32>
    %506 = arith.addf %500, %505 : vector<8x256xf32>
    %507 = vector.extract_strided_slice %482 {offsets = [0, 4], sizes = [8, 1], strides = [1, 1]} : vector<8x8xf32> to vector<8x1xf32>
    %508 = vector.extract_strided_slice %480 {offsets = [4, 0], sizes = [1, 256], strides = [1, 1]} : vector<8x256xf32> to vector<1x256xf32>
    %509 = vector.broadcast %507 : vector<8x1xf32> to vector<8x256xf32>
    %510 = vector.broadcast %508 : vector<1x256xf32> to vector<8x256xf32>
    %511 = arith.mulf %509, %510 : vector<8x256xf32>
    %512 = arith.addf %506, %511 : vector<8x256xf32>
    %513 = vector.extract_strided_slice %482 {offsets = [0, 5], sizes = [8, 1], strides = [1, 1]} : vector<8x8xf32> to vector<8x1xf32>
    %514 = vector.extract_strided_slice %480 {offsets = [5, 0], sizes = [1, 256], strides = [1, 1]} : vector<8x256xf32> to vector<1x256xf32>
    %515 = vector.broadcast %513 : vector<8x1xf32> to vector<8x256xf32>
    %516 = vector.broadcast %514 : vector<1x256xf32> to vector<8x256xf32>
    %517 = arith.mulf %515, %516 : vector<8x256xf32>
    %518 = arith.addf %512, %517 : vector<8x256xf32>
    %519 = vector.extract_strided_slice %482 {offsets = [0, 6], sizes = [8, 1], strides = [1, 1]} : vector<8x8xf32> to vector<8x1xf32>
    %520 = vector.extract_strided_slice %480 {offsets = [6, 0], sizes = [1, 256], strides = [1, 1]} : vector<8x256xf32> to vector<1x256xf32>
    %521 = vector.broadcast %519 : vector<8x1xf32> to vector<8x256xf32>
    %522 = vector.broadcast %520 : vector<1x256xf32> to vector<8x256xf32>
    %523 = arith.mulf %521, %522 : vector<8x256xf32>
    %524 = arith.addf %518, %523 : vector<8x256xf32>
    %525 = vector.extract_strided_slice %482 {offsets = [0, 7], sizes = [8, 1], strides = [1, 1]} : vector<8x8xf32> to vector<8x1xf32>
    %526 = vector.extract_strided_slice %480 {offsets = [7, 0], sizes = [1, 256], strides = [1, 1]} : vector<8x256xf32> to vector<1x256xf32>
    %527 = vector.broadcast %525 : vector<8x1xf32> to vector<8x256xf32>
    %528 = vector.broadcast %526 : vector<1x256xf32> to vector<8x256xf32>
    %529 = arith.mulf %527, %528 : vector<8x256xf32>
    %530 = arith.addf %524, %529 : vector<8x256xf32>
    %c1_80 = arith.constant 1 : index
    %c1_81 = arith.constant 1 : index
    %c0_82 = arith.constant 0 : index
    %c0_83 = arith.constant 0 : index
    %531 = vector.load %arg4[%c1_80, %c1_81, %c0_82, %c0_83] : memref<3x3x8x8xf32, #tpu.memory_space<vmem>>, vector<1x1x8x8xf32>
    %532 = vector.shape_cast %531 : vector<1x1x8x8xf32> to vector<8x8xf32>
    %533 = vector.extract_strided_slice %532 {offsets = [0, 0], sizes = [8, 1], strides = [1, 1]} : vector<8x8xf32> to vector<8x1xf32>
    %534 = vector.extract_strided_slice %307 {offsets = [0, 0], sizes = [1, 256], strides = [1, 1]} : vector<8x256xf32> to vector<1x256xf32>
    %535 = vector.broadcast %533 : vector<8x1xf32> to vector<8x256xf32>
    %536 = vector.broadcast %534 : vector<1x256xf32> to vector<8x256xf32>
    %537 = arith.mulf %535, %536 : vector<8x256xf32>
    %538 = arith.addf %530, %537 : vector<8x256xf32>
    %539 = vector.extract_strided_slice %532 {offsets = [0, 1], sizes = [8, 1], strides = [1, 1]} : vector<8x8xf32> to vector<8x1xf32>
    %540 = vector.extract_strided_slice %307 {offsets = [1, 0], sizes = [1, 256], strides = [1, 1]} : vector<8x256xf32> to vector<1x256xf32>
    %541 = vector.broadcast %539 : vector<8x1xf32> to vector<8x256xf32>
    %542 = vector.broadcast %540 : vector<1x256xf32> to vector<8x256xf32>
    %543 = arith.mulf %541, %542 : vector<8x256xf32>
    %544 = arith.addf %538, %543 : vector<8x256xf32>
    %545 = vector.extract_strided_slice %532 {offsets = [0, 2], sizes = [8, 1], strides = [1, 1]} : vector<8x8xf32> to vector<8x1xf32>
    %546 = vector.extract_strided_slice %307 {offsets = [2, 0], sizes = [1, 256], strides = [1, 1]} : vector<8x256xf32> to vector<1x256xf32>
    %547 = vector.broadcast %545 : vector<8x1xf32> to vector<8x256xf32>
    %548 = vector.broadcast %546 : vector<1x256xf32> to vector<8x256xf32>
    %549 = arith.mulf %547, %548 : vector<8x256xf32>
    %550 = arith.addf %544, %549 : vector<8x256xf32>
    %551 = vector.extract_strided_slice %532 {offsets = [0, 3], sizes = [8, 1], strides = [1, 1]} : vector<8x8xf32> to vector<8x1xf32>
    %552 = vector.extract_strided_slice %307 {offsets = [3, 0], sizes = [1, 256], strides = [1, 1]} : vector<8x256xf32> to vector<1x256xf32>
    %553 = vector.broadcast %551 : vector<8x1xf32> to vector<8x256xf32>
    %554 = vector.broadcast %552 : vector<1x256xf32> to vector<8x256xf32>
    %555 = arith.mulf %553, %554 : vector<8x256xf32>
    %556 = arith.addf %550, %555 : vector<8x256xf32>
    %557 = vector.extract_strided_slice %532 {offsets = [0, 4], sizes = [8, 1], strides = [1, 1]} : vector<8x8xf32> to vector<8x1xf32>
    %558 = vector.extract_strided_slice %307 {offsets = [4, 0], sizes = [1, 256], strides = [1, 1]} : vector<8x256xf32> to vector<1x256xf32>
    %559 = vector.broadcast %557 : vector<8x1xf32> to vector<8x256xf32>
    %560 = vector.broadcast %558 : vector<1x256xf32> to vector<8x256xf32>
    %561 = arith.mulf %559, %560 : vector<8x256xf32>
    %562 = arith.addf %556, %561 : vector<8x256xf32>
    %563 = vector.extract_strided_slice %532 {offsets = [0, 5], sizes = [8, 1], strides = [1, 1]} : vector<8x8xf32> to vector<8x1xf32>
    %564 = vector.extract_strided_slice %307 {offsets = [5, 0], sizes = [1, 256], strides = [1, 1]} : vector<8x256xf32> to vector<1x256xf32>
    %565 = vector.broadcast %563 : vector<8x1xf32> to vector<8x256xf32>
    %566 = vector.broadcast %564 : vector<1x256xf32> to vector<8x256xf32>
    %567 = arith.mulf %565, %566 : vector<8x256xf32>
    %568 = arith.addf %562, %567 : vector<8x256xf32>
    %569 = vector.extract_strided_slice %532 {offsets = [0, 6], sizes = [8, 1], strides = [1, 1]} : vector<8x8xf32> to vector<8x1xf32>
    %570 = vector.extract_strided_slice %307 {offsets = [6, 0], sizes = [1, 256], strides = [1, 1]} : vector<8x256xf32> to vector<1x256xf32>
    %571 = vector.broadcast %569 : vector<8x1xf32> to vector<8x256xf32>
    %572 = vector.broadcast %570 : vector<1x256xf32> to vector<8x256xf32>
    %573 = arith.mulf %571, %572 : vector<8x256xf32>
    %574 = arith.addf %568, %573 : vector<8x256xf32>
    %575 = vector.extract_strided_slice %532 {offsets = [0, 7], sizes = [8, 1], strides = [1, 1]} : vector<8x8xf32> to vector<8x1xf32>
    %576 = vector.extract_strided_slice %307 {offsets = [7, 0], sizes = [1, 256], strides = [1, 1]} : vector<8x256xf32> to vector<1x256xf32>
    %577 = vector.broadcast %575 : vector<8x1xf32> to vector<8x256xf32>
    %578 = vector.broadcast %576 : vector<1x256xf32> to vector<8x256xf32>
    %579 = arith.mulf %577, %578 : vector<8x256xf32>
    %580 = arith.addf %574, %579 : vector<8x256xf32>
    %c255_i32_84 = arith.constant 255 : i32
    %581 = tpu.dynamic_rotate %307 by %c255_i32_84 dim 1 : vector<8x256xf32>, i32 -> vector<8x256xf32>
    %cst_85 = arith.constant 0.000000e+00 : f32
    %582 = vector.shape_cast %10 : vector<1x256xi1> to vector<1x256xi1>
    %583 = vector.broadcast %582 : vector<1x256xi1> to vector<8x256xi1>
    %584 = vector.broadcast %cst_85 : f32 to vector<8x256xf32>
    %585 = arith.select %583, %581, %584 : vector<8x256xi1>, vector<8x256xf32>
    %c1_86 = arith.constant 1 : index
    %c2_87 = arith.constant 2 : index
    %c0_88 = arith.constant 0 : index
    %c0_89 = arith.constant 0 : index
    %586 = vector.load %arg4[%c1_86, %c2_87, %c0_88, %c0_89] : memref<3x3x8x8xf32, #tpu.memory_space<vmem>>, vector<1x1x8x8xf32>
    %587 = vector.shape_cast %586 : vector<1x1x8x8xf32> to vector<8x8xf32>
    %588 = vector.extract_strided_slice %587 {offsets = [0, 0], sizes = [8, 1], strides = [1, 1]} : vector<8x8xf32> to vector<8x1xf32>
    %589 = vector.extract_strided_slice %585 {offsets = [0, 0], sizes = [1, 256], strides = [1, 1]} : vector<8x256xf32> to vector<1x256xf32>
    %590 = vector.broadcast %588 : vector<8x1xf32> to vector<8x256xf32>
    %591 = vector.broadcast %589 : vector<1x256xf32> to vector<8x256xf32>
    %592 = arith.mulf %590, %591 : vector<8x256xf32>
    %593 = arith.addf %580, %592 : vector<8x256xf32>
    %594 = vector.extract_strided_slice %587 {offsets = [0, 1], sizes = [8, 1], strides = [1, 1]} : vector<8x8xf32> to vector<8x1xf32>
    %595 = vector.extract_strided_slice %585 {offsets = [1, 0], sizes = [1, 256], strides = [1, 1]} : vector<8x256xf32> to vector<1x256xf32>
    %596 = vector.broadcast %594 : vector<8x1xf32> to vector<8x256xf32>
    %597 = vector.broadcast %595 : vector<1x256xf32> to vector<8x256xf32>
    %598 = arith.mulf %596, %597 : vector<8x256xf32>
    %599 = arith.addf %593, %598 : vector<8x256xf32>
    %600 = vector.extract_strided_slice %587 {offsets = [0, 2], sizes = [8, 1], strides = [1, 1]} : vector<8x8xf32> to vector<8x1xf32>
    %601 = vector.extract_strided_slice %585 {offsets = [2, 0], sizes = [1, 256], strides = [1, 1]} : vector<8x256xf32> to vector<1x256xf32>
    %602 = vector.broadcast %600 : vector<8x1xf32> to vector<8x256xf32>
    %603 = vector.broadcast %601 : vector<1x256xf32> to vector<8x256xf32>
    %604 = arith.mulf %602, %603 : vector<8x256xf32>
    %605 = arith.addf %599, %604 : vector<8x256xf32>
    %606 = vector.extract_strided_slice %587 {offsets = [0, 3], sizes = [8, 1], strides = [1, 1]} : vector<8x8xf32> to vector<8x1xf32>
    %607 = vector.extract_strided_slice %585 {offsets = [3, 0], sizes = [1, 256], strides = [1, 1]} : vector<8x256xf32> to vector<1x256xf32>
    %608 = vector.broadcast %606 : vector<8x1xf32> to vector<8x256xf32>
    %609 = vector.broadcast %607 : vector<1x256xf32> to vector<8x256xf32>
    %610 = arith.mulf %608, %609 : vector<8x256xf32>
    %611 = arith.addf %605, %610 : vector<8x256xf32>
    %612 = vector.extract_strided_slice %587 {offsets = [0, 4], sizes = [8, 1], strides = [1, 1]} : vector<8x8xf32> to vector<8x1xf32>
    %613 = vector.extract_strided_slice %585 {offsets = [4, 0], sizes = [1, 256], strides = [1, 1]} : vector<8x256xf32> to vector<1x256xf32>
    %614 = vector.broadcast %612 : vector<8x1xf32> to vector<8x256xf32>
    %615 = vector.broadcast %613 : vector<1x256xf32> to vector<8x256xf32>
    %616 = arith.mulf %614, %615 : vector<8x256xf32>
    %617 = arith.addf %611, %616 : vector<8x256xf32>
    %618 = vector.extract_strided_slice %587 {offsets = [0, 5], sizes = [8, 1], strides = [1, 1]} : vector<8x8xf32> to vector<8x1xf32>
    %619 = vector.extract_strided_slice %585 {offsets = [5, 0], sizes = [1, 256], strides = [1, 1]} : vector<8x256xf32> to vector<1x256xf32>
    %620 = vector.broadcast %618 : vector<8x1xf32> to vector<8x256xf32>
    %621 = vector.broadcast %619 : vector<1x256xf32> to vector<8x256xf32>
    %622 = arith.mulf %620, %621 : vector<8x256xf32>
    %623 = arith.addf %617, %622 : vector<8x256xf32>
    %624 = vector.extract_strided_slice %587 {offsets = [0, 6], sizes = [8, 1], strides = [1, 1]} : vector<8x8xf32> to vector<8x1xf32>
    %625 = vector.extract_strided_slice %585 {offsets = [6, 0], sizes = [1, 256], strides = [1, 1]} : vector<8x256xf32> to vector<1x256xf32>
    %626 = vector.broadcast %624 : vector<8x1xf32> to vector<8x256xf32>
    %627 = vector.broadcast %625 : vector<1x256xf32> to vector<8x256xf32>
    %628 = arith.mulf %626, %627 : vector<8x256xf32>
    %629 = arith.addf %623, %628 : vector<8x256xf32>
    %630 = vector.extract_strided_slice %587 {offsets = [0, 7], sizes = [8, 1], strides = [1, 1]} : vector<8x8xf32> to vector<8x1xf32>
    %631 = vector.extract_strided_slice %585 {offsets = [7, 0], sizes = [1, 256], strides = [1, 1]} : vector<8x256xf32> to vector<1x256xf32>
    %632 = vector.broadcast %630 : vector<8x1xf32> to vector<8x256xf32>
    %633 = vector.broadcast %631 : vector<1x256xf32> to vector<8x256xf32>
    %634 = arith.mulf %632, %633 : vector<8x256xf32>
    %635 = arith.addf %629, %634 : vector<8x256xf32>
    %c241_i32_90 = arith.constant 241 : i32
    %636 = tpu.dynamic_rotate %307 by %c241_i32_90 dim 1 : vector<8x256xf32>, i32 -> vector<8x256xf32>
    %637 = arith.andi %6, %8 : vector<1x256xi1>
    %cst_91 = arith.constant 0.000000e+00 : f32
    %638 = vector.shape_cast %637 : vector<1x256xi1> to vector<1x256xi1>
    %639 = vector.broadcast %638 : vector<1x256xi1> to vector<8x256xi1>
    %640 = vector.broadcast %cst_91 : f32 to vector<8x256xf32>
    %641 = arith.select %639, %636, %640 : vector<8x256xi1>, vector<8x256xf32>
    %c2_92 = arith.constant 2 : index
    %c0_93 = arith.constant 0 : index
    %c0_94 = arith.constant 0 : index
    %c0_95 = arith.constant 0 : index
    %642 = vector.load %arg4[%c2_92, %c0_93, %c0_94, %c0_95] : memref<3x3x8x8xf32, #tpu.memory_space<vmem>>, vector<1x1x8x8xf32>
    %643 = vector.shape_cast %642 : vector<1x1x8x8xf32> to vector<8x8xf32>
    %644 = vector.extract_strided_slice %643 {offsets = [0, 0], sizes = [8, 1], strides = [1, 1]} : vector<8x8xf32> to vector<8x1xf32>
    %645 = vector.extract_strided_slice %641 {offsets = [0, 0], sizes = [1, 256], strides = [1, 1]} : vector<8x256xf32> to vector<1x256xf32>
    %646 = vector.broadcast %644 : vector<8x1xf32> to vector<8x256xf32>
    %647 = vector.broadcast %645 : vector<1x256xf32> to vector<8x256xf32>
    %648 = arith.mulf %646, %647 : vector<8x256xf32>
    %649 = arith.addf %635, %648 : vector<8x256xf32>
    %650 = vector.extract_strided_slice %643 {offsets = [0, 1], sizes = [8, 1], strides = [1, 1]} : vector<8x8xf32> to vector<8x1xf32>
    %651 = vector.extract_strided_slice %641 {offsets = [1, 0], sizes = [1, 256], strides = [1, 1]} : vector<8x256xf32> to vector<1x256xf32>
    %652 = vector.broadcast %650 : vector<8x1xf32> to vector<8x256xf32>
    %653 = vector.broadcast %651 : vector<1x256xf32> to vector<8x256xf32>
    %654 = arith.mulf %652, %653 : vector<8x256xf32>
    %655 = arith.addf %649, %654 : vector<8x256xf32>
    %656 = vector.extract_strided_slice %643 {offsets = [0, 2], sizes = [8, 1], strides = [1, 1]} : vector<8x8xf32> to vector<8x1xf32>
    %657 = vector.extract_strided_slice %641 {offsets = [2, 0], sizes = [1, 256], strides = [1, 1]} : vector<8x256xf32> to vector<1x256xf32>
    %658 = vector.broadcast %656 : vector<8x1xf32> to vector<8x256xf32>
    %659 = vector.broadcast %657 : vector<1x256xf32> to vector<8x256xf32>
    %660 = arith.mulf %658, %659 : vector<8x256xf32>
    %661 = arith.addf %655, %660 : vector<8x256xf32>
    %662 = vector.extract_strided_slice %643 {offsets = [0, 3], sizes = [8, 1], strides = [1, 1]} : vector<8x8xf32> to vector<8x1xf32>
    %663 = vector.extract_strided_slice %641 {offsets = [3, 0], sizes = [1, 256], strides = [1, 1]} : vector<8x256xf32> to vector<1x256xf32>
    %664 = vector.broadcast %662 : vector<8x1xf32> to vector<8x256xf32>
    %665 = vector.broadcast %663 : vector<1x256xf32> to vector<8x256xf32>
    %666 = arith.mulf %664, %665 : vector<8x256xf32>
    %667 = arith.addf %661, %666 : vector<8x256xf32>
    %668 = vector.extract_strided_slice %643 {offsets = [0, 4], sizes = [8, 1], strides = [1, 1]} : vector<8x8xf32> to vector<8x1xf32>
    %669 = vector.extract_strided_slice %641 {offsets = [4, 0], sizes = [1, 256], strides = [1, 1]} : vector<8x256xf32> to vector<1x256xf32>
    %670 = vector.broadcast %668 : vector<8x1xf32> to vector<8x256xf32>
    %671 = vector.broadcast %669 : vector<1x256xf32> to vector<8x256xf32>
    %672 = arith.mulf %670, %671 : vector<8x256xf32>
    %673 = arith.addf %667, %672 : vector<8x256xf32>
    %674 = vector.extract_strided_slice %643 {offsets = [0, 5], sizes = [8, 1], strides = [1, 1]} : vector<8x8xf32> to vector<8x1xf32>
    %675 = vector.extract_strided_slice %641 {offsets = [5, 0], sizes = [1, 256], strides = [1, 1]} : vector<8x256xf32> to vector<1x256xf32>
    %676 = vector.broadcast %674 : vector<8x1xf32> to vector<8x256xf32>
    %677 = vector.broadcast %675 : vector<1x256xf32> to vector<8x256xf32>
    %678 = arith.mulf %676, %677 : vector<8x256xf32>
    %679 = arith.addf %673, %678 : vector<8x256xf32>
    %680 = vector.extract_strided_slice %643 {offsets = [0, 6], sizes = [8, 1], strides = [1, 1]} : vector<8x8xf32> to vector<8x1xf32>
    %681 = vector.extract_strided_slice %641 {offsets = [6, 0], sizes = [1, 256], strides = [1, 1]} : vector<8x256xf32> to vector<1x256xf32>
    %682 = vector.broadcast %680 : vector<8x1xf32> to vector<8x256xf32>
    %683 = vector.broadcast %681 : vector<1x256xf32> to vector<8x256xf32>
    %684 = arith.mulf %682, %683 : vector<8x256xf32>
    %685 = arith.addf %679, %684 : vector<8x256xf32>
    %686 = vector.extract_strided_slice %643 {offsets = [0, 7], sizes = [8, 1], strides = [1, 1]} : vector<8x8xf32> to vector<8x1xf32>
    %687 = vector.extract_strided_slice %641 {offsets = [7, 0], sizes = [1, 256], strides = [1, 1]} : vector<8x256xf32> to vector<1x256xf32>
    %688 = vector.broadcast %686 : vector<8x1xf32> to vector<8x256xf32>
    %689 = vector.broadcast %687 : vector<1x256xf32> to vector<8x256xf32>
    %690 = arith.mulf %688, %689 : vector<8x256xf32>
    %691 = arith.addf %685, %690 : vector<8x256xf32>
    %c240_i32_96 = arith.constant 240 : i32
    %692 = tpu.dynamic_rotate %307 by %c240_i32_96 dim 1 : vector<8x256xf32>, i32 -> vector<8x256xf32>
    %cst_97 = arith.constant 0.000000e+00 : f32
    %693 = vector.shape_cast %6 : vector<1x256xi1> to vector<1x256xi1>
    %694 = vector.broadcast %693 : vector<1x256xi1> to vector<8x256xi1>
    %695 = vector.broadcast %cst_97 : f32 to vector<8x256xf32>
    %696 = arith.select %694, %692, %695 : vector<8x256xi1>, vector<8x256xf32>
    %c2_98 = arith.constant 2 : index
    %c1_99 = arith.constant 1 : index
    %c0_100 = arith.constant 0 : index
    %c0_101 = arith.constant 0 : index
    %697 = vector.load %arg4[%c2_98, %c1_99, %c0_100, %c0_101] : memref<3x3x8x8xf32, #tpu.memory_space<vmem>>, vector<1x1x8x8xf32>
    %698 = vector.shape_cast %697 : vector<1x1x8x8xf32> to vector<8x8xf32>
    %699 = vector.extract_strided_slice %698 {offsets = [0, 0], sizes = [8, 1], strides = [1, 1]} : vector<8x8xf32> to vector<8x1xf32>
    %700 = vector.extract_strided_slice %696 {offsets = [0, 0], sizes = [1, 256], strides = [1, 1]} : vector<8x256xf32> to vector<1x256xf32>
    %701 = vector.broadcast %699 : vector<8x1xf32> to vector<8x256xf32>
    %702 = vector.broadcast %700 : vector<1x256xf32> to vector<8x256xf32>
    %703 = arith.mulf %701, %702 : vector<8x256xf32>
    %704 = arith.addf %691, %703 : vector<8x256xf32>
    %705 = vector.extract_strided_slice %698 {offsets = [0, 1], sizes = [8, 1], strides = [1, 1]} : vector<8x8xf32> to vector<8x1xf32>
    %706 = vector.extract_strided_slice %696 {offsets = [1, 0], sizes = [1, 256], strides = [1, 1]} : vector<8x256xf32> to vector<1x256xf32>
    %707 = vector.broadcast %705 : vector<8x1xf32> to vector<8x256xf32>
    %708 = vector.broadcast %706 : vector<1x256xf32> to vector<8x256xf32>
    %709 = arith.mulf %707, %708 : vector<8x256xf32>
    %710 = arith.addf %704, %709 : vector<8x256xf32>
    %711 = vector.extract_strided_slice %698 {offsets = [0, 2], sizes = [8, 1], strides = [1, 1]} : vector<8x8xf32> to vector<8x1xf32>
    %712 = vector.extract_strided_slice %696 {offsets = [2, 0], sizes = [1, 256], strides = [1, 1]} : vector<8x256xf32> to vector<1x256xf32>
    %713 = vector.broadcast %711 : vector<8x1xf32> to vector<8x256xf32>
    %714 = vector.broadcast %712 : vector<1x256xf32> to vector<8x256xf32>
    %715 = arith.mulf %713, %714 : vector<8x256xf32>
    %716 = arith.addf %710, %715 : vector<8x256xf32>
    %717 = vector.extract_strided_slice %698 {offsets = [0, 3], sizes = [8, 1], strides = [1, 1]} : vector<8x8xf32> to vector<8x1xf32>
    %718 = vector.extract_strided_slice %696 {offsets = [3, 0], sizes = [1, 256], strides = [1, 1]} : vector<8x256xf32> to vector<1x256xf32>
    %719 = vector.broadcast %717 : vector<8x1xf32> to vector<8x256xf32>
    %720 = vector.broadcast %718 : vector<1x256xf32> to vector<8x256xf32>
    %721 = arith.mulf %719, %720 : vector<8x256xf32>
    %722 = arith.addf %716, %721 : vector<8x256xf32>
    %723 = vector.extract_strided_slice %698 {offsets = [0, 4], sizes = [8, 1], strides = [1, 1]} : vector<8x8xf32> to vector<8x1xf32>
    %724 = vector.extract_strided_slice %696 {offsets = [4, 0], sizes = [1, 256], strides = [1, 1]} : vector<8x256xf32> to vector<1x256xf32>
    %725 = vector.broadcast %723 : vector<8x1xf32> to vector<8x256xf32>
    %726 = vector.broadcast %724 : vector<1x256xf32> to vector<8x256xf32>
    %727 = arith.mulf %725, %726 : vector<8x256xf32>
    %728 = arith.addf %722, %727 : vector<8x256xf32>
    %729 = vector.extract_strided_slice %698 {offsets = [0, 5], sizes = [8, 1], strides = [1, 1]} : vector<8x8xf32> to vector<8x1xf32>
    %730 = vector.extract_strided_slice %696 {offsets = [5, 0], sizes = [1, 256], strides = [1, 1]} : vector<8x256xf32> to vector<1x256xf32>
    %731 = vector.broadcast %729 : vector<8x1xf32> to vector<8x256xf32>
    %732 = vector.broadcast %730 : vector<1x256xf32> to vector<8x256xf32>
    %733 = arith.mulf %731, %732 : vector<8x256xf32>
    %734 = arith.addf %728, %733 : vector<8x256xf32>
    %735 = vector.extract_strided_slice %698 {offsets = [0, 6], sizes = [8, 1], strides = [1, 1]} : vector<8x8xf32> to vector<8x1xf32>
    %736 = vector.extract_strided_slice %696 {offsets = [6, 0], sizes = [1, 256], strides = [1, 1]} : vector<8x256xf32> to vector<1x256xf32>
    %737 = vector.broadcast %735 : vector<8x1xf32> to vector<8x256xf32>
    %738 = vector.broadcast %736 : vector<1x256xf32> to vector<8x256xf32>
    %739 = arith.mulf %737, %738 : vector<8x256xf32>
    %740 = arith.addf %734, %739 : vector<8x256xf32>
    %741 = vector.extract_strided_slice %698 {offsets = [0, 7], sizes = [8, 1], strides = [1, 1]} : vector<8x8xf32> to vector<8x1xf32>
    %742 = vector.extract_strided_slice %696 {offsets = [7, 0], sizes = [1, 256], strides = [1, 1]} : vector<8x256xf32> to vector<1x256xf32>
    %743 = vector.broadcast %741 : vector<8x1xf32> to vector<8x256xf32>
    %744 = vector.broadcast %742 : vector<1x256xf32> to vector<8x256xf32>
    %745 = arith.mulf %743, %744 : vector<8x256xf32>
    %746 = arith.addf %740, %745 : vector<8x256xf32>
    %c239_i32_102 = arith.constant 239 : i32
    %747 = tpu.dynamic_rotate %307 by %c239_i32_102 dim 1 : vector<8x256xf32>, i32 -> vector<8x256xf32>
    %748 = arith.andi %6, %10 : vector<1x256xi1>
    %cst_103 = arith.constant 0.000000e+00 : f32
    %749 = vector.shape_cast %748 : vector<1x256xi1> to vector<1x256xi1>
    %750 = vector.broadcast %749 : vector<1x256xi1> to vector<8x256xi1>
    %751 = vector.broadcast %cst_103 : f32 to vector<8x256xf32>
    %752 = arith.select %750, %747, %751 : vector<8x256xi1>, vector<8x256xf32>
    %c2_104 = arith.constant 2 : index
    %c2_105 = arith.constant 2 : index
    %c0_106 = arith.constant 0 : index
    %c0_107 = arith.constant 0 : index
    %753 = vector.load %arg4[%c2_104, %c2_105, %c0_106, %c0_107] : memref<3x3x8x8xf32, #tpu.memory_space<vmem>>, vector<1x1x8x8xf32>
    %754 = vector.shape_cast %753 : vector<1x1x8x8xf32> to vector<8x8xf32>
    %755 = vector.extract_strided_slice %754 {offsets = [0, 0], sizes = [8, 1], strides = [1, 1]} : vector<8x8xf32> to vector<8x1xf32>
    %756 = vector.extract_strided_slice %752 {offsets = [0, 0], sizes = [1, 256], strides = [1, 1]} : vector<8x256xf32> to vector<1x256xf32>
    %757 = vector.broadcast %755 : vector<8x1xf32> to vector<8x256xf32>
    %758 = vector.broadcast %756 : vector<1x256xf32> to vector<8x256xf32>
    %759 = arith.mulf %757, %758 : vector<8x256xf32>
    %760 = arith.addf %746, %759 : vector<8x256xf32>
    %761 = vector.extract_strided_slice %754 {offsets = [0, 1], sizes = [8, 1], strides = [1, 1]} : vector<8x8xf32> to vector<8x1xf32>
    %762 = vector.extract_strided_slice %752 {offsets = [1, 0], sizes = [1, 256], strides = [1, 1]} : vector<8x256xf32> to vector<1x256xf32>
    %763 = vector.broadcast %761 : vector<8x1xf32> to vector<8x256xf32>
    %764 = vector.broadcast %762 : vector<1x256xf32> to vector<8x256xf32>
    %765 = arith.mulf %763, %764 : vector<8x256xf32>
    %766 = arith.addf %760, %765 : vector<8x256xf32>
    %767 = vector.extract_strided_slice %754 {offsets = [0, 2], sizes = [8, 1], strides = [1, 1]} : vector<8x8xf32> to vector<8x1xf32>
    %768 = vector.extract_strided_slice %752 {offsets = [2, 0], sizes = [1, 256], strides = [1, 1]} : vector<8x256xf32> to vector<1x256xf32>
    %769 = vector.broadcast %767 : vector<8x1xf32> to vector<8x256xf32>
    %770 = vector.broadcast %768 : vector<1x256xf32> to vector<8x256xf32>
    %771 = arith.mulf %769, %770 : vector<8x256xf32>
    %772 = arith.addf %766, %771 : vector<8x256xf32>
    %773 = vector.extract_strided_slice %754 {offsets = [0, 3], sizes = [8, 1], strides = [1, 1]} : vector<8x8xf32> to vector<8x1xf32>
    %774 = vector.extract_strided_slice %752 {offsets = [3, 0], sizes = [1, 256], strides = [1, 1]} : vector<8x256xf32> to vector<1x256xf32>
    %775 = vector.broadcast %773 : vector<8x1xf32> to vector<8x256xf32>
    %776 = vector.broadcast %774 : vector<1x256xf32> to vector<8x256xf32>
    %777 = arith.mulf %775, %776 : vector<8x256xf32>
    %778 = arith.addf %772, %777 : vector<8x256xf32>
    %779 = vector.extract_strided_slice %754 {offsets = [0, 4], sizes = [8, 1], strides = [1, 1]} : vector<8x8xf32> to vector<8x1xf32>
    %780 = vector.extract_strided_slice %752 {offsets = [4, 0], sizes = [1, 256], strides = [1, 1]} : vector<8x256xf32> to vector<1x256xf32>
    %781 = vector.broadcast %779 : vector<8x1xf32> to vector<8x256xf32>
    %782 = vector.broadcast %780 : vector<1x256xf32> to vector<8x256xf32>
    %783 = arith.mulf %781, %782 : vector<8x256xf32>
    %784 = arith.addf %778, %783 : vector<8x256xf32>
    %785 = vector.extract_strided_slice %754 {offsets = [0, 5], sizes = [8, 1], strides = [1, 1]} : vector<8x8xf32> to vector<8x1xf32>
    %786 = vector.extract_strided_slice %752 {offsets = [5, 0], sizes = [1, 256], strides = [1, 1]} : vector<8x256xf32> to vector<1x256xf32>
    %787 = vector.broadcast %785 : vector<8x1xf32> to vector<8x256xf32>
    %788 = vector.broadcast %786 : vector<1x256xf32> to vector<8x256xf32>
    %789 = arith.mulf %787, %788 : vector<8x256xf32>
    %790 = arith.addf %784, %789 : vector<8x256xf32>
    %791 = vector.extract_strided_slice %754 {offsets = [0, 6], sizes = [8, 1], strides = [1, 1]} : vector<8x8xf32> to vector<8x1xf32>
    %792 = vector.extract_strided_slice %752 {offsets = [6, 0], sizes = [1, 256], strides = [1, 1]} : vector<8x256xf32> to vector<1x256xf32>
    %793 = vector.broadcast %791 : vector<8x1xf32> to vector<8x256xf32>
    %794 = vector.broadcast %792 : vector<1x256xf32> to vector<8x256xf32>
    %795 = arith.mulf %793, %794 : vector<8x256xf32>
    %796 = arith.addf %790, %795 : vector<8x256xf32>
    %797 = vector.extract_strided_slice %754 {offsets = [0, 7], sizes = [8, 1], strides = [1, 1]} : vector<8x8xf32> to vector<8x1xf32>
    %798 = vector.extract_strided_slice %752 {offsets = [7, 0], sizes = [1, 256], strides = [1, 1]} : vector<8x256xf32> to vector<1x256xf32>
    %799 = vector.broadcast %797 : vector<8x1xf32> to vector<8x256xf32>
    %800 = vector.broadcast %798 : vector<1x256xf32> to vector<8x256xf32>
    %801 = arith.mulf %799, %800 : vector<8x256xf32>
    %802 = arith.addf %796, %801 : vector<8x256xf32>
    %c0_108 = arith.constant 0 : index
    %c0_109 = arith.constant 0 : index
    %803 = vector.load %arg5[%c0_108, %c0_109] : memref<8x1xf32, #tpu.memory_space<vmem>>, vector<8x1xf32>
    %804 = vector.broadcast %803 : vector<8x1xf32> to vector<8x256xf32>
    %805 = arith.addf %802, %804 : vector<8x256xf32>
    %806 = arith.mulf %805, %805 : vector<8x256xf32>
    %cst_110 = arith.constant dense<0.000000e+00> : vector<256xf32>
    %807 = vector.multi_reduction <add>, %806, %cst_110 [0] : vector<8x256xf32> to vector<256xf32>
    %808 = vector.shape_cast %807 : vector<256xf32> to vector<1x256xf32>
    %cst_111 = arith.constant 8.000000e+00 : f32
    %809 = vector.broadcast %cst_111 : f32 to vector<1x256xf32>
    %810 = arith.divf %808, %809 : vector<1x256xf32>
    %cst_112 = arith.constant 9.99999993E-9 : f32
    %811 = vector.broadcast %cst_112 : f32 to vector<1x256xf32>
    %812 = arith.addf %810, %811 : vector<1x256xf32>
    %813 = math.rsqrt %812 : vector<1x256xf32>
    %814 = vector.broadcast %813 : vector<1x256xf32> to vector<8x256xf32>
    %815 = arith.mulf %805, %814 : vector<8x256xf32>
    %cst_113 = arith.constant 1.000000e-01 : f32
    %816 = vector.broadcast %cst_113 : f32 to vector<8x256xf32>
    %817 = arith.mulf %816, %815 : vector<8x256xf32>
    %818 = arith.maximumf %815, %817 : vector<8x256xf32>
    %c0_114 = arith.constant 0 : index
    %c0_115 = arith.constant 0 : index
    %c0_116 = arith.constant 0 : index
    %819 = vector.load %arg6[%c0_114, %c0_115, %c0_116] : memref<1x8x256xf32, #tpu.memory_space<vmem>>, vector<1x8x256xf32>
    %820 = vector.shape_cast %819 : vector<1x8x256xf32> to vector<8x256xf32>
    %821 = vector.shape_cast %818 : vector<8x256xf32> to vector<1x8x256xf32>
    tpu.vector_store %arg6[%c0_114, %c0_115, %c0_116], %821 {strides = array<i32>} : memref<1x8x256xf32, #tpu.memory_space<vmem>>, vector<1x8x256xf32>,
    return
  }
  func.func @transform_0(%arg0: i32) -> (i32, i32, i32) {
    %c0_i32 = arith.constant 0 : i32
    %c0_i32_0 = arith.constant 0 : i32
    %c0_i32_1 = arith.constant 0 : i32
    return %arg0, %c0_i32, %c0_i32_0 : i32, i32, i32
  }
  func.func @transform_1(%arg0: i32) -> (i32, i32, i32, i32) {
    %c0_i32 = arith.constant 0 : i32
    %c0_i32_0 = arith.constant 0 : i32
    %c0_i32_1 = arith.constant 0 : i32
    %c0_i32_2 = arith.constant 0 : i32
    %c0_i32_3 = arith.constant 0 : i32
    return %c0_i32, %c0_i32_0, %c0_i32_1, %c0_i32_2 : i32, i32, i32, i32
  }
  func.func @transform_2(%arg0: i32) -> (i32, i32) {
    %c0_i32 = arith.constant 0 : i32
    %c0_i32_0 = arith.constant 0 : i32
    %c0_i32_1 = arith.constant 0 : i32
    return %c0_i32, %c0_i32_0 : i32, i32
  }
  func.func @transform_3(%arg0: i32) -> (i32, i32, i32, i32) {
    %c0_i32 = arith.constant 0 : i32
    %c0_i32_0 = arith.constant 0 : i32
    %c0_i32_1 = arith.constant 0 : i32
    %c0_i32_2 = arith.constant 0 : i32
    %c0_i32_3 = arith.constant 0 : i32
    return %c0_i32, %c0_i32_0, %c0_i32_1, %c0_i32_2 : i32, i32, i32, i32
  }
  func.func @transform_4(%arg0: i32) -> (i32, i32) {
    %c0_i32 = arith.constant 0 : i32
    %c0_i32_0 = arith.constant 0 : i32
    %c0_i32_1 = arith.constant 0 : i32
    return %c0_i32, %c0_i32_0 : i32, i32
  }
  func.func @transform_5(%arg0: i32) -> (i32, i32, i32) {
    %c0_i32 = arith.constant 0 : i32
    %c0_i32_0 = arith.constant 0 : i32
    %c0_i32_1 = arith.constant 0 : i32
    return %arg0, %c0_i32, %c0_i32_0 : i32, i32, i32
  }
}

</mosaic_0001>

<llo_original>
// kernel: tpu_custom_call.1
$region0: #{tpu_custom_call.1}
  #allocation0 [shape = 'u32[]', space=smem, size = 0x4, offset = 0x4, fixed_abs, tag = 'smem constant byte address 0x4 - core index']
  #allocation1 [shape = 'u32[144,128]{1,0:T(1,128)}', space=vmem, size = 0x12000, scoped, tag = 'internal scratch']
  %s0 = inlined_call_operand.vmem [shape: f32[2,4,256], index: 0, kind: input, shape index: {}]
  %s1 = inlined_call_operand.vmem [shape: f32[3,3,8,4], index: 1, kind: input, shape index: {}]
  %s2 = inlined_call_operand.vmem [shape: f32[8,1], index: 2, kind: input, shape index: {}]
  %s3 = inlined_call_operand.vmem [shape: f32[3,3,8,8], index: 3, kind: input, shape index: {}]
  %s4 = inlined_call_operand.vmem [shape: f32[8,1], index: 4, kind: input, shape index: {}]
  %s5 = inlined_call_operand.hbm [shape: f32[2,8,256], index: 5, kind: output, shape index: {}]
  %s6 = sld [smem:[#allocation0]]
  $region53: #{tpu_custom_call.1} parent=0
    _
  %s8 = ssub.s32 1, %s6
  %s9 = scalar_select 0, %s8, %s6
  $region1: #{tpu_custom_call.1} parent=0
    #allocation2 [shape = 'u8[16384]{0}', space=vmem, size = 0x4000, scoped, tag = 'output window, operand 0']
    #allocation3 [shape = 's32[2]{0}', space=sflag, size = 0x8, scoped, tag = 'scoped memory for tpu_custom_call.1']
    %10 = vsyncpa [#allocation3], 0
    %s11 = scalar_lea.sflag [#allocation3], 1
    %12 = vsyncpa %s11, 0
    loop: start=0, step=1, limit=4
    $region2: #{tpu_custom_call.1} parent=1 // loop_pre_header
      _
    $region3: #{tpu_custom_call.1} parent=1 // loop_header
      %s14 = sphi 0, %s18
      %p15 = scmp.ge.s32.totalorder %s14, 4
      %s24 = sphi 0, %s26
      %s27 = sphi 0, %s24
      %s28 = sphi 0, %s27
      %s44 = sphi 0, %s28
      %s48 = sphi 0, %s48
      %s50 = sphi 0, %s48
      %s51 = sphi 0, %s50
      %s65 = sphi 0, %s51
      %s69 = sphi 0, %s69
      %s71 = sphi 0, %s69
      %s72 = sphi 0, %s71
      %s86 = sphi 0, %s72
      %s90 = sphi 0, %s90
      %s92 = sphi 0, %s90
      %s93 = sphi 0, %s92
      %s107 = sphi 0, %s93
      %s111 = sphi 0, %s111
      %s113 = sphi 0, %s111
      %s114 = sphi 0, %s113
      %s128 = sphi 0, %s114
      %s134 = sphi 0, %s136
      %s137 = sphi 0, %s134
      %s138 = sphi 0, %s137
      %s154 = sphi 0, %s138
    $region4: #{tpu_custom_call.1} parent=1 // loop_header_branch
      %17 = sbr.rel (%p15) target = $region8
    $region5: #{tpu_custom_call.1} parent=1 // loop_body
      %s19 = ssub.s32 %s14, 1
      %s20 = ssub.s32 %s14, 2
      %s21 = sadd.s32 %s14, 1
      %s22 = ssub.s32 %s14, %s21
      %p23 = scmp.eq.s32.totalorder %s22, 0
      %s25 = sadd.s32 %s24, 1
      %s26 = scalar_select %p23, %s24, %s25
      %p29 = pneg %p23
      %p30 = scmp.eq.s32.totalorder %s14, 1
      %p31 = por %p29, %p30
      %p32 = scmp.ne.s32.totalorder %s24, %s27
      %p33 = scmp.eq.s32.totalorder %s14, 0
      %p34 = por %p32, %p33
      %p35 = scmp.ne.s32.totalorder %s24, %s27
      %p36 = scmp.eq.s32.totalorder %s19, 1
      %p37 = por %p35, %p36
      %p38 = scmp.ne.s32.totalorder %s27, %s28
      %p39 = scmp.eq.s32.totalorder %s19, 0
      %p40 = por %p38, %p39
      %p41 = scmp.ne.s32.totalorder %s27, %s28
      %p42 = scmp.eq.s32.totalorder %s20, 1
      %p43 = por %p41, %p42
      %p45 = scmp.ne.s32.totalorder %s28, %s44
      %p46 = scmp.eq.s32.totalorder %s20, 0
      %p47 = por %p45, %p46
      %s49 = sadd.s32 %s48, 1
      %p52 = scmp.eq.s32.totalorder %s14, 1
      %p53 = scmp.ne.s32.totalorder %s48, %s50
      %p54 = scmp.eq.s32.totalorder %s14, 0
      %p55 = por %p53, %p54
      %p56 = scmp.ne.s32.totalorder %s48, %s50
      %p57 = scmp.eq.s32.totalorder %s19, 1
      %p58 = por %p56, %p57
      %p59 = scmp.ne.s32.totalorder %s50, %s51
      %p60 = scmp.eq.s32.totalorder %s19, 0
      %p61 = por %p59, %p60
      %p62 = scmp.ne.s32.totalorder %s50, %s51
      %p63 = scmp.eq.s32.totalorder %s20, 1
      %p64 = por %p62, %p63
      %p66 = scmp.ne.s32.totalorder %s51, %s65
      %p67 = scmp.eq.s32.totalorder %s20, 0
      %p68 = por %p66, %p67
      %s70 = sadd.s32 %s69, 1
      %p73 = scmp.eq.s32.totalorder %s14, 1
      %p74 = scmp.ne.s32.totalorder %s69, %s71
      %p75 = scmp.eq.s32.totalorder %s14, 0
      %p76 = por %p74, %p75
      %p77 = scmp.ne.s32.totalorder %s69, %s71
      %p78 = scmp.eq.s32.totalorder %s19, 1
      %p79 = por %p77, %p78
      %p80 = scmp.ne.s32.totalorder %s71, %s72
      %p81 = scmp.eq.s32.totalorder %s19, 0
      %p82 = por %p80, %p81
      %p83 = scmp.ne.s32.totalorder %s71, %s72
      %p84 = scmp.eq.s32.totalorder %s20, 1
      %p85 = por %p83, %p84
      %p87 = scmp.ne.s32.totalorder %s72, %s86
      %p88 = scmp.eq.s32.totalorder %s20, 0
      %p89 = por %p87, %p88
      %s91 = sadd.s32 %s90, 1
      %p94 = scmp.eq.s32.totalorder %s14, 1
      %p95 = scmp.ne.s32.totalorder %s90, %s92
      %p96 = scmp.eq.s32.totalorder %s14, 0
      %p97 = por %p95, %p96
      %p98 = scmp.ne.s32.totalorder %s90, %s92
      %p99 = scmp.eq.s32.totalorder %s19, 1
      %p100 = por %p98, %p99
      %p101 = scmp.ne.s32.totalorder %s92, %s93
      %p102 = scmp.eq.s32.totalorder %s19, 0
      %p103 = por %p101, %p102
      %p104 = scmp.ne.s32.totalorder %s92, %s93
      %p105 = scmp.eq.s32.totalorder %s20, 1
      %p106 = por %p104, %p105
      %p108 = scmp.ne.s32.totalorder %s93, %s107
      %p109 = scmp.eq.s32.totalorder %s20, 0
      %p110 = por %p108, %p109
      %s112 = sadd.s32 %s111, 1
      %p115 = scmp.eq.s32.totalorder %s14, 1
      %p116 = scmp.ne.s32.totalorder %s111, %s113
      %p117 = scmp.eq.s32.totalorder %s14, 0
      %p118 = por %p116, %p117
      %p119 = scmp.ne.s32.totalorder %s111, %s113
      %p120 = scmp.eq.s32.totalorder %s19, 1
      %p121 = por %p119, %p120
      %p122 = scmp.ne.s32.totalorder %s113, %s114
      %p123 = scmp.eq.s32.totalorder %s19, 0
      %p124 = por %p122, %p123
      %p125 = scmp.ne.s32.totalorder %s113, %s114
      %p126 = scmp.eq.s32.totalorder %s20, 1
      %p127 = por %p125, %p126
      %p129 = scmp.ne.s32.totalorder %s114, %s128
      %p130 = scmp.eq.s32.totalorder %s20, 0
      %p131 = por %p129, %p130
      %s132 = ssub.s32 %s14, %s21
      %p133 = scmp.eq.s32.totalorder %s132, 0
      %s135 = sadd.s32 %s134, 1
      %s136 = scalar_select %p133, %s134, %s135
      %p139 = pneg %p133
      %p140 = scmp.eq.s32.totalorder %s14, 1
      %p141 = por %p139, %p140
      %p142 = scmp.ne.s32.totalorder %s134, %s137
      %p143 = scmp.eq.s32.totalorder %s14, 0
      %p144 = por %p142, %p143
      %p145 = scmp.ne.s32.totalorder %s134, %s137
      %p146 = scmp.eq.s32.totalorder %s19, 1
      %p147 = por %p145, %p146
      %p148 = scmp.ne.s32.totalorder %s137, %s138
      %p149 = scmp.eq.s32.totalorder %s19, 0
      %p150 = por %p148, %p149
      %p151 = scmp.ne.s32.totalorder %s137, %s138
      %p152 = scmp.eq.s32.totalorder %s20, 1
      %p153 = por %p151, %p152
      %p155 = scmp.ne.s32.totalorder %s138, %s154
      %p156 = scmp.eq.s32.totalorder %s20, 0
      %p157 = por %p155, %p156
      %p158 = scmp.le.s32.totalorder 1, %s14
      %p159 = scmp.lt.s32.totalorder %s14, 3
      %p160 = pnand %p158, %p159
      %p161 = pneg %p160
      // Predicated region
      $region9: #{tpu_custom_call.1} parent=5 // pred_check
        _
      $region10: #{tpu_custom_call.1} parent=5 // pred_check_branch
        %163 = sbr.rel (%p160) target = $region12
      $region11: #{tpu_custom_call.1} parent=5 // pred_region
        %s164 = ssub.s32 %s14, 1
        // Predicated region
        $region13: #{tpu_custom_call.1} parent=11 // pred_check
          %p165 = pneg %p61
        $region14: #{tpu_custom_call.1} parent=11 // pred_check_branch
          %167 = sbr.rel (%p165) target = $region16
        $region15: #{tpu_custom_call.1} parent=11 // pred_region
          _
        $region16: #{tpu_custom_call.1} parent=11 // pred_fallthru
          _
        // Predicated region
        $region17: #{tpu_custom_call.1} parent=11 // pred_check
          %p168 = pneg %p82
        $region18: #{tpu_custom_call.1} parent=11 // pred_check_branch
          %170 = sbr.rel (%p168) target = $region20
        $region19: #{tpu_custom_call.1} parent=11 // pred_region
          _
        $region20: #{tpu_custom_call.1} parent=11 // pred_fallthru
          _
        // Predicated region
        $region21: #{tpu_custom_call.1} parent=11 // pred_check
          %p171 = pneg %p103
        $region22: #{tpu_custom_call.1} parent=11 // pred_check_branch
          %173 = sbr.rel (%p171) target = $region24
        $region23: #{tpu_custom_call.1} parent=11 // pred_region
          _
        $region24: #{tpu_custom_call.1} parent=11 // pred_fallthru
          _
        // Predicated region
        $region25: #{tpu_custom_call.1} parent=11 // pred_check
          %p174 = pneg %p124
        $region26: #{tpu_custom_call.1} parent=11 // pred_check_branch
          %176 = sbr.rel (%p174) target = $region28
        $region27: #{tpu_custom_call.1} parent=11 // pred_region
          _
        $region28: #{tpu_custom_call.1} parent=11 // pred_fallthru
          _
      $region12: #{tpu_custom_call.1} parent=5 // pred_fallthru
        _
      %p177 = scmp.lt.s32.totalorder %s14, 2
      // Predicated region
      $region29: #{tpu_custom_call.1} parent=5 // pred_check
        %p178 = pneg %p177
      $region30: #{tpu_custom_call.1} parent=5 // pred_check_branch
        %180 = sbr.rel (%p178) target = $region32
      $region31: #{tpu_custom_call.1} parent=5 // pred_region
        // Predicated region
        $region33: #{tpu_custom_call.1} parent=31 // pred_check
          %p181 = pneg %p34
        $region34: #{tpu_custom_call.1} parent=31 // pred_check_branch
          %183 = sbr.rel (%p181) target = $region36
        $region35: #{tpu_custom_call.1} parent=31 // pred_region
          %p184 = scmp.lt.s32.totalorder %s14, 1
          %s185 = scalar_select %p184, %s14, 1
          %s186 = smul.addr %s185, 2
          %s187 = smul.addr %s186, 4
          %s188 = scalar_lea.vmem %s0, %s187
        $region36: #{tpu_custom_call.1} parent=31 // pred_fallthru
          _
      $region32: #{tpu_custom_call.1} parent=5 // pred_fallthru
        _
      %p189 = scmp.le.s32.totalorder 1, %s14
      %p190 = scmp.lt.s32.totalorder %s14, 3
      %p191 = pnand %p189, %p190
      %p192 = pneg %p191
      // Predicated region
      $region37: #{tpu_custom_call.1} parent=5 // pred_check
        _
      $region38: #{tpu_custom_call.1} parent=5 // pred_check_branch
        %194 = sbr.rel (%p191) target = $region40
      $region39: #{tpu_custom_call.1} parent=5 // pred_region
        %s195 = ssub.s32 %s14, 1
        %p196 = scmp.lt.s32.totalorder %s19, 1
        %s197 = scalar_select %p196, %s19, 1
        %s198 = smul.addr %s197, 2
        %s199 = smul.addr %s198, 4
        %s200 = scalar_lea.vmem %s0, %s199
        %p201 = pneg %p40
        %p202 = pneg %p37
        %p203 = pneg %p61
        %p204 = pneg %p58
        %p205 = pneg %p82
        %p206 = pneg %p79
        %p207 = pneg %p103
        %p208 = pneg %p100
        %p209 = pneg %p124
        %p210 = pneg %p121
        %p211 = pneg %p150
        %p212 = pneg %p147
        %s213 = sand.u32 %s137, 1
        %s214 = scalar_lea.sflag [#allocation3], %s213
        %s215 = sand.u32 %s137, 1
        %s216 = smul.addr %s215, 16
        %s217 = scalar_lea.vmem [#allocation2], %s216
        %p218 = scmp.lt.s32.totalorder %s19, 1
        %s219 = scalar_select %p218, %s19, 1
        %s220 = smul.addr %s219, 2
        %s221 = smul.addr %s220, 4
        %s222 = scalar_lea.vmem %s0, %s221
        %v223 = vlaneseq
        %v224 = vand.u32 %v223, 127
        %v225 = vadd.s32 %v224, 128
        %v226 = vand.u32 %v224, 15
        %v227 = vand.u32 %v225, 15
        %vm228 = vcmp.ge.s32.totalorder %v224, 16
        %vm229 = vcmp.ge.s32.totalorder %v225, 16
        %vm230 = vcmp.lt.s32.totalorder %v224, 240
        %vm231 = vcmp.lt.s32.totalorder %v225, 240
        %vm232 = vcmp.ge.s32.totalorder %v226, 1
        %vm233 = vcmp.ge.s32.totalorder %v227, 1
        %vm234 = vcmp.lt.s32.totalorder %v226, 15
        %vm235 = vcmp.lt.s32.totalorder %v227, 15
        %v236 = vld [vmem:[%s222] sm:$0xff]
        %v238 = vcombine.high %v236, %v236
        %240 = vrot.lane.b32.xlu0 %v236, 17
        %v241 = vpop.permute.xlu0 %240
        %242 = vrot.lane.b32.xlu0 %v238, 17
        %v243 = vpop.permute.xlu0 %242
        %vm244 = vcmp.lt.s32.totalorder %v224, 17
        %v245 = vsel %vm244, %v241, %v243
        %v246 = vsel %vm244, %v243, %v241
        %vm247 = vmand %vm228, %vm232
        %vm248 = vmand %vm229, %vm233
        %v249 = vsel %vm247, 1, 0
        %v250 = vsel %vm248, 1, 0
        %vm251 = vcmp.eq.s32.totalorder %v249, 1
        %vm252 = vcmp.eq.s32.totalorder %v250, 1
        %v253 = vsel %vm251, %v246, 0.0
        %v254 = vsel %vm252, %v245, 0.0
        %v255 = vld [vmem:[%s1] sm:$0xff]
        %257 = vset.pattern.permute.xlu0 0
        %258 = vperm.xlu0 %257, %v255
        %v259 = vpop.permute.xlu0 %258
        %v261 = vlaneseq
        %v262 = vshrl.u32 %v261, 7
        %v263 = vsub.s32 0, %v262
        %v264 = vrot.slane %v253, %v263
        %v265 = vlaneseq
        %v266 = vshrl.u32 %v265, 7
        %v267 = vsub.s32 0, %v266
        %v268 = vrot.slane %v254, %v267
        %v269 = vmul.f32 %v259, %v264
        %v270 = vmul.f32 %v259, %v268
        %v271 = vadd.f32 %v269, 0.0
        %v272 = vadd.f32 %v270, 0.0
        %273 = vset.pattern.permute.xlu0 1
        %274 = vperm.xlu0 %273, %v255
        %v275 = vpop.permute.xlu0 %274
        %v277 = vlaneseq
        %v278 = vshrl.u32 %v277, 7
        %v279 = vsub.s32 1, %v278
        %v280 = vrot.slane %v253, %v279
        %v281 = vlaneseq
        %v282 = vshrl.u32 %v281, 7
        %v283 = vsub.s32 1, %v282
        %v284 = vrot.slane %v254, %v283
        %v285 = vmul.f32 %v275, %v280
        %v286 = vmul.f32 %v275, %v284
        %v287 = vadd.f32 %v271, %v285
        %v288 = vadd.f32 %v272, %v286
        %289 = vset.pattern.permute.xlu0 2
        %290 = vperm.xlu0 %289, %v255
        %v291 = vpop.permute.xlu0 %290
        %v293 = vlaneseq
        %v294 = vshrl.u32 %v293, 7
        %v295 = vsub.s32 2, %v294
        %v296 = vrot.slane %v253, %v295
        %v297 = vlaneseq
        %v298 = vshrl.u32 %v297, 7
        %v299 = vsub.s32 2, %v298
        %v300 = vrot.slane %v254, %v299
        %v301 = vmul.f32 %v291, %v296
        %v302 = vmul.f32 %v291, %v300
        %v303 = vadd.f32 %v287, %v301
        %v304 = vadd.f32 %v288, %v302
        %305 = vset.pattern.permute.xlu0 3
        %306 = vperm.xlu0 %305, %v255
        %v307 = vpop.permute.xlu0 %306
        %v309 = vlaneseq
        %v310 = vshrl.u32 %v309, 7
        %v311 = vsub.s32 3, %v310
        %v312 = vrot.slane %v253, %v311
        %v313 = vlaneseq
        %v314 = vshrl.u32 %v313, 7
        %v315 = vsub.s32 3, %v314
        %v316 = vrot.slane %v254, %v315
        %v317 = vmul.f32 %v307, %v312
        %v318 = vmul.f32 %v307, %v316
        %v319 = vadd.f32 %v303, %v317
        %v320 = vadd.f32 %v304, %v318
        %321 = vrot.lane.b32.xlu0 %v236, 16
        %v322 = vpop.permute.xlu0 %321
        %323 = vrot.lane.b32.xlu0 %v238, 16
        %v324 = vpop.permute.xlu0 %323
        %vm325 = vcmp.lt.s32.totalorder %v224, 16
        %v326 = vsel %vm325, %v322, %v324
        %v327 = vsel %vm325, %v324, %v322
        %v328 = vsel %vm228, 1, 0
        %v329 = vsel %vm229, 1, 0
        %vm330 = vcmp.eq.s32.totalorder %v328, 1
        %vm331 = vcmp.eq.s32.totalorder %v329, 1
        %v332 = vsel %vm330, %v327, 0.0
        %v333 = vsel %vm331, %v326, 0.0
        %s334 = scalar_lea.vmem %s1, 8
        %v335 = vld [vmem:[%s334] sm:$0xff]
        %337 = vset.pattern.permute.xlu0 0
        %338 = vperm.xlu0 %337, %v335
        %v339 = vpop.permute.xlu0 %338
        %v341 = vlaneseq
        %v342 = vshrl.u32 %v341, 7
        %v343 = vsub.s32 0, %v342
        %v344 = vrot.slane %v332, %v343
        %v345 = vlaneseq
        %v346 = vshrl.u32 %v345, 7
        %v347 = vsub.s32 0, %v346
        %v348 = vrot.slane %v333, %v347
        %v349 = vmul.f32 %v339, %v344
        %v350 = vmul.f32 %v339, %v348
        %v351 = vadd.f32 %v319, %v349
        %v352 = vadd.f32 %v320, %v350
        %353 = vset.pattern.permute.xlu0 1
        %354 = vperm.xlu0 %353, %v335
        %v355 = vpop.permute.xlu0 %354
        %v357 = vlaneseq
        %v358 = vshrl.u32 %v357, 7
        %v359 = vsub.s32 1, %v358
        %v360 = vrot.slane %v332, %v359
        %v361 = vlaneseq
        %v362 = vshrl.u32 %v361, 7
        %v363 = vsub.s32 1, %v362
        %v364 = vrot.slane %v333, %v363
        %v365 = vmul.f32 %v355, %v360
        %v366 = vmul.f32 %v355, %v364
        %v367 = vadd.f32 %v351, %v365
        %v368 = vadd.f32 %v352, %v366
        %369 = vset.pattern.permute.xlu0 2
        %370 = vperm.xlu0 %369, %v335
        %v371 = vpop.permute.xlu0 %370
        %v373 = vlaneseq
        %v374 = vshrl.u32 %v373, 7
        %v375 = vsub.s32 2, %v374
        %v376 = vrot.slane %v332, %v375
        %v377 = vlaneseq
        %v378 = vshrl.u32 %v377, 7
        %v379 = vsub.s32 2, %v378
        %v380 = vrot.slane %v333, %v379
        %v381 = vmul.f32 %v371, %v376
        %v382 = vmul.f32 %v371, %v380
        %v383 = vadd.f32 %v367, %v381
        %v384 = vadd.f32 %v368, %v382
        %385 = vset.pattern.permute.xlu0 3
        %386 = vperm.xlu0 %385, %v335
        %v387 = vpop.permute.xlu0 %386
        %v389 = vlaneseq
        %v390 = vshrl.u32 %v389, 7
        %v391 = vsub.s32 3, %v390
        %v392 = vrot.slane %v332, %v391
        %v393 = vlaneseq
        %v394 = vshrl.u32 %v393, 7
        %v395 = vsub.s32 3, %v394
        %v396 = vrot.slane %v333, %v395
        %v397 = vmul.f32 %v387, %v392
        %v398 = vmul.f32 %v387, %v396
        %v399 = vadd.f32 %v383, %v397
        %v400 = vadd.f32 %v384, %v398
        %401 = vrot.lane.b32.xlu0 %v236, 15
        %v402 = vpop.permute.xlu0 %401
        %403 = vrot.lane.b32.xlu0 %v238, 15
        %v404 = vpop.permute.xlu0 %403
        %vm405 = vcmp.lt.s32.totalorder %v224, 15
        %v406 = vsel %vm405, %v402, %v404
        %v407 = vsel %vm405, %v404, %v402
        %vm408 = vmand %vm228, %vm234
        %vm409 = vmand %vm229, %vm235
        %v410 = vsel %vm408, 1, 0
        %v411 = vsel %vm409, 1, 0
        %vm412 = vcmp.eq.s32.totalorder %v410, 1
        %vm413 = vcmp.eq.s32.totalorder %v411, 1
        %v414 = vsel %vm412, %v407, 0.0
        %v415 = vsel %vm413, %v406, 0.0
        %s416 = scalar_lea.vmem %s1, 16
        %v417 = vld [vmem:[%s416] sm:$0xff]
        %419 = vset.pattern.permute.xlu0 0
        %420 = vperm.xlu0 %419, %v417
        %v421 = vpop.permute.xlu0 %420
        %v423 = vlaneseq
        %v424 = vshrl.u32 %v423, 7
        %v425 = vsub.s32 0, %v424
        %v426 = vrot.slane %v414, %v425
        %v427 = vlaneseq
        %v428 = vshrl.u32 %v427, 7
        %v429 = vsub.s32 0, %v428
        %v430 = vrot.slane %v415, %v429
        %v431 = vmul.f32 %v421, %v426
        %v432 = vmul.f32 %v421, %v430
        %v433 = vadd.f32 %v399, %v431
        %v434 = vadd.f32 %v400, %v432
        %435 = vset.pattern.permute.xlu0 1
        %436 = vperm.xlu0 %435, %v417
        %v437 = vpop.permute.xlu0 %436
        %v439 = vlaneseq
        %v440 = vshrl.u32 %v439, 7
        %v441 = vsub.s32 1, %v440
        %v442 = vrot.slane %v414, %v441
        %v443 = vlaneseq
        %v444 = vshrl.u32 %v443, 7
        %v445 = vsub.s32 1, %v444
        %v446 = vrot.slane %v415, %v445
        %v447 = vmul.f32 %v437, %v442
        %v448 = vmul.f32 %v437, %v446
        %v449 = vadd.f32 %v433, %v447
        %v450 = vadd.f32 %v434, %v448
        %451 = vset.pattern.permute.xlu0 2
        %452 = vperm.xlu0 %451, %v417
        %v453 = vpop.permute.xlu0 %452
        %v455 = vlaneseq
        %v456 = vshrl.u32 %v455, 7
        %v457 = vsub.s32 2, %v456
        %v458 = vrot.slane %v414, %v457
        %v459 = vlaneseq
        %v460 = vshrl.u32 %v459, 7
        %v461 = vsub.s32 2, %v460
        %v462 = vrot.slane %v415, %v461
        %v463 = vmul.f32 %v453, %v458
        %v464 = vmul.f32 %v453, %v462
        %v465 = vadd.f32 %v449, %v463
        %v466 = vadd.f32 %v450, %v464
        %467 = vset.pattern.permute.xlu0 3
        %468 = vperm.xlu0 %467, %v417
        %v469 = vpop.permute.xlu0 %468
        %v471 = vlaneseq
        %v472 = vshrl.u32 %v471, 7
        %v473 = vsub.s32 3, %v472
        %v474 = vrot.slane %v414, %v473
        %v475 = vlaneseq
        %v476 = vshrl.u32 %v475, 7
        %v477 = vsub.s32 3, %v476
        %v478 = vrot.slane %v415, %v477
        %v479 = vmul.f32 %v469, %v474
        %v480 = vmul.f32 %v469, %v478
        %v481 = vadd.f32 %v465, %v479
        %v482 = vadd.f32 %v466, %v480
        %483 = vrot.lane.b32.xlu0 %v236, 1
        %v484 = vpop.permute.xlu0 %483
        %485 = vrot.lane.b32.xlu0 %v238, 1
        %v486 = vpop.permute.xlu0 %485
        %vm487 = vcmp.lt.s32.totalorder %v224, 1
        %v488 = vsel %vm487, %v484, %v486
        %v489 = vsel %vm487, %v486, %v484
        %v490 = vsel %vm232, 1, 0
        %v491 = vsel %vm233, 1, 0
        %vm492 = vcmp.eq.s32.totalorder %v490, 1
        %vm493 = vcmp.eq.s32.totalorder %v491, 1
        %v494 = vsel %vm492, %v489, 0.0
        %v495 = vsel %vm493, %v488, 0.0
        %s496 = scalar_lea.vmem %s1, 24
        %v497 = vld [vmem:[%s496] sm:$0xff]
        %499 = vset.pattern.permute.xlu0 0
        %500 = vperm.xlu0 %499, %v497
        %v501 = vpop.permute.xlu0 %500
        %v503 = vlaneseq
        %v504 = vshrl.u32 %v503, 7
        %v505 = vsub.s32 0, %v504
        %v506 = vrot.slane %v494, %v505
        %v507 = vlaneseq
        %v508 = vshrl.u32 %v507, 7
        %v509 = vsub.s32 0, %v508
        %v510 = vrot.slane %v495, %v509
        %v511 = vmul.f32 %v501, %v506
        %v512 = vmul.f32 %v501, %v510
        %v513 = vadd.f32 %v481, %v511
        %v514 = vadd.f32 %v482, %v512
        %515 = vset.pattern.permute.xlu0 1
        %516 = vperm.xlu0 %515, %v497
        %v517 = vpop.permute.xlu0 %516
        %v519 = vlaneseq
        %v520 = vshrl.u32 %v519, 7
        %v521 = vsub.s32 1, %v520
        %v522 = vrot.slane %v494, %v521
        %v523 = vlaneseq
        %v524 = vshrl.u32 %v523, 7
        %v525 = vsub.s32 1, %v524
        %v526 = vrot.slane %v495, %v525
        %v527 = vmul.f32 %v517, %v522
        %v528 = vmul.f32 %v517, %v526
        %v529 = vadd.f32 %v513, %v527
        %v530 = vadd.f32 %v514, %v528
        %531 = vset.pattern.permute.xlu0 2
        %532 = vperm.xlu0 %531, %v497
        %v533 = vpop.permute.xlu0 %532
        %v535 = vlaneseq
        %v536 = vshrl.u32 %v535, 7
        %v537 = vsub.s32 2, %v536
        %v538 = vrot.slane %v494, %v537
        %v539 = vlaneseq
        %v540 = vshrl.u32 %v539, 7
        %v541 = vsub.s32 2, %v540
        %v542 = vrot.slane %v495, %v541
        %v543 = vmul.f32 %v533, %v538
        %v544 = vmul.f32 %v533, %v542
        %v545 = vadd.f32 %v529, %v543
        %v546 = vadd.f32 %v530, %v544
        %547 = vset.pattern.permute.xlu0 3
        %548 = vperm.xlu0 %547, %v497
        %v549 = vpop.permute.xlu0 %548
        %v551 = vlaneseq
        %v552 = vshrl.u32 %v551, 7
        %v553 = vsub.s32 3, %v552
        %v554 = vrot.slane %v494, %v553
        %v555 = vlaneseq
        %v556 = vshrl.u32 %v555, 7
        %v557 = vsub.s32 3, %v556
        %v558 = vrot.slane %v495, %v557
        %v559 = vmul.f32 %v549, %v554
        %v560 = vmul.f32 %v549, %v558
        %v561 = vadd.f32 %v545, %v559
        %v562 = vadd.f32 %v546, %v560
        %s563 = scalar_lea.vmem %s1, 32
        %v564 = vld [vmem:[%s563] sm:$0xff]
        %566 = vset.pattern.permute.xlu0 0
        %567 = vperm.xlu0 %566, %v564
        %v568 = vpop.permute.xlu0 %567
        %v570 = vlaneseq
        %v571 = vshrl.u32 %v570, 7
        %v572 = vsub.s32 0, %v571
        %v573 = vrot.slane %v236, %v572
        %v574 = vlaneseq
        %v575 = vshrl.u32 %v574, 7
        %v576 = vsub.s32 4, %v575
        %v577 = vrot.slane %v236, %v576
        %v580 = vlaneseq
        %v581 = vshrl.u32 %v580, 7
        %v582 = vsub.s32 0, %v581
        %v583 = vrot.slane %v573, %v582
        %v584 = vlaneseq
        %v585 = vshrl.u32 %v584, 7
        %v586 = vsub.s32 0, %v585
        %v587 = vrot.slane %v577, %v586
        %v588 = vmul.f32 %v568, %v583
        %v589 = vmul.f32 %v568, %v587
        %v590 = vadd.f32 %v561, %v588
        %v591 = vadd.f32 %v562, %v589
        %592 = vset.pattern.permute.xlu0 1
        %593 = vperm.xlu0 %592, %v564
        %v594 = vpop.permute.xlu0 %593
        %v596 = vlaneseq
        %v597 = vshrl.u32 %v596, 7
        %v598 = vsub.s32 1, %v597
        %v599 = vrot.slane %v236, %v598
        %v600 = vlaneseq
        %v601 = vshrl.u32 %v600, 7
        %v602 = vsub.s32 5, %v601
        %v603 = vrot.slane %v236, %v602
        %v606 = vlaneseq
        %v607 = vshrl.u32 %v606, 7
        %v608 = vsub.s32 1, %v607
        %v609 = vrot.slane %v599, %v608
        %v610 = vlaneseq
        %v611 = vshrl.u32 %v610, 7
        %v612 = vsub.s32 1, %v611
        %v613 = vrot.slane %v603, %v612
        %v614 = vmul.f32 %v594, %v609
        %v615 = vmul.f32 %v594, %v613
        %v616 = vadd.f32 %v590, %v614
        %v617 = vadd.f32 %v591, %v615
        %618 = vset.pattern.permute.xlu0 2
        %619 = vperm.xlu0 %618, %v564
        %v620 = vpop.permute.xlu0 %619
        %v622 = vlaneseq
        %v623 = vshrl.u32 %v622, 7
        %v624 = vsub.s32 2, %v623
        %v625 = vrot.slane %v236, %v624
        %v626 = vlaneseq
        %v627 = vshrl.u32 %v626, 7
        %v628 = vsub.s32 6, %v627
        %v629 = vrot.slane %v236, %v628
        %v632 = vlaneseq
        %v633 = vshrl.u32 %v632, 7
        %v634 = vsub.s32 2, %v633
        %v635 = vrot.slane %v625, %v634
        %v636 = vlaneseq
        %v637 = vshrl.u32 %v636, 7
        %v638 = vsub.s32 2, %v637
        %v639 = vrot.slane %v629, %v638
        %v640 = vmul.f32 %v620, %v635
        %v641 = vmul.f32 %v620, %v639
        %v642 = vadd.f32 %v616, %v640
        %v643 = vadd.f32 %v617, %v641
        %644 = vset.pattern.permute.xlu0 3
        %645 = vperm.xlu0 %644, %v564
        %v646 = vpop.permute.xlu0 %645
        %v648 = vlaneseq
        %v649 = vshrl.u32 %v648, 7
        %v650 = vsub.s32 3, %v649
        %v651 = vrot.slane %v236, %v650
        %v652 = vlaneseq
        %v653 = vshrl.u32 %v652, 7
        %v654 = vsub.s32 7, %v653
        %v655 = vrot.slane %v236, %v654
        %v658 = vlaneseq
        %v659 = vshrl.u32 %v658, 7
        %v660 = vsub.s32 3, %v659
        %v661 = vrot.slane %v651, %v660
        %v662 = vlaneseq
        %v663 = vshrl.u32 %v662, 7
        %v664 = vsub.s32 3, %v663
        %v665 = vrot.slane %v655, %v664
        %v666 = vmul.f32 %v646, %v661
        %v667 = vmul.f32 %v646, %v665
        %v668 = vadd.f32 %v642, %v666
        %v669 = vadd.f32 %v643, %v667
        %670 = vrot.lane.b32.xlu0 %v236, 127
        %v671 = vpop.permute.xlu0 %670
        %672 = vrot.lane.b32.xlu0 %v238, 127
        %v673 = vpop.permute.xlu0 %672
        %vm674 = vcmp.lt.s32.totalorder %v224, 127
        %v675 = vsel %vm674, %v671, %v673
        %v676 = vsel %vm674, %v673, %v671
        %v677 = vsel %vm234, 1, 0
        %v678 = vsel %vm235, 1, 0
        %vm679 = vcmp.eq.s32.totalorder %v677, 1
        %vm680 = vcmp.eq.s32.totalorder %v678, 1
        %v681 = vsel %vm679, %v675, 0.0
        %v682 = vsel %vm680, %v676, 0.0
        %s683 = scalar_lea.vmem %s1, 40
        %v684 = vld [vmem:[%s683] sm:$0xff]
        %686 = vset.pattern.permute.xlu0 0
        %687 = vperm.xlu0 %686, %v684
        %v688 = vpop.permute.xlu0 %687
        %v690 = vlaneseq
        %v691 = vshrl.u32 %v690, 7
        %v692 = vsub.s32 0, %v691
        %v693 = vrot.slane %v681, %v692
        %v694 = vlaneseq
        %v695 = vshrl.u32 %v694, 7
        %v696 = vsub.s32 0, %v695
        %v697 = vrot.slane %v682, %v696
        %v698 = vmul.f32 %v688, %v693
        %v699 = vmul.f32 %v688, %v697
        %v700 = vadd.f32 %v668, %v698
        %v701 = vadd.f32 %v669, %v699
        %702 = vset.pattern.permute.xlu0 1
        %703 = vperm.xlu0 %702, %v684
        %v704 = vpop.permute.xlu0 %703
        %v706 = vlaneseq
        %v707 = vshrl.u32 %v706, 7
        %v708 = vsub.s32 1, %v707
        %v709 = vrot.slane %v681, %v708
        %v710 = vlaneseq
        %v711 = vshrl.u32 %v710, 7
        %v712 = vsub.s32 1, %v711
        %v713 = vrot.slane %v682, %v712
        %v714 = vmul.f32 %v704, %v709
        %v715 = vmul.f32 %v704, %v713
        %v716 = vadd.f32 %v700, %v714
        %v717 = vadd.f32 %v701, %v715
        %718 = vset.pattern.permute.xlu0 2
        %719 = vperm.xlu0 %718, %v684
        %v720 = vpop.permute.xlu0 %719
        %v722 = vlaneseq
        %v723 = vshrl.u32 %v722, 7
        %v724 = vsub.s32 2, %v723
        %v725 = vrot.slane %v681, %v724
        %v726 = vlaneseq
        %v727 = vshrl.u32 %v726, 7
        %v728 = vsub.s32 2, %v727
        %v729 = vrot.slane %v682, %v728
        %v730 = vmul.f32 %v720, %v725
        %v731 = vmul.f32 %v720, %v729
        %v732 = vadd.f32 %v716, %v730
        %v733 = vadd.f32 %v717, %v731
        %734 = vset.pattern.permute.xlu0 3
        %735 = vperm.xlu0 %734, %v684
        %v736 = vpop.permute.xlu0 %735
        %v738 = vlaneseq
        %v739 = vshrl.u32 %v738, 7
        %v740 = vsub.s32 3, %v739
        %v741 = vrot.slane %v681, %v740
        %v742 = vlaneseq
        %v743 = vshrl.u32 %v742, 7
        %v744 = vsub.s32 3, %v743
        %v745 = vrot.slane %v682, %v744
        %v746 = vmul.f32 %v736, %v741
        %v747 = vmul.f32 %v736, %v745
        %v748 = vadd.f32 %v732, %v746
        %v749 = vadd.f32 %v733, %v747
        %750 = vrot.lane.b32.xlu0 %v236, 113
        %v751 = vpop.permute.xlu0 %750
        %752 = vrot.lane.b32.xlu0 %v238, 113
        %v753 = vpop.permute.xlu0 %752
        %vm754 = vcmp.lt.s32.totalorder %v224, 113
        %v755 = vsel %vm754, %v751, %v753
        %v756 = vsel %vm754, %v753, %v751
        %vm757 = vmand %vm230, %vm232
        %vm758 = vmand %vm231, %vm233
        %v759 = vsel %vm757, 1, 0
        %v760 = vsel %vm758, 1, 0
        %vm761 = vcmp.eq.s32.totalorder %v759, 1
        %vm762 = vcmp.eq.s32.totalorder %v760, 1
        %v763 = vsel %vm761, %v755, 0.0
        %v764 = vsel %vm762, %v756, 0.0
        %s765 = scalar_lea.vmem %s1, 48
        %v766 = vld [vmem:[%s765] sm:$0xff]
        %768 = vset.pattern.permute.xlu0 0
        %769 = vperm.xlu0 %768, %v766
        %v770 = vpop.permute.xlu0 %769
        %v772 = vlaneseq
        %v773 = vshrl.u32 %v772, 7
        %v774 = vsub.s32 0, %v773
        %v775 = vrot.slane %v763, %v774
        %v776 = vlaneseq
        %v777 = vshrl.u32 %v776, 7
        %v778 = vsub.s32 0, %v777
        %v779 = vrot.slane %v764, %v778
        %v780 = vmul.f32 %v770, %v775
        %v781 = vmul.f32 %v770, %v779
        %v782 = vadd.f32 %v748, %v780
        %v783 = vadd.f32 %v749, %v781
        %784 = vset.pattern.permute.xlu0 1
        %785 = vperm.xlu0 %784, %v766
        %v786 = vpop.permute.xlu0 %785
        %v788 = vlaneseq
        %v789 = vshrl.u32 %v788, 7
        %v790 = vsub.s32 1, %v789
        %v791 = vrot.slane %v763, %v790
        %v792 = vlaneseq
        %v793 = vshrl.u32 %v792, 7
        %v794 = vsub.s32 1, %v793
        %v795 = vrot.slane %v764, %v794
        %v796 = vmul.f32 %v786, %v791
        %v797 = vmul.f32 %v786, %v795
        %v798 = vadd.f32 %v782, %v796
        %v799 = vadd.f32 %v783, %v797
        %800 = vset.pattern.permute.xlu0 2
        %801 = vperm.xlu0 %800, %v766
        %v802 = vpop.permute.xlu0 %801
        %v804 = vlaneseq
        %v805 = vshrl.u32 %v804, 7
        %v806 = vsub.s32 2, %v805
        %v807 = vrot.slane %v763, %v806
        %v808 = vlaneseq
        %v809 = vshrl.u32 %v808, 7
        %v810 = vsub.s32 2, %v809
        %v811 = vrot.slane %v764, %v810
        %v812 = vmul.f32 %v802, %v807
        %v813 = vmul.f32 %v802, %v811
        %v814 = vadd.f32 %v798, %v812
        %v815 = vadd.f32 %v799, %v813
        %816 = vset.pattern.permute.xlu0 3
        %817 = vperm.xlu0 %816, %v766
        %v818 = vpop.permute.xlu0 %817
        %v820 = vlaneseq
        %v821 = vshrl.u32 %v820, 7
        %v822 = vsub.s32 3, %v821
        %v823 = vrot.slane %v763, %v822
        %v824 = vlaneseq
        %v825 = vshrl.u32 %v824, 7
        %v826 = vsub.s32 3, %v825
        %v827 = vrot.slane %v764, %v826
        %v828 = vmul.f32 %v818, %v823
        %v829 = vmul.f32 %v818, %v827
        %v830 = vadd.f32 %v814, %v828
        %v831 = vadd.f32 %v815, %v829
        %832 = vrot.lane.b32.xlu0 %v236, 112
        %v833 = vpop.permute.xlu0 %832
        %834 = vrot.lane.b32.xlu0 %v238, 112
        %v835 = vpop.permute.xlu0 %834
        %vm836 = vcmp.lt.s32.totalorder %v224, 112
        %v837 = vsel %vm836, %v833, %v835
        %v838 = vsel %vm836, %v835, %v833
        %v839 = vsel %vm230, 1, 0
        %v840 = vsel %vm231, 1, 0
        %vm841 = vcmp.eq.s32.totalorder %v839, 1
        %vm842 = vcmp.eq.s32.totalorder %v840, 1
        %v843 = vsel %vm841, %v837, 0.0
        %v844 = vsel %vm842, %v838, 0.0
        %s845 = scalar_lea.vmem %s1, 56
        %v846 = vld [vmem:[%s845] sm:$0xff]
        %848 = vset.pattern.permute.xlu0 0
        %849 = vperm.xlu0 %848, %v846
        %v850 = vpop.permute.xlu0 %849
        %v852 = vlaneseq
        %v853 = vshrl.u32 %v852, 7
        %v854 = vsub.s32 0, %v853
        %v855 = vrot.slane %v843, %v854
        %v856 = vlaneseq
        %v857 = vshrl.u32 %v856, 7
        %v858 = vsub.s32 0, %v857
        %v859 = vrot.slane %v844, %v858
        %v860 = vmul.f32 %v850, %v855
        %v861 = vmul.f32 %v850, %v859
        %v862 = vadd.f32 %v830, %v860
        %v863 = vadd.f32 %v831, %v861
        %864 = vset.pattern.permute.xlu0 1
        %865 = vperm.xlu0 %864, %v846
        %v866 = vpop.permute.xlu0 %865
        %v868 = vlaneseq
        %v869 = vshrl.u32 %v868, 7
        %v870 = vsub.s32 1, %v869
        %v871 = vrot.slane %v843, %v870
        %v872 = vlaneseq
        %v873 = vshrl.u32 %v872, 7
        %v874 = vsub.s32 1, %v873
        %v875 = vrot.slane %v844, %v874
        %v876 = vmul.f32 %v866, %v871
        %v877 = vmul.f32 %v866, %v875
        %v878 = vadd.f32 %v862, %v876
        %v879 = vadd.f32 %v863, %v877
        %880 = vset.pattern.permute.xlu0 2
        %881 = vperm.xlu0 %880, %v846
        %v882 = vpop.permute.xlu0 %881
        %v884 = vlaneseq
        %v885 = vshrl.u32 %v884, 7
        %v886 = vsub.s32 2, %v885
        %v887 = vrot.slane %v843, %v886
        %v888 = vlaneseq
        %v889 = vshrl.u32 %v888, 7
        %v890 = vsub.s32 2, %v889
        %v891 = vrot.slane %v844, %v890
        %v892 = vmul.f32 %v882, %v887
        %v893 = vmul.f32 %v882, %v891
        %v894 = vadd.f32 %v878, %v892
        %v895 = vadd.f32 %v879, %v893
        %896 = vset.pattern.permute.xlu0 3
        %897 = vperm.xlu0 %896, %v846
        %v898 = vpop.permute.xlu0 %897
        %v900 = vlaneseq
        %v901 = vshrl.u32 %v900, 7
        %v902 = vsub.s32 3, %v901
        %v903 = vrot.slane %v843, %v902
        %v904 = vlaneseq
        %v905 = vshrl.u32 %v904, 7
        %v906 = vsub.s32 3, %v905
        %v907 = vrot.slane %v844, %v906
        %v908 = vmul.f32 %v898, %v903
        %v909 = vmul.f32 %v898, %v907
        %v910 = vadd.f32 %v894, %v908
        %v911 = vadd.f32 %v895, %v909
        %912 = vrot.lane.b32.xlu0 %v236, 111
        %v913 = vpop.permute.xlu0 %912
        %914 = vrot.lane.b32.xlu0 %v238, 111
        %v915 = vpop.permute.xlu0 %914
        %vm916 = vcmp.lt.s32.totalorder %v224, 111
        %v917 = vsel %vm916, %v913, %v915
        %v918 = vsel %vm916, %v915, %v913
        %vm919 = vmand %vm230, %vm234
        %vm920 = vmand %vm231, %vm235
        %v921 = vsel %vm919, 1, 0
        %v922 = vsel %vm920, 1, 0
        %vm923 = vcmp.eq.s32.totalorder %v921, 1
        %vm924 = vcmp.eq.s32.totalorder %v922, 1
        %v925 = vsel %vm923, %v917, 0.0
        %v926 = vsel %vm924, %v918, 0.0
        %s927 = scalar_lea.vmem %s1, 64
        %v928 = vld [vmem:[%s927] sm:$0xff]
        %930 = vset.pattern.permute.xlu0 0
        %931 = vperm.xlu0 %930, %v928
        %v932 = vpop.permute.xlu0 %931
        %v934 = vlaneseq
        %v935 = vshrl.u32 %v934, 7
        %v936 = vsub.s32 0, %v935
        %v937 = vrot.slane %v925, %v936
        %v938 = vlaneseq
        %v939 = vshrl.u32 %v938, 7
        %v940 = vsub.s32 0, %v939
        %v941 = vrot.slane %v926, %v940
        %v942 = vmul.f32 %v932, %v937
        %v943 = vmul.f32 %v932, %v941
        %v944 = vadd.f32 %v910, %v942
        %v945 = vadd.f32 %v911, %v943
        %946 = vset.pattern.permute.xlu0 1
        %947 = vperm.xlu0 %946, %v928
        %v948 = vpop.permute.xlu0 %947
        %v950 = vlaneseq
        %v951 = vshrl.u32 %v950, 7
        %v952 = vsub.s32 1, %v951
        %v953 = vrot.slane %v925, %v952
        %v954 = vlaneseq
        %v955 = vshrl.u32 %v954, 7
        %v956 = vsub.s32 1, %v955
        %v957 = vrot.slane %v926, %v956
        %v958 = vmul.f32 %v948, %v953
        %v959 = vmul.f32 %v948, %v957
        %v960 = vadd.f32 %v944, %v958
        %v961 = vadd.f32 %v945, %v959
        %962 = vset.pattern.permute.xlu0 2
        %963 = vperm.xlu0 %962, %v928
        %v964 = vpop.permute.xlu0 %963
        %v966 = vlaneseq
        %v967 = vshrl.u32 %v966, 7
        %v968 = vsub.s32 2, %v967
        %v969 = vrot.slane %v925, %v968
        %v970 = vlaneseq
        %v971 = vshrl.u32 %v970, 7
        %v972 = vsub.s32 2, %v971
        %v973 = vrot.slane %v926, %v972
        %v974 = vmul.f32 %v964, %v969
        %v975 = vmul.f32 %v964, %v973
        %v976 = vadd.f32 %v960, %v974
        %v977 = vadd.f32 %v961, %v975
        %978 = vset.pattern.permute.xlu0 3
        %979 = vperm.xlu0 %978, %v928
        %v980 = vpop.permute.xlu0 %979
        %v982 = vlaneseq
        %v983 = vshrl.u32 %v982, 7
        %v984 = vsub.s32 3, %v983
        %v985 = vrot.slane %v925, %v984
        %v986 = vlaneseq
        %v987 = vshrl.u32 %v986, 7
        %v988 = vsub.s32 3, %v987
        %v989 = vrot.slane %v926, %v988
        %v990 = vmul.f32 %v980, %v985
        %v991 = vmul.f32 %v980, %v989
        %v992 = vadd.f32 %v976, %v990
        %v993 = vadd.f32 %v977, %v991
        %v994 = vld [vmem:[%s2] sm:$0xff]
        %996 = vset.pattern.permute.xlu0 0
        %997 = vperm.xlu0 %996, %v994
        %v998 = vpop.permute.xlu0 %997
        %v1000 = vadd.f32 %v992, %v998
        %v1001 = vadd.f32 %v993, %v998
        %v1002 = vmul.f32 %v1000, %v1000
        %v1003 = vmul.f32 %v1001, %v1001
        %v1004 = vrot.slane %v1002, 4
        %v1005 = vadd.f32 %v1002, %v1004
        %v1006 = vrot.slane %v1005, 2
        %v1007 = vadd.f32 %v1005, %v1006
        %v1008 = vrot.slane %v1007, 1
        %v1009 = vadd.f32 %v1007, %v1008
        %v1010 = vrot.slane %v1003, 4
        %v1011 = vadd.f32 %v1003, %v1010
        %v1012 = vrot.slane %v1011, 2
        %v1013 = vadd.f32 %v1011, %v1012
        %v1014 = vrot.slane %v1013, 1
        %v1015 = vadd.f32 %v1013, %v1014
        %v1016 = vrcp.pop 8.0
        %v1017 = vmul.f32 %v1009, %v1016
        %v1018 = vmul.f32 %v1015, %v1016
        %v1019 = vadd.f32 %v1017, 1e-08
        %v1020 = vadd.f32 %v1018, 1e-08
        %v1021 = vrsqrt.pop %v1019
        %v1022 = vrsqrt.pop %v1020
        %v1023 = vmul.f32 %v1000, %v1021
        %v1024 = vmul.f32 %v1001, %v1022
        %v1025 = vmul.f32 %v1023, 0.1
        %v1026 = vmul.f32 %v1024, 0.1
        %v1027 = vmax.f32 %v1023, %v1025
        %v1028 = vmax.f32 %v1024, %v1026
        %1029 = vrot.lane.b32.xlu0 %v1027, 17
        %v1030 = vpop.permute.xlu0 %1029
        %1031 = vrot.lane.b32.xlu0 %v1028, 17
        %v1032 = vpop.permute.xlu0 %1031
        %v1033 = vsel %vm244, %v1030, %v1032
        %v1034 = vsel %vm244, %v1032, %v1030
        %v1035 = vsel %vm251, %v1034, 0.0
        %v1036 = vsel %vm252, %v1033, 0.0
        %v1037 = vld [vmem:[%s3] sm:$0xff]
        %1039 = vset.pattern.permute.xlu0 0
        %1040 = vperm.xlu0 %1039, %v1037
        %v1041 = vpop.permute.xlu0 %1040
        %v1043 = vlaneseq
        %v1044 = vshrl.u32 %v1043, 7
        %v1045 = vsub.s32 0, %v1044
        %v1046 = vrot.slane %v1035, %v1045
        %v1047 = vlaneseq
        %v1048 = vshrl.u32 %v1047, 7
        %v1049 = vsub.s32 0, %v1048
        %v1050 = vrot.slane %v1036, %v1049
        %v1051 = vmul.f32 %v1041, %v1046
        %v1052 = vmul.f32 %v1041, %v1050
        %v1053 = vadd.f32 %v1051, 0.0
        %v1054 = vadd.f32 %v1052, 0.0
        %1055 = vset.pattern.permute.xlu0 1
        %1056 = vperm.xlu0 %1055, %v1037
        %v1057 = vpop.permute.xlu0 %1056
        %v1059 = vlaneseq
        %v1060 = vshrl.u32 %v1059, 7
        %v1061 = vsub.s32 1, %v1060
        %v1062 = vrot.slane %v1035, %v1061
        %v1063 = vlaneseq
        %v1064 = vshrl.u32 %v1063, 7
        %v1065 = vsub.s32 1, %v1064
        %v1066 = vrot.slane %v1036, %v1065
        %v1067 = vmul.f32 %v1057, %v1062
        %v1068 = vmul.f32 %v1057, %v1066
        %v1069 = vadd.f32 %v1053, %v1067
        %v1070 = vadd.f32 %v1054, %v1068
        %1071 = vset.pattern.permute.xlu0 2
        %1072 = vperm.xlu0 %1071, %v1037
        %v1073 = vpop.permute.xlu0 %1072
        %v1075 = vlaneseq
        %v1076 = vshrl.u32 %v1075, 7
        %v1077 = vsub.s32 2, %v1076
        %v1078 = vrot.slane %v1035, %v1077
        %v1079 = vlaneseq
        %v1080 = vshrl.u32 %v1079, 7
        %v1081 = vsub.s32 2, %v1080
        %v1082 = vrot.slane %v1036, %v1081
        %v1083 = vmul.f32 %v1073, %v1078
        %v1084 = vmul.f32 %v1073, %v1082
        %v1085 = vadd.f32 %v1069, %v1083
        %v1086 = vadd.f32 %v1070, %v1084
        %1087 = vset.pattern.permute.xlu0 3
        %1088 = vperm.xlu0 %1087, %v1037
        %v1089 = vpop.permute.xlu0 %1088
        %v1091 = vlaneseq
        %v1092 = vshrl.u32 %v1091, 7
        %v1093 = vsub.s32 3, %v1092
        %v1094 = vrot.slane %v1035, %v1093
        %v1095 = vlaneseq
        %v1096 = vshrl.u32 %v1095, 7
        %v1097 = vsub.s32 3, %v1096
        %v1098 = vrot.slane %v1036, %v1097
        %v1099 = vmul.f32 %v1089, %v1094
        %v1100 = vmul.f32 %v1089, %v1098
        %v1101 = vadd.f32 %v1085, %v1099
        %v1102 = vadd.f32 %v1086, %v1100
        %1103 = vset.pattern.permute.xlu0 4
        %1104 = vperm.xlu0 %1103, %v1037
        %v1105 = vpop.permute.xlu0 %1104
        %v1107 = vlaneseq
        %v1108 = vshrl.u32 %v1107, 7
        %v1109 = vsub.s32 4, %v1108
        %v1110 = vrot.slane %v1035, %v1109
        %v1111 = vlaneseq
        %v1112 = vshrl.u32 %v1111, 7
        %v1113 = vsub.s32 4, %v1112
        %v1114 = vrot.slane %v1036, %v1113
        %v1115 = vmul.f32 %v1105, %v1110
        %v1116 = vmul.f32 %v1105, %v1114
        %v1117 = vadd.f32 %v1101, %v1115
        %v1118 = vadd.f32 %v1102, %v1116
        %1119 = vset.pattern.permute.xlu0 5
        %1120 = vperm.xlu0 %1119, %v1037
        %v1121 = vpop.permute.xlu0 %1120
        %v1123 = vlaneseq
        %v1124 = vshrl.u32 %v1123, 7
        %v1125 = vsub.s32 5, %v1124
        %v1126 = vrot.slane %v1035, %v1125
        %v1127 = vlaneseq
        %v1128 = vshrl.u32 %v1127, 7
        %v1129 = vsub.s32 5, %v1128
        %v1130 = vrot.slane %v1036, %v1129
        %v1131 = vmul.f32 %v1121, %v1126
        %v1132 = vmul.f32 %v1121, %v1130
        %v1133 = vadd.f32 %v1117, %v1131
        %v1134 = vadd.f32 %v1118, %v1132
        %1135 = vset.pattern.permute.xlu0 6
        %1136 = vperm.xlu0 %1135, %v1037
        %v1137 = vpop.permute.xlu0 %1136
        %v1139 = vlaneseq
        %v1140 = vshrl.u32 %v1139, 7
        %v1141 = vsub.s32 6, %v1140
        %v1142 = vrot.slane %v1035, %v1141
        %v1143 = vlaneseq
        %v1144 = vshrl.u32 %v1143, 7
        %v1145 = vsub.s32 6, %v1144
        %v1146 = vrot.slane %v1036, %v1145
        %v1147 = vmul.f32 %v1137, %v1142
        %v1148 = vmul.f32 %v1137, %v1146
        %v1149 = vadd.f32 %v1133, %v1147
        %v1150 = vadd.f32 %v1134, %v1148
        %1151 = vset.pattern.permute.xlu0 7
        %1152 = vperm.xlu0 %1151, %v1037
        %v1153 = vpop.permute.xlu0 %1152
        %v1155 = vlaneseq
        %v1156 = vshrl.u32 %v1155, 7
        %v1157 = vsub.s32 7, %v1156
        %v1158 = vrot.slane %v1035, %v1157
        %v1159 = vlaneseq
        %v1160 = vshrl.u32 %v1159, 7
        %v1161 = vsub.s32 7, %v1160
        %v1162 = vrot.slane %v1036, %v1161
        %v1163 = vmul.f32 %v1153, %v1158
        %v1164 = vmul.f32 %v1153, %v1162
        %v1165 = vadd.f32 %v1149, %v1163
        %v1166 = vadd.f32 %v1150, %v1164
        %1167 = vrot.lane.b32.xlu0 %v1027, 16
        %v1168 = vpop.permute.xlu0 %1167
        %1169 = vrot.lane.b32.xlu0 %v1028, 16
        %v1170 = vpop.permute.xlu0 %1169
        %v1171 = vsel %vm325, %v1168, %v1170
        %v1172 = vsel %vm325, %v1170, %v1168
        %v1173 = vsel %vm330, %v1172, 0.0
        %v1174 = vsel %vm331, %v1171, 0.0
        %s1175 = scalar_lea.vmem %s3, 8
        %v1176 = vld [vmem:[%s1175] sm:$0xff]
        %1178 = vset.pattern.permute.xlu0 0
        %1179 = vperm.xlu0 %1178, %v1176
        %v1180 = vpop.permute.xlu0 %1179
        %v1182 = vlaneseq
        %v1183 = vshrl.u32 %v1182, 7
        %v1184 = vsub.s32 0, %v1183
        %v1185 = vrot.slane %v1173, %v1184
        %v1186 = vlaneseq
        %v1187 = vshrl.u32 %v1186, 7
        %v1188 = vsub.s32 0, %v1187
        %v1189 = vrot.slane %v1174, %v1188
        %v1190 = vmul.f32 %v1180, %v1185
        %v1191 = vmul.f32 %v1180, %v1189
        %v1192 = vadd.f32 %v1165, %v1190
        %v1193 = vadd.f32 %v1166, %v1191
        %1194 = vset.pattern.permute.xlu0 1
        %1195 = vperm.xlu0 %1194, %v1176
        %v1196 = vpop.permute.xlu0 %1195
        %v1198 = vlaneseq
        %v1199 = vshrl.u32 %v1198, 7
        %v1200 = vsub.s32 1, %v1199
        %v1201 = vrot.slane %v1173, %v1200
        %v1202 = vlaneseq
        %v1203 = vshrl.u32 %v1202, 7
        %v1204 = vsub.s32 1, %v1203
        %v1205 = vrot.slane %v1174, %v1204
        %v1206 = vmul.f32 %v1196, %v1201
        %v1207 = vmul.f32 %v1196, %v1205
        %v1208 = vadd.f32 %v1192, %v1206
        %v1209 = vadd.f32 %v1193, %v1207
        %1210 = vset.pattern.permute.xlu0 2
        %1211 = vperm.xlu0 %1210, %v1176
        %v1212 = vpop.permute.xlu0 %1211
        %v1214 = vlaneseq
        %v1215 = vshrl.u32 %v1214, 7
        %v1216 = vsub.s32 2, %v1215
        %v1217 = vrot.slane %v1173, %v1216
        %v1218 = vlaneseq
        %v1219 = vshrl.u32 %v1218, 7
        %v1220 = vsub.s32 2, %v1219
        %v1221 = vrot.slane %v1174, %v1220
        %v1222 = vmul.f32 %v1212, %v1217
        %v1223 = vmul.f32 %v1212, %v1221
        %v1224 = vadd.f32 %v1208, %v1222
        %v1225 = vadd.f32 %v1209, %v1223
        %1226 = vset.pattern.permute.xlu0 3
        %1227 = vperm.xlu0 %1226, %v1176
        %v1228 = vpop.permute.xlu0 %1227
        %v1230 = vlaneseq
        %v1231 = vshrl.u32 %v1230, 7
        %v1232 = vsub.s32 3, %v1231
        %v1233 = vrot.slane %v1173, %v1232
        %v1234 = vlaneseq
        %v1235 = vshrl.u32 %v1234, 7
        %v1236 = vsub.s32 3, %v1235
        %v1237 = vrot.slane %v1174, %v1236
        %v1238 = vmul.f32 %v1228, %v1233
        %v1239 = vmul.f32 %v1228, %v1237
        %v1240 = vadd.f32 %v1224, %v1238
        %v1241 = vadd.f32 %v1225, %v1239
        %1242 = vset.pattern.permute.xlu0 4
        %1243 = vperm.xlu0 %1242, %v1176
        %v1244 = vpop.permute.xlu0 %1243
        %v1246 = vlaneseq
        %v1247 = vshrl.u32 %v1246, 7
        %v1248 = vsub.s32 4, %v1247
        %v1249 = vrot.slane %v1173, %v1248
        %v1250 = vlaneseq
        %v1251 = vshrl.u32 %v1250, 7
        %v1252 = vsub.s32 4, %v1251
        %v1253 = vrot.slane %v1174, %v1252
        %v1254 = vmul.f32 %v1244, %v1249
        %v1255 = vmul.f32 %v1244, %v1253
        %v1256 = vadd.f32 %v1240, %v1254
        %v1257 = vadd.f32 %v1241, %v1255
        %1258 = vset.pattern.permute.xlu0 5
        %1259 = vperm.xlu0 %1258, %v1176
        %v1260 = vpop.permute.xlu0 %1259
        %v1262 = vlaneseq
        %v1263 = vshrl.u32 %v1262, 7
        %v1264 = vsub.s32 5, %v1263
        %v1265 = vrot.slane %v1173, %v1264
        %v1266 = vlaneseq
        %v1267 = vshrl.u32 %v1266, 7
        %v1268 = vsub.s32 5, %v1267
        %v1269 = vrot.slane %v1174, %v1268
        %v1270 = vmul.f32 %v1260, %v1265
        %v1271 = vmul.f32 %v1260, %v1269
        %v1272 = vadd.f32 %v1256, %v1270
        %v1273 = vadd.f32 %v1257, %v1271
        %1274 = vset.pattern.permute.xlu0 6
        %1275 = vperm.xlu0 %1274, %v1176
        %v1276 = vpop.permute.xlu0 %1275
        %v1278 = vlaneseq
        %v1279 = vshrl.u32 %v1278, 7
        %v1280 = vsub.s32 6, %v1279
        %v1281 = vrot.slane %v1173, %v1280
        %v1282 = vlaneseq
        %v1283 = vshrl.u32 %v1282, 7
        %v1284 = vsub.s32 6, %v1283
        %v1285 = vrot.slane %v1174, %v1284
        %v1286 = vmul.f32 %v1276, %v1281
        %v1287 = vmul.f32 %v1276, %v1285
        %v1288 = vadd.f32 %v1272, %v1286
        %v1289 = vadd.f32 %v1273, %v1287
        %1290 = vset.pattern.permute.xlu0 7
        %1291 = vperm.xlu0 %1290, %v1176
        %v1292 = vpop.permute.xlu0 %1291
        %v1294 = vlaneseq
        %v1295 = vshrl.u32 %v1294, 7
        %v1296 = vsub.s32 7, %v1295
        %v1297 = vrot.slane %v1173, %v1296
        %v1298 = vlaneseq
        %v1299 = vshrl.u32 %v1298, 7
        %v1300 = vsub.s32 7, %v1299
        %v1301 = vrot.slane %v1174, %v1300
        %v1302 = vmul.f32 %v1292, %v1297
        %v1303 = vmul.f32 %v1292, %v1301
        %v1304 = vadd.f32 %v1288, %v1302
        %v1305 = vadd.f32 %v1289, %v1303
        %1306 = vrot.lane.b32.xlu0 %v1027, 15
        %v1307 = vpop.permute.xlu0 %1306
        %1308 = vrot.lane.b32.xlu0 %v1028, 15
        %v1309 = vpop.permute.xlu0 %1308
        %v1310 = vsel %vm405, %v1307, %v1309
        %v1311 = vsel %vm405, %v1309, %v1307
        %v1312 = vsel %vm412, %v1311, 0.0
        %v1313 = vsel %vm413, %v1310, 0.0
        %s1314 = scalar_lea.vmem %s3, 16
        %v1315 = vld [vmem:[%s1314] sm:$0xff]
        %1317 = vset.pattern.permute.xlu0 0
        %1318 = vperm.xlu0 %1317, %v1315
        %v1319 = vpop.permute.xlu0 %1318
        %v1321 = vlaneseq
        %v1322 = vshrl.u32 %v1321, 7
        %v1323 = vsub.s32 0, %v1322
        %v1324 = vrot.slane %v1312, %v1323
        %v1325 = vlaneseq
        %v1326 = vshrl.u32 %v1325, 7
        %v1327 = vsub.s32 0, %v1326
        %v1328 = vrot.slane %v1313, %v1327
        %v1329 = vmul.f32 %v1319, %v1324
        %v1330 = vmul.f32 %v1319, %v1328
        %v1331 = vadd.f32 %v1304, %v1329
        %v1332 = vadd.f32 %v1305, %v1330
        %1333 = vset.pattern.permute.xlu0 1
        %1334 = vperm.xlu0 %1333, %v1315
        %v1335 = vpop.permute.xlu0 %1334
        %v1337 = vlaneseq
        %v1338 = vshrl.u32 %v1337, 7
        %v1339 = vsub.s32 1, %v1338
        %v1340 = vrot.slane %v1312, %v1339
        %v1341 = vlaneseq
        %v1342 = vshrl.u32 %v1341, 7
        %v1343 = vsub.s32 1, %v1342
        %v1344 = vrot.slane %v1313, %v1343
        %v1345 = vmul.f32 %v1335, %v1340
        %v1346 = vmul.f32 %v1335, %v1344
        %v1347 = vadd.f32 %v1331, %v1345
        %v1348 = vadd.f32 %v1332, %v1346
        %1349 = vset.pattern.permute.xlu0 2
        %1350 = vperm.xlu0 %1349, %v1315
        %v1351 = vpop.permute.xlu0 %1350
        %v1353 = vlaneseq
        %v1354 = vshrl.u32 %v1353, 7
        %v1355 = vsub.s32 2, %v1354
        %v1356 = vrot.slane %v1312, %v1355
        %v1357 = vlaneseq
        %v1358 = vshrl.u32 %v1357, 7
        %v1359 = vsub.s32 2, %v1358
        %v1360 = vrot.slane %v1313, %v1359
        %v1361 = vmul.f32 %v1351, %v1356
        %v1362 = vmul.f32 %v1351, %v1360
        %v1363 = vadd.f32 %v1347, %v1361
        %v1364 = vadd.f32 %v1348, %v1362
        %1365 = vset.pattern.permute.xlu0 3
        %1366 = vperm.xlu0 %1365, %v1315
        %v1367 = vpop.permute.xlu0 %1366
        %v1369 = vlaneseq
        %v1370 = vshrl.u32 %v1369, 7
        %v1371 = vsub.s32 3, %v1370
        %v1372 = vrot.slane %v1312, %v1371
        %v1373 = vlaneseq
        %v1374 = vshrl.u32 %v1373, 7
        %v1375 = vsub.s32 3, %v1374
        %v1376 = vrot.slane %v1313, %v1375
        %v1377 = vmul.f32 %v1367, %v1372
        %v1378 = vmul.f32 %v1367, %v1376
        %v1379 = vadd.f32 %v1363, %v1377
        %v1380 = vadd.f32 %v1364, %v1378
        %1381 = vset.pattern.permute.xlu0 4
        %1382 = vperm.xlu0 %1381, %v1315
        %v1383 = vpop.permute.xlu0 %1382
        %v1385 = vlaneseq
        %v1386 = vshrl.u32 %v1385, 7
        %v1387 = vsub.s32 4, %v1386
        %v1388 = vrot.slane %v1312, %v1387
        %v1389 = vlaneseq
        %v1390 = vshrl.u32 %v1389, 7
        %v1391 = vsub.s32 4, %v1390
        %v1392 = vrot.slane %v1313, %v1391
        %v1393 = vmul.f32 %v1383, %v1388
        %v1394 = vmul.f32 %v1383, %v1392
        %v1395 = vadd.f32 %v1379, %v1393
        %v1396 = vadd.f32 %v1380, %v1394
        %1397 = vset.pattern.permute.xlu0 5
        %1398 = vperm.xlu0 %1397, %v1315
        %v1399 = vpop.permute.xlu0 %1398
        %v1401 = vlaneseq
        %v1402 = vshrl.u32 %v1401, 7
        %v1403 = vsub.s32 5, %v1402
        %v1404 = vrot.slane %v1312, %v1403
        %v1405 = vlaneseq
        %v1406 = vshrl.u32 %v1405, 7
        %v1407 = vsub.s32 5, %v1406
        %v1408 = vrot.slane %v1313, %v1407
        %v1409 = vmul.f32 %v1399, %v1404
        %v1410 = vmul.f32 %v1399, %v1408
        %v1411 = vadd.f32 %v1395, %v1409
        %v1412 = vadd.f32 %v1396, %v1410
        %1413 = vset.pattern.permute.xlu0 6
        %1414 = vperm.xlu0 %1413, %v1315
        %v1415 = vpop.permute.xlu0 %1414
        %v1417 = vlaneseq
        %v1418 = vshrl.u32 %v1417, 7
        %v1419 = vsub.s32 6, %v1418
        %v1420 = vrot.slane %v1312, %v1419
        %v1421 = vlaneseq
        %v1422 = vshrl.u32 %v1421, 7
        %v1423 = vsub.s32 6, %v1422
        %v1424 = vrot.slane %v1313, %v1423
        %v1425 = vmul.f32 %v1415, %v1420
        %v1426 = vmul.f32 %v1415, %v1424
        %v1427 = vadd.f32 %v1411, %v1425
        %v1428 = vadd.f32 %v1412, %v1426
        %1429 = vset.pattern.permute.xlu0 7
        %1430 = vperm.xlu0 %1429, %v1315
        %v1431 = vpop.permute.xlu0 %1430
        %v1433 = vlaneseq
        %v1434 = vshrl.u32 %v1433, 7
        %v1435 = vsub.s32 7, %v1434
        %v1436 = vrot.slane %v1312, %v1435
        %v1437 = vlaneseq
        %v1438 = vshrl.u32 %v1437, 7
        %v1439 = vsub.s32 7, %v1438
        %v1440 = vrot.slane %v1313, %v1439
        %v1441 = vmul.f32 %v1431, %v1436
        %v1442 = vmul.f32 %v1431, %v1440
        %v1443 = vadd.f32 %v1427, %v1441
        %v1444 = vadd.f32 %v1428, %v1442
        %1445 = vrot.lane.b32.xlu0 %v1027, 1
        %v1446 = vpop.permute.xlu0 %1445
        %1447 = vrot.lane.b32.xlu0 %v1028, 1
        %v1448 = vpop.permute.xlu0 %1447
        %v1449 = vsel %vm487, %v1446, %v1448
        %v1450 = vsel %vm487, %v1448, %v1446
        %v1451 = vsel %vm492, %v1450, 0.0
        %v1452 = vsel %vm493, %v1449, 0.0
        %s1453 = scalar_lea.vmem %s3, 24
        %v1454 = vld [vmem:[%s1453] sm:$0xff]
        %1456 = vset.pattern.permute.xlu0 0
        %1457 = vperm.xlu0 %1456, %v1454
        %v1458 = vpop.permute.xlu0 %1457
        %v1460 = vlaneseq
        %v1461 = vshrl.u32 %v1460, 7
        %v1462 = vsub.s32 0, %v1461
        %v1463 = vrot.slane %v1451, %v1462
        %v1464 = vlaneseq
        %v1465 = vshrl.u32 %v1464, 7
        %v1466 = vsub.s32 0, %v1465
        %v1467 = vrot.slane %v1452, %v1466
        %v1468 = vmul.f32 %v1458, %v1463
        %v1469 = vmul.f32 %v1458, %v1467
        %v1470 = vadd.f32 %v1443, %v1468
        %v1471 = vadd.f32 %v1444, %v1469
        %1472 = vset.pattern.permute.xlu0 1
        %1473 = vperm.xlu0 %1472, %v1454
        %v1474 = vpop.permute.xlu0 %1473
        %v1476 = vlaneseq
        %v1477 = vshrl.u32 %v1476, 7
        %v1478 = vsub.s32 1, %v1477
        %v1479 = vrot.slane %v1451, %v1478
        %v1480 = vlaneseq
        %v1481 = vshrl.u32 %v1480, 7
        %v1482 = vsub.s32 1, %v1481
        %v1483 = vrot.slane %v1452, %v1482
        %v1484 = vmul.f32 %v1474, %v1479
        %v1485 = vmul.f32 %v1474, %v1483
        %v1486 = vadd.f32 %v1470, %v1484
        %v1487 = vadd.f32 %v1471, %v1485
        %1488 = vset.pattern.permute.xlu0 2
        %1489 = vperm.xlu0 %1488, %v1454
        %v1490 = vpop.permute.xlu0 %1489
        %v1492 = vlaneseq
        %v1493 = vshrl.u32 %v1492, 7
        %v1494 = vsub.s32 2, %v1493
        %v1495 = vrot.slane %v1451, %v1494
        %v1496 = vlaneseq
        %v1497 = vshrl.u32 %v1496, 7
        %v1498 = vsub.s32 2, %v1497
        %v1499 = vrot.slane %v1452, %v1498
        %v1500 = vmul.f32 %v1490, %v1495
        %v1501 = vmul.f32 %v1490, %v1499
        %v1502 = vadd.f32 %v1486, %v1500
        %v1503 = vadd.f32 %v1487, %v1501
        %1504 = vset.pattern.permute.xlu0 3
        %1505 = vperm.xlu0 %1504, %v1454
        %v1506 = vpop.permute.xlu0 %1505
        %v1508 = vlaneseq
        %v1509 = vshrl.u32 %v1508, 7
        %v1510 = vsub.s32 3, %v1509
        %v1511 = vrot.slane %v1451, %v1510
        %v1512 = vlaneseq
        %v1513 = vshrl.u32 %v1512, 7
        %v1514 = vsub.s32 3, %v1513
        %v1515 = vrot.slane %v1452, %v1514
        %v1516 = vmul.f32 %v1506, %v1511
        %v1517 = vmul.f32 %v1506, %v1515
        %v1518 = vadd.f32 %v1502, %v1516
        %v1519 = vadd.f32 %v1503, %v1517
        %1520 = vset.pattern.permute.xlu0 4
        %1521 = vperm.xlu0 %1520, %v1454
        %v1522 = vpop.permute.xlu0 %1521
        %v1524 = vlaneseq
        %v1525 = vshrl.u32 %v1524, 7
        %v1526 = vsub.s32 4, %v1525
        %v1527 = vrot.slane %v1451, %v1526
        %v1528 = vlaneseq
        %v1529 = vshrl.u32 %v1528, 7
        %v1530 = vsub.s32 4, %v1529
        %v1531 = vrot.slane %v1452, %v1530
        %v1532 = vmul.f32 %v1522, %v1527
        %v1533 = vmul.f32 %v1522, %v1531
        %v1534 = vadd.f32 %v1518, %v1532
        %v1535 = vadd.f32 %v1519, %v1533
        %1536 = vset.pattern.permute.xlu0 5
        %1537 = vperm.xlu0 %1536, %v1454
        %v1538 = vpop.permute.xlu0 %1537
        %v1540 = vlaneseq
        %v1541 = vshrl.u32 %v1540, 7
        %v1542 = vsub.s32 5, %v1541
        %v1543 = vrot.slane %v1451, %v1542
        %v1544 = vlaneseq
        %v1545 = vshrl.u32 %v1544, 7
        %v1546 = vsub.s32 5, %v1545
        %v1547 = vrot.slane %v1452, %v1546
        %v1548 = vmul.f32 %v1538, %v1543
        %v1549 = vmul.f32 %v1538, %v1547
        %v1550 = vadd.f32 %v1534, %v1548
        %v1551 = vadd.f32 %v1535, %v1549
        %1552 = vset.pattern.permute.xlu0 6
        %1553 = vperm.xlu0 %1552, %v1454
        %v1554 = vpop.permute.xlu0 %1553
        %v1556 = vlaneseq
        %v1557 = vshrl.u32 %v1556, 7
        %v1558 = vsub.s32 6, %v1557
        %v1559 = vrot.slane %v1451, %v1558
        %v1560 = vlaneseq
        %v1561 = vshrl.u32 %v1560, 7
        %v1562 = vsub.s32 6, %v1561
        %v1563 = vrot.slane %v1452, %v1562
        %v1564 = vmul.f32 %v1554, %v1559
        %v1565 = vmul.f32 %v1554, %v1563
        %v1566 = vadd.f32 %v1550, %v1564
        %v1567 = vadd.f32 %v1551, %v1565
        %1568 = vset.pattern.permute.xlu0 7
        %1569 = vperm.xlu0 %1568, %v1454
        %v1570 = vpop.permute.xlu0 %1569
        %v1572 = vlaneseq
        %v1573 = vshrl.u32 %v1572, 7
        %v1574 = vsub.s32 7, %v1573
        %v1575 = vrot.slane %v1451, %v1574
        %v1576 = vlaneseq
        %v1577 = vshrl.u32 %v1576, 7
        %v1578 = vsub.s32 7, %v1577
        %v1579 = vrot.slane %v1452, %v1578
        %v1580 = vmul.f32 %v1570, %v1575
        %v1581 = vmul.f32 %v1570, %v1579
        %v1582 = vadd.f32 %v1566, %v1580
        %v1583 = vadd.f32 %v1567, %v1581
        %s1584 = scalar_lea.vmem %s3, 32
        %v1585 = vld [vmem:[%s1584] sm:$0xff]
        %1587 = vset.pattern.permute.xlu0 0
        %1588 = vperm.xlu0 %1587, %v1585
        %v1589 = vpop.permute.xlu0 %1588
        %v1591 = vlaneseq
        %v1592 = vshrl.u32 %v1591, 7
        %v1593 = vsub.s32 0, %v1592
        %v1594 = vrot.slane %v1027, %v1593
        %v1595 = vlaneseq
        %v1596 = vshrl.u32 %v1595, 7
        %v1597 = vsub.s32 0, %v1596
        %v1598 = vrot.slane %v1028, %v1597
        %v1599 = vmul.f32 %v1589, %v1594
        %v1600 = vmul.f32 %v1589, %v1598
        %v1601 = vadd.f32 %v1582, %v1599
        %v1602 = vadd.f32 %v1583, %v1600
        %1603 = vset.pattern.permute.xlu0 1
        %1604 = vperm.xlu0 %1603, %v1585
        %v1605 = vpop.permute.xlu0 %1604
        %v1607 = vlaneseq
        %v1608 = vshrl.u32 %v1607, 7
        %v1609 = vsub.s32 1, %v1608
        %v1610 = vrot.slane %v1027, %v1609
        %v1611 = vlaneseq
        %v1612 = vshrl.u32 %v1611, 7
        %v1613 = vsub.s32 1, %v1612
        %v1614 = vrot.slane %v1028, %v1613
        %v1615 = vmul.f32 %v1605, %v1610
        %v1616 = vmul.f32 %v1605, %v1614
        %v1617 = vadd.f32 %v1601, %v1615
        %v1618 = vadd.f32 %v1602, %v1616
        %1619 = vset.pattern.permute.xlu0 2
        %1620 = vperm.xlu0 %1619, %v1585
        %v1621 = vpop.permute.xlu0 %1620
        %v1623 = vlaneseq
        %v1624 = vshrl.u32 %v1623, 7
        %v1625 = vsub.s32 2, %v1624
        %v1626 = vrot.slane %v1027, %v1625
        %v1627 = vlaneseq
        %v1628 = vshrl.u32 %v1627, 7
        %v1629 = vsub.s32 2, %v1628
        %v1630 = vrot.slane %v1028, %v1629
        %v1631 = vmul.f32 %v1621, %v1626
        %v1632 = vmul.f32 %v1621, %v1630
        %v1633 = vadd.f32 %v1617, %v1631
        %v1634 = vadd.f32 %v1618, %v1632
        %1635 = vset.pattern.permute.xlu0 3
        %1636 = vperm.xlu0 %1635, %v1585
        %v1637 = vpop.permute.xlu0 %1636
        %v1639 = vlaneseq
        %v1640 = vshrl.u32 %v1639, 7
        %v1641 = vsub.s32 3, %v1640
        %v1642 = vrot.slane %v1027, %v1641
        %v1643 = vlaneseq
        %v1644 = vshrl.u32 %v1643, 7
        %v1645 = vsub.s32 3, %v1644
        %v1646 = vrot.slane %v1028, %v1645
        %v1647 = vmul.f32 %v1637, %v1642
        %v1648 = vmul.f32 %v1637, %v1646
        %v1649 = vadd.f32 %v1633, %v1647
        %v1650 = vadd.f32 %v1634, %v1648
        %1651 = vset.pattern.permute.xlu0 4
        %1652 = vperm.xlu0 %1651, %v1585
        %v1653 = vpop.permute.xlu0 %1652
        %v1655 = vlaneseq
        %v1656 = vshrl.u32 %v1655, 7
        %v1657 = vsub.s32 4, %v1656
        %v1658 = vrot.slane %v1027, %v1657
        %v1659 = vlaneseq
        %v1660 = vshrl.u32 %v1659, 7
        %v1661 = vsub.s32 4, %v1660
        %v1662 = vrot.slane %v1028, %v1661
        %v1663 = vmul.f32 %v1653, %v1658
        %v1664 = vmul.f32 %v1653, %v1662
        %v1665 = vadd.f32 %v1649, %v1663
        %v1666 = vadd.f32 %v1650, %v1664
        %1667 = vset.pattern.permute.xlu0 5
        %1668 = vperm.xlu0 %1667, %v1585
        %v1669 = vpop.permute.xlu0 %1668
        %v1671 = vlaneseq
        %v1672 = vshrl.u32 %v1671, 7
        %v1673 = vsub.s32 5, %v1672
        %v1674 = vrot.slane %v1027, %v1673
        %v1675 = vlaneseq
        %v1676 = vshrl.u32 %v1675, 7
        %v1677 = vsub.s32 5, %v1676
        %v1678 = vrot.slane %v1028, %v1677
        %v1679 = vmul.f32 %v1669, %v1674
        %v1680 = vmul.f32 %v1669, %v1678
        %v1681 = vadd.f32 %v1665, %v1679
        %v1682 = vadd.f32 %v1666, %v1680
        %1683 = vset.pattern.permute.xlu0 6
        %1684 = vperm.xlu0 %1683, %v1585
        %v1685 = vpop.permute.xlu0 %1684
        %v1687 = vlaneseq
        %v1688 = vshrl.u32 %v1687, 7
        %v1689 = vsub.s32 6, %v1688
        %v1690 = vrot.slane %v1027, %v1689
        %v1691 = vlaneseq
        %v1692 = vshrl.u32 %v1691, 7
        %v1693 = vsub.s32 6, %v1692
        %v1694 = vrot.slane %v1028, %v1693
        %v1695 = vmul.f32 %v1685, %v1690
        %v1696 = vmul.f32 %v1685, %v1694
        %v1697 = vadd.f32 %v1681, %v1695
        %v1698 = vadd.f32 %v1682, %v1696
        %1699 = vset.pattern.permute.xlu0 7
        %1700 = vperm.xlu0 %1699, %v1585
        %v1701 = vpop.permute.xlu0 %1700
        %v1703 = vlaneseq
        %v1704 = vshrl.u32 %v1703, 7
        %v1705 = vsub.s32 7, %v1704
        %v1706 = vrot.slane %v1027, %v1705
        %v1707 = vlaneseq
        %v1708 = vshrl.u32 %v1707, 7
        %v1709 = vsub.s32 7, %v1708
        %v1710 = vrot.slane %v1028, %v1709
        %v1711 = vmul.f32 %v1701, %v1706
        %v1712 = vmul.f32 %v1701, %v1710
        %v1713 = vadd.f32 %v1697, %v1711
        %v1714 = vadd.f32 %v1698, %v1712
        %1715 = vrot.lane.b32.xlu0 %v1027, 127
        %v1716 = vpop.permute.xlu0 %1715
        %1717 = vrot.lane.b32.xlu0 %v1028, 127
        %v1718 = vpop.permute.xlu0 %1717
        %v1719 = vsel %vm674, %v1716, %v1718
        %v1720 = vsel %vm674, %v1718, %v1716
        %v1721 = vsel %vm679, %v1719, 0.0
        %v1722 = vsel %vm680, %v1720, 0.0
        %s1723 = scalar_lea.vmem %s3, 40
        %v1724 = vld [vmem:[%s1723] sm:$0xff]
        %1726 = vset.pattern.permute.xlu0 0
        %1727 = vperm.xlu0 %1726, %v1724
        %v1728 = vpop.permute.xlu0 %1727
        %v1730 = vlaneseq
        %v1731 = vshrl.u32 %v1730, 7
        %v1732 = vsub.s32 0, %v1731
        %v1733 = vrot.slane %v1721, %v1732
        %v1734 = vlaneseq
        %v1735 = vshrl.u32 %v1734, 7
        %v1736 = vsub.s32 0, %v1735
        %v1737 = vrot.slane %v1722, %v1736
        %v1738 = vmul.f32 %v1728, %v1733
        %v1739 = vmul.f32 %v1728, %v1737
        %v1740 = vadd.f32 %v1713, %v1738
        %v1741 = vadd.f32 %v1714, %v1739
        %1742 = vset.pattern.permute.xlu0 1
        %1743 = vperm.xlu0 %1742, %v1724
        %v1744 = vpop.permute.xlu0 %1743
        %v1746 = vlaneseq
        %v1747 = vshrl.u32 %v1746, 7
        %v1748 = vsub.s32 1, %v1747
        %v1749 = vrot.slane %v1721, %v1748
        %v1750 = vlaneseq
        %v1751 = vshrl.u32 %v1750, 7
        %v1752 = vsub.s32 1, %v1751
        %v1753 = vrot.slane %v1722, %v1752
        %v1754 = vmul.f32 %v1744, %v1749
        %v1755 = vmul.f32 %v1744, %v1753
        %v1756 = vadd.f32 %v1740, %v1754
        %v1757 = vadd.f32 %v1741, %v1755
        %1758 = vset.pattern.permute.xlu0 2
        %1759 = vperm.xlu0 %1758, %v1724
        %v1760 = vpop.permute.xlu0 %1759
        %v1762 = vlaneseq
        %v1763 = vshrl.u32 %v1762, 7
        %v1764 = vsub.s32 2, %v1763
        %v1765 = vrot.slane %v1721, %v1764
        %v1766 = vlaneseq
        %v1767 = vshrl.u32 %v1766, 7
        %v1768 = vsub.s32 2, %v1767
        %v1769 = vrot.slane %v1722, %v1768
        %v1770 = vmul.f32 %v1760, %v1765
        %v1771 = vmul.f32 %v1760, %v1769
        %v1772 = vadd.f32 %v1756, %v1770
        %v1773 = vadd.f32 %v1757, %v1771
        %1774 = vset.pattern.permute.xlu0 3
        %1775 = vperm.xlu0 %1774, %v1724
        %v1776 = vpop.permute.xlu0 %1775
        %v1778 = vlaneseq
        %v1779 = vshrl.u32 %v1778, 7
        %v1780 = vsub.s32 3, %v1779
        %v1781 = vrot.slane %v1721, %v1780
        %v1782 = vlaneseq
        %v1783 = vshrl.u32 %v1782, 7
        %v1784 = vsub.s32 3, %v1783
        %v1785 = vrot.slane %v1722, %v1784
        %v1786 = vmul.f32 %v1776, %v1781
        %v1787 = vmul.f32 %v1776, %v1785
        %v1788 = vadd.f32 %v1772, %v1786
        %v1789 = vadd.f32 %v1773, %v1787
        %1790 = vset.pattern.permute.xlu0 4
        %1791 = vperm.xlu0 %1790, %v1724
        %v1792 = vpop.permute.xlu0 %1791
        %v1794 = vlaneseq
        %v1795 = vshrl.u32 %v1794, 7
        %v1796 = vsub.s32 4, %v1795
        %v1797 = vrot.slane %v1721, %v1796
        %v1798 = vlaneseq
        %v1799 = vshrl.u32 %v1798, 7
        %v1800 = vsub.s32 4, %v1799
        %v1801 = vrot.slane %v1722, %v1800
        %v1802 = vmul.f32 %v1792, %v1797
        %v1803 = vmul.f32 %v1792, %v1801
        %v1804 = vadd.f32 %v1788, %v1802
        %v1805 = vadd.f32 %v1789, %v1803
        %1806 = vset.pattern.permute.xlu0 5
        %1807 = vperm.xlu0 %1806, %v1724
        %v1808 = vpop.permute.xlu0 %1807
        %v1810 = vlaneseq
        %v1811 = vshrl.u32 %v1810, 7
        %v1812 = vsub.s32 5, %v1811
        %v1813 = vrot.slane %v1721, %v1812
        %v1814 = vlaneseq
        %v1815 = vshrl.u32 %v1814, 7
        %v1816 = vsub.s32 5, %v1815
        %v1817 = vrot.slane %v1722, %v1816
        %v1818 = vmul.f32 %v1808, %v1813
        %v1819 = vmul.f32 %v1808, %v1817
        %v1820 = vadd.f32 %v1804, %v1818
        %v1821 = vadd.f32 %v1805, %v1819
        %1822 = vset.pattern.permute.xlu0 6
        %1823 = vperm.xlu0 %1822, %v1724
        %v1824 = vpop.permute.xlu0 %1823
        %v1826 = vlaneseq
        %v1827 = vshrl.u32 %v1826, 7
        %v1828 = vsub.s32 6, %v1827
        %v1829 = vrot.slane %v1721, %v1828
        %v1830 = vlaneseq
        %v1831 = vshrl.u32 %v1830, 7
        %v1832 = vsub.s32 6, %v1831
        %v1833 = vrot.slane %v1722, %v1832
        %v1834 = vmul.f32 %v1824, %v1829
        %v1835 = vmul.f32 %v1824, %v1833
        %v1836 = vadd.f32 %v1820, %v1834
        %v1837 = vadd.f32 %v1821, %v1835
        %1838 = vset.pattern.permute.xlu0 7
        %1839 = vperm.xlu0 %1838, %v1724
        %v1840 = vpop.permute.xlu0 %1839
        %v1842 = vlaneseq
        %v1843 = vshrl.u32 %v1842, 7
        %v1844 = vsub.s32 7, %v1843
        %v1845 = vrot.slane %v1721, %v1844
        %v1846 = vlaneseq
        %v1847 = vshrl.u32 %v1846, 7
        %v1848 = vsub.s32 7, %v1847
        %v1849 = vrot.slane %v1722, %v1848
        %v1850 = vmul.f32 %v1840, %v1845
        %v1851 = vmul.f32 %v1840, %v1849
        %v1852 = vadd.f32 %v1836, %v1850
        %v1853 = vadd.f32 %v1837, %v1851
        %1854 = vrot.lane.b32.xlu0 %v1027, 113
        %v1855 = vpop.permute.xlu0 %1854
        %1856 = vrot.lane.b32.xlu0 %v1028, 113
        %v1857 = vpop.permute.xlu0 %1856
        %v1858 = vsel %vm754, %v1855, %v1857
        %v1859 = vsel %vm754, %v1857, %v1855
        %v1860 = vsel %vm761, %v1858, 0.0
        %v1861 = vsel %vm762, %v1859, 0.0
        %s1862 = scalar_lea.vmem %s3, 48
        %v1863 = vld [vmem:[%s1862] sm:$0xff]
        %1865 = vset.pattern.permute.xlu0 0
        %1866 = vperm.xlu0 %1865, %v1863
        %v1867 = vpop.permute.xlu0 %1866
        %v1869 = vlaneseq
        %v1870 = vshrl.u32 %v1869, 7
        %v1871 = vsub.s32 0, %v1870
        %v1872 = vrot.slane %v1860, %v1871
        %v1873 = vlaneseq
        %v1874 = vshrl.u32 %v1873, 7
        %v1875 = vsub.s32 0, %v1874
        %v1876 = vrot.slane %v1861, %v1875
        %v1877 = vmul.f32 %v1867, %v1872
        %v1878 = vmul.f32 %v1867, %v1876
        %v1879 = vadd.f32 %v1852, %v1877
        %v1880 = vadd.f32 %v1853, %v1878
        %1881 = vset.pattern.permute.xlu0 1
        %1882 = vperm.xlu0 %1881, %v1863
        %v1883 = vpop.permute.xlu0 %1882
        %v1885 = vlaneseq
        %v1886 = vshrl.u32 %v1885, 7
        %v1887 = vsub.s32 1, %v1886
        %v1888 = vrot.slane %v1860, %v1887
        %v1889 = vlaneseq
        %v1890 = vshrl.u32 %v1889, 7
        %v1891 = vsub.s32 1, %v1890
        %v1892 = vrot.slane %v1861, %v1891
        %v1893 = vmul.f32 %v1883, %v1888
        %v1894 = vmul.f32 %v1883, %v1892
        %v1895 = vadd.f32 %v1879, %v1893
        %v1896 = vadd.f32 %v1880, %v1894
        %1897 = vset.pattern.permute.xlu0 2
        %1898 = vperm.xlu0 %1897, %v1863
        %v1899 = vpop.permute.xlu0 %1898
        %v1901 = vlaneseq
        %v1902 = vshrl.u32 %v1901, 7
        %v1903 = vsub.s32 2, %v1902
        %v1904 = vrot.slane %v1860, %v1903
        %v1905 = vlaneseq
        %v1906 = vshrl.u32 %v1905, 7
        %v1907 = vsub.s32 2, %v1906
        %v1908 = vrot.slane %v1861, %v1907
        %v1909 = vmul.f32 %v1899, %v1904
        %v1910 = vmul.f32 %v1899, %v1908
        %v1911 = vadd.f32 %v1895, %v1909
        %v1912 = vadd.f32 %v1896, %v1910
        %1913 = vset.pattern.permute.xlu0 3
        %1914 = vperm.xlu0 %1913, %v1863
        %v1915 = vpop.permute.xlu0 %1914
        %v1917 = vlaneseq
        %v1918 = vshrl.u32 %v1917, 7
        %v1919 = vsub.s32 3, %v1918
        %v1920 = vrot.slane %v1860, %v1919
        %v1921 = vlaneseq
        %v1922 = vshrl.u32 %v1921, 7
        %v1923 = vsub.s32 3, %v1922
        %v1924 = vrot.slane %v1861, %v1923
        %v1925 = vmul.f32 %v1915, %v1920
        %v1926 = vmul.f32 %v1915, %v1924
        %v1927 = vadd.f32 %v1911, %v1925
        %v1928 = vadd.f32 %v1912, %v1926
        %1929 = vset.pattern.permute.xlu0 4
        %1930 = vperm.xlu0 %1929, %v1863
        %v1931 = vpop.permute.xlu0 %1930
        %v1933 = vlaneseq
        %v1934 = vshrl.u32 %v1933, 7
        %v1935 = vsub.s32 4, %v1934
        %v1936 = vrot.slane %v1860, %v1935
        %v1937 = vlaneseq
        %v1938 = vshrl.u32 %v1937, 7
        %v1939 = vsub.s32 4, %v1938
        %v1940 = vrot.slane %v1861, %v1939
        %v1941 = vmul.f32 %v1931, %v1936
        %v1942 = vmul.f32 %v1931, %v1940
        %v1943 = vadd.f32 %v1927, %v1941
        %v1944 = vadd.f32 %v1928, %v1942
        %1945 = vset.pattern.permute.xlu0 5
        %1946 = vperm.xlu0 %1945, %v1863
        %v1947 = vpop.permute.xlu0 %1946
        %v1949 = vlaneseq
        %v1950 = vshrl.u32 %v1949, 7
        %v1951 = vsub.s32 5, %v1950
        %v1952 = vrot.slane %v1860, %v1951
        %v1953 = vlaneseq
        %v1954 = vshrl.u32 %v1953, 7
        %v1955 = vsub.s32 5, %v1954
        %v1956 = vrot.slane %v1861, %v1955
        %v1957 = vmul.f32 %v1947, %v1952
        %v1958 = vmul.f32 %v1947, %v1956
        %v1959 = vadd.f32 %v1943, %v1957
        %v1960 = vadd.f32 %v1944, %v1958
        %1961 = vset.pattern.permute.xlu0 6
        %1962 = vperm.xlu0 %1961, %v1863
        %v1963 = vpop.permute.xlu0 %1962
        %v1965 = vlaneseq
        %v1966 = vshrl.u32 %v1965, 7
        %v1967 = vsub.s32 6, %v1966
        %v1968 = vrot.slane %v1860, %v1967
        %v1969 = vlaneseq
        %v1970 = vshrl.u32 %v1969, 7
        %v1971 = vsub.s32 6, %v1970
        %v1972 = vrot.slane %v1861, %v1971
        %v1973 = vmul.f32 %v1963, %v1968
        %v1974 = vmul.f32 %v1963, %v1972
        %v1975 = vadd.f32 %v1959, %v1973
        %v1976 = vadd.f32 %v1960, %v1974
        %1977 = vset.pattern.permute.xlu0 7
        %1978 = vperm.xlu0 %1977, %v1863
        %v1979 = vpop.permute.xlu0 %1978
        %v1981 = vlaneseq
        %v1982 = vshrl.u32 %v1981, 7
        %v1983 = vsub.s32 7, %v1982
        %v1984 = vrot.slane %v1860, %v1983
        %v1985 = vlaneseq
        %v1986 = vshrl.u32 %v1985, 7
        %v1987 = vsub.s32 7, %v1986
        %v1988 = vrot.slane %v1861, %v1987
        %v1989 = vmul.f32 %v1979, %v1984
        %v1990 = vmul.f32 %v1979, %v1988
        %v1991 = vadd.f32 %v1975, %v1989
        %v1992 = vadd.f32 %v1976, %v1990
        %1993 = vrot.lane.b32.xlu0 %v1027, 112
        %v1994 = vpop.permute.xlu0 %1993
        %1995 = vrot.lane.b32.xlu0 %v1028, 112
        %v1996 = vpop.permute.xlu0 %1995
        %v1997 = vsel %vm836, %v1994, %v1996
        %v1998 = vsel %vm836, %v1996, %v1994
        %v1999 = vsel %vm841, %v1997, 0.0
        %v2000 = vsel %vm842, %v1998, 0.0
        %s2001 = scalar_lea.vmem %s3, 56
        %v2002 = vld [vmem:[%s2001] sm:$0xff]
        %2004 = vset.pattern.permute.xlu0 0
        %2005 = vperm.xlu0 %2004, %v2002
        %v2006 = vpop.permute.xlu0 %2005
        %v2008 = vlaneseq
        %v2009 = vshrl.u32 %v2008, 7
        %v2010 = vsub.s32 0, %v2009
        %v2011 = vrot.slane %v1999, %v2010
        %v2012 = vlaneseq
        %v2013 = vshrl.u32 %v2012, 7
        %v2014 = vsub.s32 0, %v2013
        %v2015 = vrot.slane %v2000, %v2014
        %v2016 = vmul.f32 %v2006, %v2011
        %v2017 = vmul.f32 %v2006, %v2015
        %v2018 = vadd.f32 %v1991, %v2016
        %v2019 = vadd.f32 %v1992, %v2017
        %2020 = vset.pattern.permute.xlu0 1
        %2021 = vperm.xlu0 %2020, %v2002
        %v2022 = vpop.permute.xlu0 %2021
        %v2024 = vlaneseq
        %v2025 = vshrl.u32 %v2024, 7
        %v2026 = vsub.s32 1, %v2025
        %v2027 = vrot.slane %v1999, %v2026
        %v2028 = vlaneseq
        %v2029 = vshrl.u32 %v2028, 7
        %v2030 = vsub.s32 1, %v2029
        %v2031 = vrot.slane %v2000, %v2030
        %v2032 = vmul.f32 %v2022, %v2027
        %v2033 = vmul.f32 %v2022, %v2031
        %v2034 = vadd.f32 %v2018, %v2032
        %v2035 = vadd.f32 %v2019, %v2033
        %2036 = vset.pattern.permute.xlu0 2
        %2037 = vperm.xlu0 %2036, %v2002
        %v2038 = vpop.permute.xlu0 %2037
        %v2040 = vlaneseq
        %v2041 = vshrl.u32 %v2040, 7
        %v2042 = vsub.s32 2, %v2041
        %v2043 = vrot.slane %v1999, %v2042
        %v2044 = vlaneseq
        %v2045 = vshrl.u32 %v2044, 7
        %v2046 = vsub.s32 2, %v2045
        %v2047 = vrot.slane %v2000, %v2046
        %v2048 = vmul.f32 %v2038, %v2043
        %v2049 = vmul.f32 %v2038, %v2047
        %v2050 = vadd.f32 %v2034, %v2048
        %v2051 = vadd.f32 %v2035, %v2049
        %2052 = vset.pattern.permute.xlu0 3
        %2053 = vperm.xlu0 %2052, %v2002
        %v2054 = vpop.permute.xlu0 %2053
        %v2056 = vlaneseq
        %v2057 = vshrl.u32 %v2056, 7
        %v2058 = vsub.s32 3, %v2057
        %v2059 = vrot.slane %v1999, %v2058
        %v2060 = vlaneseq
        %v2061 = vshrl.u32 %v2060, 7
        %v2062 = vsub.s32 3, %v2061
        %v2063 = vrot.slane %v2000, %v2062
        %v2064 = vmul.f32 %v2054, %v2059
        %v2065 = vmul.f32 %v2054, %v2063
        %v2066 = vadd.f32 %v2050, %v2064
        %v2067 = vadd.f32 %v2051, %v2065
        %2068 = vset.pattern.permute.xlu0 4
        %2069 = vperm.xlu0 %2068, %v2002
        %v2070 = vpop.permute.xlu0 %2069
        %v2072 = vlaneseq
        %v2073 = vshrl.u32 %v2072, 7
        %v2074 = vsub.s32 4, %v2073
        %v2075 = vrot.slane %v1999, %v2074
        %v2076 = vlaneseq
        %v2077 = vshrl.u32 %v2076, 7
        %v2078 = vsub.s32 4, %v2077
        %v2079 = vrot.slane %v2000, %v2078
        %v2080 = vmul.f32 %v2070, %v2075
        %v2081 = vmul.f32 %v2070, %v2079
        %v2082 = vadd.f32 %v2066, %v2080
        %v2083 = vadd.f32 %v2067, %v2081
        %2084 = vset.pattern.permute.xlu0 5
        %2085 = vperm.xlu0 %2084, %v2002
        %v2086 = vpop.permute.xlu0 %2085
        %v2088 = vlaneseq
        %v2089 = vshrl.u32 %v2088, 7
        %v2090 = vsub.s32 5, %v2089
        %v2091 = vrot.slane %v1999, %v2090
        %v2092 = vlaneseq
        %v2093 = vshrl.u32 %v2092, 7
        %v2094 = vsub.s32 5, %v2093
        %v2095 = vrot.slane %v2000, %v2094
        %v2096 = vmul.f32 %v2086, %v2091
        %v2097 = vmul.f32 %v2086, %v2095
        %v2098 = vadd.f32 %v2082, %v2096
        %v2099 = vadd.f32 %v2083, %v2097
        %2100 = vset.pattern.permute.xlu0 6
        %2101 = vperm.xlu0 %2100, %v2002
        %v2102 = vpop.permute.xlu0 %2101
        %v2104 = vlaneseq
        %v2105 = vshrl.u32 %v2104, 7
        %v2106 = vsub.s32 6, %v2105
        %v2107 = vrot.slane %v1999, %v2106
        %v2108 = vlaneseq
        %v2109 = vshrl.u32 %v2108, 7
        %v2110 = vsub.s32 6, %v2109
        %v2111 = vrot.slane %v2000, %v2110
        %v2112 = vmul.f32 %v2102, %v2107
        %v2113 = vmul.f32 %v2102, %v2111
        %v2114 = vadd.f32 %v2098, %v2112
        %v2115 = vadd.f32 %v2099, %v2113
        %2116 = vset.pattern.permute.xlu0 7
        %2117 = vperm.xlu0 %2116, %v2002
        %v2118 = vpop.permute.xlu0 %2117
        %v2120 = vlaneseq
        %v2121 = vshrl.u32 %v2120, 7
        %v2122 = vsub.s32 7, %v2121
        %v2123 = vrot.slane %v1999, %v2122
        %v2124 = vlaneseq
        %v2125 = vshrl.u32 %v2124, 7
        %v2126 = vsub.s32 7, %v2125
        %v2127 = vrot.slane %v2000, %v2126
        %v2128 = vmul.f32 %v2118, %v2123
        %v2129 = vmul.f32 %v2118, %v2127
        %v2130 = vadd.f32 %v2114, %v2128
        %v2131 = vadd.f32 %v2115, %v2129
        %2132 = vrot.lane.b32.xlu0 %v1027, 111
        %v2133 = vpop.permute.xlu0 %2132
        %2134 = vrot.lane.b32.xlu0 %v1028, 111
        %v2135 = vpop.permute.xlu0 %2134
        %v2136 = vsel %vm916, %v2133, %v2135
        %v2137 = vsel %vm916, %v2135, %v2133
        %v2138 = vsel %vm923, %v2136, 0.0
        %v2139 = vsel %vm924, %v2137, 0.0
        %s2140 = scalar_lea.vmem %s3, 64
        %v2141 = vld [vmem:[%s2140] sm:$0xff]
        %2143 = vset.pattern.permute.xlu0 0
        %2144 = vperm.xlu0 %2143, %v2141
        %v2145 = vpop.permute.xlu0 %2144
        %v2147 = vlaneseq
        %v2148 = vshrl.u32 %v2147, 7
        %v2149 = vsub.s32 0, %v2148
        %v2150 = vrot.slane %v2138, %v2149
        %v2151 = vlaneseq
        %v2152 = vshrl.u32 %v2151, 7
        %v2153 = vsub.s32 0, %v2152
        %v2154 = vrot.slane %v2139, %v2153
        %v2155 = vmul.f32 %v2145, %v2150
        %v2156 = vmul.f32 %v2145, %v2154
        %v2157 = vadd.f32 %v2130, %v2155
        %v2158 = vadd.f32 %v2131, %v2156
        %2159 = vset.pattern.permute.xlu0 1
        %2160 = vperm.xlu0 %2159, %v2141
        %v2161 = vpop.permute.xlu0 %2160
        %v2163 = vlaneseq
        %v2164 = vshrl.u32 %v2163, 7
        %v2165 = vsub.s32 1, %v2164
        %v2166 = vrot.slane %v2138, %v2165
        %v2167 = vlaneseq
        %v2168 = vshrl.u32 %v2167, 7
        %v2169 = vsub.s32 1, %v2168
        %v2170 = vrot.slane %v2139, %v2169
        %v2171 = vmul.f32 %v2161, %v2166
        %v2172 = vmul.f32 %v2161, %v2170
        %v2173 = vadd.f32 %v2157, %v2171
        %v2174 = vadd.f32 %v2158, %v2172
        %2175 = vset.pattern.permute.xlu0 2
        %2176 = vperm.xlu0 %2175, %v2141
        %v2177 = vpop.permute.xlu0 %2176
        %v2179 = vlaneseq
        %v2180 = vshrl.u32 %v2179, 7
        %v2181 = vsub.s32 2, %v2180
        %v2182 = vrot.slane %v2138, %v2181
        %v2183 = vlaneseq
        %v2184 = vshrl.u32 %v2183, 7
        %v2185 = vsub.s32 2, %v2184
        %v2186 = vrot.slane %v2139, %v2185
        %v2187 = vmul.f32 %v2177, %v2182
        %v2188 = vmul.f32 %v2177, %v2186
        %v2189 = vadd.f32 %v2173, %v2187
        %v2190 = vadd.f32 %v2174, %v2188
        %2191 = vset.pattern.permute.xlu0 3
        %2192 = vperm.xlu0 %2191, %v2141
        %v2193 = vpop.permute.xlu0 %2192
        %v2195 = vlaneseq
        %v2196 = vshrl.u32 %v2195, 7
        %v2197 = vsub.s32 3, %v2196
        %v2198 = vrot.slane %v2138, %v2197
        %v2199 = vlaneseq
        %v2200 = vshrl.u32 %v2199, 7
        %v2201 = vsub.s32 3, %v2200
        %v2202 = vrot.slane %v2139, %v2201
        %v2203 = vmul.f32 %v2193, %v2198
        %v2204 = vmul.f32 %v2193, %v2202
        %v2205 = vadd.f32 %v2189, %v2203
        %v2206 = vadd.f32 %v2190, %v2204
        %2207 = vset.pattern.permute.xlu0 4
        %2208 = vperm.xlu0 %2207, %v2141
        %v2209 = vpop.permute.xlu0 %2208
        %v2211 = vlaneseq
        %v2212 = vshrl.u32 %v2211, 7
        %v2213 = vsub.s32 4, %v2212
        %v2214 = vrot.slane %v2138, %v2213
        %v2215 = vlaneseq
        %v2216 = vshrl.u32 %v2215, 7
        %v2217 = vsub.s32 4, %v2216
        %v2218 = vrot.slane %v2139, %v2217
        %v2219 = vmul.f32 %v2209, %v2214
        %v2220 = vmul.f32 %v2209, %v2218
        %v2221 = vadd.f32 %v2205, %v2219
        %v2222 = vadd.f32 %v2206, %v2220
        %2223 = vset.pattern.permute.xlu0 5
        %2224 = vperm.xlu0 %2223, %v2141
        %v2225 = vpop.permute.xlu0 %2224
        %v2227 = vlaneseq
        %v2228 = vshrl.u32 %v2227, 7
        %v2229 = vsub.s32 5, %v2228
        %v2230 = vrot.slane %v2138, %v2229
        %v2231 = vlaneseq
        %v2232 = vshrl.u32 %v2231, 7
        %v2233 = vsub.s32 5, %v2232
        %v2234 = vrot.slane %v2139, %v2233
        %v2235 = vmul.f32 %v2225, %v2230
        %v2236 = vmul.f32 %v2225, %v2234
        %v2237 = vadd.f32 %v2221, %v2235
        %v2238 = vadd.f32 %v2222, %v2236
        %2239 = vset.pattern.permute.xlu0 6
        %2240 = vperm.xlu0 %2239, %v2141
        %v2241 = vpop.permute.xlu0 %2240
        %v2243 = vlaneseq
        %v2244 = vshrl.u32 %v2243, 7
        %v2245 = vsub.s32 6, %v2244
        %v2246 = vrot.slane %v2138, %v2245
        %v2247 = vlaneseq
        %v2248 = vshrl.u32 %v2247, 7
        %v2249 = vsub.s32 6, %v2248
        %v2250 = vrot.slane %v2139, %v2249
        %v2251 = vmul.f32 %v2241, %v2246
        %v2252 = vmul.f32 %v2241, %v2250
        %v2253 = vadd.f32 %v2237, %v2251
        %v2254 = vadd.f32 %v2238, %v2252
        %2255 = vset.pattern.permute.xlu0 7
        %2256 = vperm.xlu0 %2255, %v2141
        %v2257 = vpop.permute.xlu0 %2256
        %v2259 = vlaneseq
        %v2260 = vshrl.u32 %v2259, 7
        %v2261 = vsub.s32 7, %v2260
        %v2262 = vrot.slane %v2138, %v2261
        %v2263 = vlaneseq
        %v2264 = vshrl.u32 %v2263, 7
        %v2265 = vsub.s32 7, %v2264
        %v2266 = vrot.slane %v2139, %v2265
        %v2267 = vmul.f32 %v2257, %v2262
        %v2268 = vmul.f32 %v2257, %v2266
        %v2269 = vadd.f32 %v2253, %v2267
        %v2270 = vadd.f32 %v2254, %v2268
        %v2271 = vld [vmem:[%s4] sm:$0xff]
        %2273 = vset.pattern.permute.xlu0 0
        %2274 = vperm.xlu0 %2273, %v2271
        %v2275 = vpop.permute.xlu0 %2274
        %v2277 = vadd.f32 %v2269, %v2275
        %v2278 = vadd.f32 %v2270, %v2275
        %v2279 = vmul.f32 %v2277, %v2277
        %v2280 = vmul.f32 %v2278, %v2278
        %v2281 = vrot.slane %v2279, 4
        %v2282 = vadd.f32 %v2279, %v2281
        %v2283 = vrot.slane %v2282, 2
        %v2284 = vadd.f32 %v2282, %v2283
        %v2285 = vrot.slane %v2284, 1
        %v2286 = vadd.f32 %v2284, %v2285
        %v2287 = vrot.slane %v2280, 4
        %v2288 = vadd.f32 %v2280, %v2287
        %v2289 = vrot.slane %v2288, 2
        %v2290 = vadd.f32 %v2288, %v2289
        %v2291 = vrot.slane %v2290, 1
        %v2292 = vadd.f32 %v2290, %v2291
        %v2293 = vmul.f32 %v2286, %v1016
        %v2294 = vmul.f32 %v2292, %v1016
        %v2295 = vadd.f32 %v2293, 1e-08
        %v2296 = vadd.f32 %v2294, 1e-08
        %v2297 = vrsqrt.pop %v2295
        %v2298 = vrsqrt.pop %v2296
        %v2299 = vmul.f32 %v2277, %v2297
        %v2300 = vmul.f32 %v2278, %v2298
        %v2301 = vmul.f32 %v2299, 0.1
        %v2302 = vmul.f32 %v2300, 0.1
        %v2303 = vmax.f32 %v2299, %v2301
        %v2304 = vmax.f32 %v2300, %v2302
        %2305 = vst [vmem:[%s217] sm:$0xff] %v2303
        %2306 = vst [vmem:[%s217 + $0x8] sm:$0xff] %v2304
        %s2307 = sand.u32 %s137, 1
        %s2308 = scalar_lea.sflag [#allocation3], %s2307
        %s2309 = sand.u32 %s137, 1
        %s2310 = smul.addr %s2309, 16
        %s2311 = scalar_lea.vmem [#allocation2], %s2310
        // Predicated region
        $region41: #{tpu_custom_call.1} parent=39 // pred_check
          %p2312 = pneg %p147
        $region42: #{tpu_custom_call.1} parent=39 // pred_check_branch
          %2314 = sbr.rel (%p2312) target = $region44
        $region43: #{tpu_custom_call.1} parent=39 // pred_region
          %s2316 = ssub.s32 256, 256
          %2317 = vsyncadd %s2308, %s2316
          %s2318 = smul.addr %s19, 2
          %s2319 = smul.addr %s2318, 128
          %s2320 = scalar_lea.hbm %s5, %s2319
          %s2322 = sshll.u32 %s2311, 4
          %s2323 = int_to_ptr.vmem [resolvable:$true] %s2322
          %2325 = dma.vmem_to_hbm [thread:$0]  %s2323, 256, %s2320, %s2308
        $region44: #{tpu_custom_call.1} parent=39 // pred_fallthru
          _
      $region40: #{tpu_custom_call.1} parent=5 // pred_fallthru
        _
      %p2326 = scmp.le.s32.totalorder 2, %s14
      // Predicated region
      $region45: #{tpu_custom_call.1} parent=5 // pred_check
        %p2327 = pneg %p2326
      $region46: #{tpu_custom_call.1} parent=5 // pred_check_branch
        %2329 = sbr.rel (%p2327) target = $region48
      $region47: #{tpu_custom_call.1} parent=5 // pred_region
        %s2330 = ssub.s32 %s14, 2
        // Predicated region
        $region49: #{tpu_custom_call.1} parent=47 // pred_check
          %p2331 = pneg %p153
        $region50: #{tpu_custom_call.1} parent=47 // pred_check_branch
          %2333 = sbr.rel (%p2331) target = $region52
        $region51: #{tpu_custom_call.1} parent=47 // pred_region
          %s2334 = sand.u32 %s138, 1
          %s2335 = scalar_lea.sflag [#allocation3], %s2334
          %s2336 = sand.u32 %s138, 1
          %s2337 = smul.addr %s2336, 16
          %s2338 = scalar_lea.vmem [#allocation2], %s2337
          %2339 = dma.done %s2335, 256
        $region52: #{tpu_custom_call.1} parent=47 // pred_fallthru
          _
      $region48: #{tpu_custom_call.1} parent=5 // pred_fallthru
        _
    $region6: #{tpu_custom_call.1} parent=1 // loop_footer
      %s18 = sadd.s32 1, %s14
    $region7: #{tpu_custom_call.1} parent=1 // loop_footer_branch
      %13 = sbr.rel target = $region3
    $region8: #{tpu_custom_call.1} parent=1 // loop_exit
      _
    %2340 = vsyncpa [#allocation3], 1
    %s2341 = scalar_lea.sflag [#allocation3], 1
    %2342 = vsyncpa %s2341, 1

</llo_original>
